<compile_context>
chip_gen: v5e
topology: v5e:2x2
jax: 0.10.0
libtpu: 0.0.40
codegen_flags: <defaults>
</compile_context>

<pallas_src>
import functools

import jax
import jax.numpy as jnp
from jax.experimental import pallas as pl
from jax.experimental.pallas import tpu as pltpu


# ------------------------------- fused Pallas kernel ---------------------------------
def _residual_block_kernel(x_ref, w1_ref, s1_ref, b1_ref, w2_ref, s2_ref, b2_ref,
                           o_ref, xpad_ref, *, H, W, C, KH, KW, PAD):
    """One image per grid step: conv3x3 -> BN -> ReLU -> conv3x3 -> BN -> +x.

    x_ref:            (1, H, W, C)  f32 input block (NHWC)
    w1_ref, w2_ref:   (KH*KW*C, C)  bf16 weights, rows ordered (dy, dx, cin)
    s*_ref, b*_ref:   (1, C)        folded BN scale / bias (conv bias folded in)
    o_ref:            (1, H, W, C)  f32 output block
    xpad_ref:         (H+2, PAD+W+8, C) f32 VMEM scratch, zero-padded activation
    """
    # Zero the padded scratch every grid step (with a "parallel" batch axis each
    # core owns its own scratch instance, so a pid==0 init would be wrong).
    xpad_ref[...] = jnp.zeros(xpad_ref.shape, xpad_ref.dtype)

    # conv1 input -> interior of the padded scratch (column offset PAD is
    # sublane-aligned -> unmasked stores; borders stay zero).
    xpad_ref[1:1 + H, PAD:PAD + W, :] = x_ref[...].reshape(H, W, C)

    def conv3x3(w_ref):
        # im2col: gather the KH*KW shifted windows, concatenate along the
        # contraction dim, and do a single deep-K matmul on the MXU.
        patches = []
        for dy in range(KH):
            for dx in range(KW):
                c0 = PAD - 1 + dx
                p = xpad_ref[dy:dy + H, c0:c0 + W, :]          # (H, W, C) f32
                patches.append(p.reshape(H * W, C).astype(jnp.bfloat16))
        slab = jnp.concatenate(patches, axis=-1)               # (H*W, KH*KW*C) bf16
        return jnp.dot(slab, w_ref[...], preferred_element_type=jnp.float32)

    # conv1 -> folded BN1 -> ReLU   (f32 epilogue)
    h = jnp.maximum(conv3x3(w1_ref) * s1_ref[...] + b1_ref[...], 0.0)
    # TODO(synk): nn.Dropout(0.5) (use_dropout=True, train mode) not modeled.

    # write h back into the padded scratch (borders are still zero)
    xpad_ref[1:1 + H, PAD:PAD + W, :] = h.reshape(H, W, C)

    # conv2 -> folded BN2 (no activation), then residual skip
    y = conv3x3(w2_ref) * s2_ref[...] + b2_ref[...]
    y = y + x_ref[...].reshape(H * W, C)
    o_ref[...] = y.reshape(1, H, W, C).astype(o_ref.dtype)


# ------------------------------------ wrapper -----------------------------------------
def residual_block(x, params):
    """x: (N, H, W, C) f32 NHWC. Returns (N, H, W, C) f32."""
    N, H, W, C = x.shape
    KH = KW = 3
    PAD = 8                       # sublane-aligned interior column start
    W_PAD = PAD + W + 8           # >= PAD + W + 1 zero col on the right, multiple of 8

    # Pre-reshape / pre-cast weights once (halves weight DMA, bf16-native MXU).
    w1 = params['w1'].reshape(KH * KW * C, C).astype(jnp.bfloat16)
    w2 = params['w2'].reshape(KH * KW * C, C).astype(jnp.bfloat16)
    s1 = params['s1'].reshape(1, C)
    b1 = params['b1'].reshape(1, C)
    s2 = params['s2'].reshape(1, C)
    b2 = params['b2'].reshape(1, C)

    kernel = functools.partial(_residual_block_kernel, H=H, W=W, C=C,
                               KH=KH, KW=KW, PAD=PAD)
    full = lambda n: (0, 0)
    return pl.pallas_call(
        kernel,
        out_shape=jax.ShapeDtypeStruct((N, H, W, C), jnp.float32),
        grid_spec=pltpu.PrefetchScalarGridSpec(
            num_scalar_prefetch=0,
            grid=(N,),
            in_specs=[
                pl.BlockSpec((1, H, W, C), lambda n: (n, 0, 0, 0)),
                pl.BlockSpec((KH * KW * C, C), full),
                pl.BlockSpec((1, C), full),
                pl.BlockSpec((1, C), full),
                pl.BlockSpec((KH * KW * C, C), full),
                pl.BlockSpec((1, C), full),
                pl.BlockSpec((1, C), full),
            ],
            out_specs=pl.BlockSpec((1, H, W, C), lambda n: (n, 0, 0, 0)),
            scratch_shapes=[pltpu.VMEM((H + 2, W_PAD, C), jnp.float32)],
        ),
        compiler_params=pltpu.CompilerParams(
            dimension_semantics=("parallel",),   # v7x: split batch across the 2 TCs
        ),
    )(x, w1, s1, b1, w2, s2, b2)


# ---------------------------- pure-JAX reference (f32) --------------------------------
def residual_block_ref(x, p):
    dn = ('NHWC', 'HWIO', 'NHWC')
    h = jax.lax.conv_general_dilated(x, p['w1'], (1, 1), 'SAME', dimension_numbers=dn)
    h = jnp.maximum(h * p['s1'] + p['b1'], 0.0)
    y = jax.lax.conv_general_dilated(h, p['w2'], (1, 1), 'SAME', dimension_numbers=dn)
    y = y * p['s2'] + p['b2']
    return x + y


# ------------------------------ deterministic params ----------------------------------
def make_params(key, dim=64):
    ks = jax.random.split(key, 6)

    def conv_w(k):
        return 0.05 * jax.random.normal(k, (3, 3, dim, dim), jnp.float32)

    def conv_b(k):
        return 0.05 * jax.random.normal(k, (dim,), jnp.float32)

    def bn(k):
        k1, k2, k3, k4 = jax.random.split(k, 4)
        gamma = 1.0 + 0.1 * jax.random.normal(k1, (dim,), jnp.float32)
        beta = 0.1 * jax.random.normal(k2, (dim,), jnp.float32)
        mean = 0.1 * jax.random.normal(k3, (dim,), jnp.float32)
        var = jax.random.uniform(k4, (dim,), jnp.float32, minval=0.5, maxval=1.5)
        scale = gamma / jnp.sqrt(var + 1e-5)
        bias = beta - mean * scale
        return scale, bias

    p = {}
    p['w1'] = conv_w(ks[0])
    bc1 = conv_b(ks[1])                               # use_bias=True
    s1, b1 = bn(ks[2])
    p['s1'], p['b1'] = s1, b1 + bc1 * s1              # fold conv bias into BN bias

    p['w2'] = conv_w(ks[3])
    bc2 = conv_b(ks[4])
    s2, b2 = bn(ks[5])
    p['s2'], p['b2'] = s2, b2 + bc2 * s2
    return p


if __name__ == "__main__":
    key = jax.random.PRNGKey(0)
    kx, kp = jax.random.split(key)

    N, H, W, dim = 2, 16, 16, 64
    # NHWC; equivalent PyTorch NCHW input shape is (2, 64, 16, 16)
    x = jax.random.normal(kx, (N, H, W, dim), jnp.float32)
    params = make_params(kp, dim=dim)

    fwd = jax.jit(residual_block)
    out = jax.block_until_ready(fwd(x, params))

    assert out.shape == (N, H, W, dim), out.shape
    assert bool(jnp.all(jnp.isfinite(out)))

    ref = residual_block_ref(x, params)
    err = float(jnp.max(jnp.abs(out - ref)))
    assert err < 1e-1, f"max abs error vs f32 reference too large: {err}"

    print("KERNEL_OK")
</pallas_src>

<mosaic_0001>
module attributes {stable_mosaic.version = 11 : i64} {
  func.func @_residual_block_kernel(%arg0: i32, %arg1: memref<1x16x16x64xf32, #tpu.memory_space<vmem>>, %arg2: memref<576x64xbf16, #tpu.memory_space<vmem>>, %arg3: memref<1x64xf32, #tpu.memory_space<vmem>>, %arg4: memref<1x64xf32, #tpu.memory_space<vmem>>, %arg5: memref<576x64xbf16, #tpu.memory_space<vmem>>, %arg6: memref<1x64xf32, #tpu.memory_space<vmem>>, %arg7: memref<1x64xf32, #tpu.memory_space<vmem>>, %arg8: memref<1x16x16x64xf32, #tpu.memory_space<vmem>>, %arg9: memref<18x32x64xf32, #tpu.memory_space<vmem>>) attributes {dimension_semantics = [#tpu.dimension_semantics<parallel>], iteration_bounds = array<i64: 2>, scalar_prefetch = 0 : i64, scratch_operands = 1 : i64, tpu.core_type = #tpu.core_type<tc>, window_params = [{transform_indices = @transform_0, window_bounds = array<i64: 1, 16, 16, 64>}, {pipeline_mode = #tpu.pipeline_mode<synchronous>, transform_indices = @transform_1, window_bounds = array<i64: 576, 64>}, {pipeline_mode = #tpu.pipeline_mode<synchronous>, transform_indices = @transform_2, window_bounds = array<i64: 1, 64>}, {pipeline_mode = #tpu.pipeline_mode<synchronous>, transform_indices = @transform_3, window_bounds = array<i64: 1, 64>}, {pipeline_mode = #tpu.pipeline_mode<synchronous>, transform_indices = @transform_4, window_bounds = array<i64: 576, 64>}, {pipeline_mode = #tpu.pipeline_mode<synchronous>, transform_indices = @transform_5, window_bounds = array<i64: 1, 64>}, {pipeline_mode = #tpu.pipeline_mode<synchronous>, transform_indices = @transform_6, window_bounds = array<i64: 1, 64>}, {transform_indices = @transform_7, window_bounds = array<i64: 1, 16, 16, 64>}]} {
    %cst = arith.constant 0.000000e+00 : f32
    %0 = vector.broadcast %cst : f32 to vector<18x32x64xf32>
    %c0 = arith.constant 0 : index
    %c0_0 = arith.constant 0 : index
    %c0_1 = arith.constant 0 : index
    %1 = vector.load %arg9[%c0, %c0_0, %c0_1] : memref<18x32x64xf32, #tpu.memory_space<vmem>>, vector<18x32x64xf32>
    tpu.vector_store %arg9[%c0, %c0_0, %c0_1], %0 {strides = array<i32>} : memref<18x32x64xf32, #tpu.memory_space<vmem>>, vector<18x32x64xf32>,
    %c0_2 = arith.constant 0 : index
    %c0_3 = arith.constant 0 : index
    %c0_4 = arith.constant 0 : index
    %c0_5 = arith.constant 0 : index
    %2 = vector.load %arg1[%c0_2, %c0_3, %c0_4, %c0_5] : memref<1x16x16x64xf32, #tpu.memory_space<vmem>>, vector<1x16x16x64xf32>
    %3 = vector.shape_cast %2 : vector<1x16x16x64xf32> to vector<16x16x64xf32>
    %c1 = arith.constant 1 : index
    %c8 = arith.constant 8 : index
    %c0_6 = arith.constant 0 : index
    %4 = vector.load %arg9[%c1, %c8, %c0_6] : memref<18x32x64xf32, #tpu.memory_space<vmem>>, vector<16x16x64xf32>
    tpu.vector_store %arg9[%c1, %c8, %c0_6], %3 {strides = array<i32>} : memref<18x32x64xf32, #tpu.memory_space<vmem>>, vector<16x16x64xf32>,
    %c0_7 = arith.constant 0 : index
    %c7 = arith.constant 7 : index
    %c0_8 = arith.constant 0 : index
    %5 = vector.load %arg9[%c0_7, %c7, %c0_8] : memref<18x32x64xf32, #tpu.memory_space<vmem>>, vector<16x16x64xf32>
    %6 = vector.shape_cast %5 : vector<16x16x64xf32> to vector<256x64xf32>
    %7 = arith.truncf %6 : vector<256x64xf32> to vector<256x64xbf16>
    %c0_9 = arith.constant 0 : index
    %c8_10 = arith.constant 8 : index
    %c0_11 = arith.constant 0 : index
    %8 = vector.load %arg9[%c0_9, %c8_10, %c0_11] : memref<18x32x64xf32, #tpu.memory_space<vmem>>, vector<16x16x64xf32>
    %9 = vector.shape_cast %8 : vector<16x16x64xf32> to vector<256x64xf32>
    %10 = arith.truncf %9 : vector<256x64xf32> to vector<256x64xbf16>
    %c0_12 = arith.constant 0 : index
    %c9 = arith.constant 9 : index
    %c0_13 = arith.constant 0 : index
    %11 = vector.load %arg9[%c0_12, %c9, %c0_13] : memref<18x32x64xf32, #tpu.memory_space<vmem>>, vector<16x16x64xf32>
    %12 = vector.shape_cast %11 : vector<16x16x64xf32> to vector<256x64xf32>
    %13 = arith.truncf %12 : vector<256x64xf32> to vector<256x64xbf16>
    %c1_14 = arith.constant 1 : index
    %c7_15 = arith.constant 7 : index
    %c0_16 = arith.constant 0 : index
    %14 = vector.load %arg9[%c1_14, %c7_15, %c0_16] : memref<18x32x64xf32, #tpu.memory_space<vmem>>, vector<16x16x64xf32>
    %15 = vector.shape_cast %14 : vector<16x16x64xf32> to vector<256x64xf32>
    %16 = arith.truncf %15 : vector<256x64xf32> to vector<256x64xbf16>
    %c1_17 = arith.constant 1 : index
    %c8_18 = arith.constant 8 : index
    %c0_19 = arith.constant 0 : index
    %17 = vector.load %arg9[%c1_17, %c8_18, %c0_19] : memref<18x32x64xf32, #tpu.memory_space<vmem>>, vector<16x16x64xf32>
    %18 = vector.shape_cast %17 : vector<16x16x64xf32> to vector<256x64xf32>
    %19 = arith.truncf %18 : vector<256x64xf32> to vector<256x64xbf16>
    %c1_20 = arith.constant 1 : index
    %c9_21 = arith.constant 9 : index
    %c0_22 = arith.constant 0 : index
    %20 = vector.load %arg9[%c1_20, %c9_21, %c0_22] : memref<18x32x64xf32, #tpu.memory_space<vmem>>, vector<16x16x64xf32>
    %21 = vector.shape_cast %20 : vector<16x16x64xf32> to vector<256x64xf32>
    %22 = arith.truncf %21 : vector<256x64xf32> to vector<256x64xbf16>
    %c2 = arith.constant 2 : index
    %c7_23 = arith.constant 7 : index
    %c0_24 = arith.constant 0 : index
    %23 = vector.load %arg9[%c2, %c7_23, %c0_24] : memref<18x32x64xf32, #tpu.memory_space<vmem>>, vector<16x16x64xf32>
    %24 = vector.shape_cast %23 : vector<16x16x64xf32> to vector<256x64xf32>
    %25 = arith.truncf %24 : vector<256x64xf32> to vector<256x64xbf16>
    %c2_25 = arith.constant 2 : index
    %c8_26 = arith.constant 8 : index
    %c0_27 = arith.constant 0 : index
    %26 = vector.load %arg9[%c2_25, %c8_26, %c0_27] : memref<18x32x64xf32, #tpu.memory_space<vmem>>, vector<16x16x64xf32>
    %27 = vector.shape_cast %26 : vector<16x16x64xf32> to vector<256x64xf32>
    %28 = arith.truncf %27 : vector<256x64xf32> to vector<256x64xbf16>
    %c2_28 = arith.constant 2 : index
    %c9_29 = arith.constant 9 : index
    %c0_30 = arith.constant 0 : index
    %29 = vector.load %arg9[%c2_28, %c9_29, %c0_30] : memref<18x32x64xf32, #tpu.memory_space<vmem>>, vector<16x16x64xf32>
    %30 = vector.shape_cast %29 : vector<16x16x64xf32> to vector<256x64xf32>
    %31 = arith.truncf %30 : vector<256x64xf32> to vector<256x64xbf16>
    %32 = tpu.concatenate %7, %10, %13, %16, %19, %22, %25, %28, %31 in 1 : vector<256x64xbf16>, vector<256x64xbf16>, vector<256x64xbf16>, vector<256x64xbf16>, vector<256x64xbf16>, vector<256x64xbf16>, vector<256x64xbf16>, vector<256x64xbf16>, vector<256x64xbf16> -> vector<256x576xbf16>
    %c0_31 = arith.constant 0 : index
    %c0_32 = arith.constant 0 : index
    %33 = vector.load %arg2[%c0_31, %c0_32] : memref<576x64xbf16, #tpu.memory_space<vmem>>, vector<576x64xbf16>
    %cst_33 = arith.constant dense<0.000000e+00> : vector<256x64xf32>
    %34 = tpu.matmul %32, %33, %cst_33 {dimension_numbers = #tpu.dot_dimension_numbers<[1], [0], [0], [1], [0, 0, 1, 1], [], []>} : vector<256x576xbf16>, vector<576x64xbf16>, vector<256x64xf32> -> vector<256x64xf32>
    %c0_34 = arith.constant 0 : index
    %c0_35 = arith.constant 0 : index
    %35 = vector.load %arg3[%c0_34, %c0_35] : memref<1x64xf32, #tpu.memory_space<vmem>>, vector<1x64xf32>
    %36 = vector.broadcast %35 : vector<1x64xf32> to vector<256x64xf32>
    %37 = arith.mulf %34, %36 : vector<256x64xf32>
    %c0_36 = arith.constant 0 : index
    %c0_37 = arith.constant 0 : index
    %38 = vector.load %arg4[%c0_36, %c0_37] : memref<1x64xf32, #tpu.memory_space<vmem>>, vector<1x64xf32>
    %39 = vector.broadcast %38 : vector<1x64xf32> to vector<256x64xf32>
    %40 = arith.addf %37, %39 : vector<256x64xf32>
    %cst_38 = arith.constant 0.000000e+00 : f32
    %41 = vector.broadcast %cst_38 : f32 to vector<256x64xf32>
    %42 = arith.maximumf %40, %41 : vector<256x64xf32>
    %43 = vector.shape_cast %42 : vector<256x64xf32> to vector<16x16x64xf32>
    %c1_39 = arith.constant 1 : index
    %c8_40 = arith.constant 8 : index
    %c0_41 = arith.constant 0 : index
    %44 = vector.load %arg9[%c1_39, %c8_40, %c0_41] : memref<18x32x64xf32, #tpu.memory_space<vmem>>, vector<16x16x64xf32>
    tpu.vector_store %arg9[%c1_39, %c8_40, %c0_41], %43 {strides = array<i32>} : memref<18x32x64xf32, #tpu.memory_space<vmem>>, vector<16x16x64xf32>,
    %c0_42 = arith.constant 0 : index
    %c7_43 = arith.constant 7 : index
    %c0_44 = arith.constant 0 : index
    %45 = vector.load %arg9[%c0_42, %c7_43, %c0_44] : memref<18x32x64xf32, #tpu.memory_space<vmem>>, vector<16x16x64xf32>
    %46 = vector.shape_cast %45 : vector<16x16x64xf32> to vector<256x64xf32>
    %47 = arith.truncf %46 : vector<256x64xf32> to vector<256x64xbf16>
    %c0_45 = arith.constant 0 : index
    %c8_46 = arith.constant 8 : index
    %c0_47 = arith.constant 0 : index
    %48 = vector.load %arg9[%c0_45, %c8_46, %c0_47] : memref<18x32x64xf32, #tpu.memory_space<vmem>>, vector<16x16x64xf32>
    %49 = vector.shape_cast %48 : vector<16x16x64xf32> to vector<256x64xf32>
    %50 = arith.truncf %49 : vector<256x64xf32> to vector<256x64xbf16>
    %c0_48 = arith.constant 0 : index
    %c9_49 = arith.constant 9 : index
    %c0_50 = arith.constant 0 : index
    %51 = vector.load %arg9[%c0_48, %c9_49, %c0_50] : memref<18x32x64xf32, #tpu.memory_space<vmem>>, vector<16x16x64xf32>
    %52 = vector.shape_cast %51 : vector<16x16x64xf32> to vector<256x64xf32>
    %53 = arith.truncf %52 : vector<256x64xf32> to vector<256x64xbf16>
    %c1_51 = arith.constant 1 : index
    %c7_52 = arith.constant 7 : index
    %c0_53 = arith.constant 0 : index
    %54 = vector.load %arg9[%c1_51, %c7_52, %c0_53] : memref<18x32x64xf32, #tpu.memory_space<vmem>>, vector<16x16x64xf32>
    %55 = vector.shape_cast %54 : vector<16x16x64xf32> to vector<256x64xf32>
    %56 = arith.truncf %55 : vector<256x64xf32> to vector<256x64xbf16>
    %c1_54 = arith.constant 1 : index
    %c8_55 = arith.constant 8 : index
    %c0_56 = arith.constant 0 : index
    %57 = vector.load %arg9[%c1_54, %c8_55, %c0_56] : memref<18x32x64xf32, #tpu.memory_space<vmem>>, vector<16x16x64xf32>
    %58 = vector.shape_cast %57 : vector<16x16x64xf32> to vector<256x64xf32>
    %59 = arith.truncf %58 : vector<256x64xf32> to vector<256x64xbf16>
    %c1_57 = arith.constant 1 : index
    %c9_58 = arith.constant 9 : index
    %c0_59 = arith.constant 0 : index
    %60 = vector.load %arg9[%c1_57, %c9_58, %c0_59] : memref<18x32x64xf32, #tpu.memory_space<vmem>>, vector<16x16x64xf32>
    %61 = vector.shape_cast %60 : vector<16x16x64xf32> to vector<256x64xf32>
    %62 = arith.truncf %61 : vector<256x64xf32> to vector<256x64xbf16>
    %c2_60 = arith.constant 2 : index
    %c7_61 = arith.constant 7 : index
    %c0_62 = arith.constant 0 : index
    %63 = vector.load %arg9[%c2_60, %c7_61, %c0_62] : memref<18x32x64xf32, #tpu.memory_space<vmem>>, vector<16x16x64xf32>
    %64 = vector.shape_cast %63 : vector<16x16x64xf32> to vector<256x64xf32>
    %65 = arith.truncf %64 : vector<256x64xf32> to vector<256x64xbf16>
    %c2_63 = arith.constant 2 : index
    %c8_64 = arith.constant 8 : index
    %c0_65 = arith.constant 0 : index
    %66 = vector.load %arg9[%c2_63, %c8_64, %c0_65] : memref<18x32x64xf32, #tpu.memory_space<vmem>>, vector<16x16x64xf32>
    %67 = vector.shape_cast %66 : vector<16x16x64xf32> to vector<256x64xf32>
    %68 = arith.truncf %67 : vector<256x64xf32> to vector<256x64xbf16>
    %c2_66 = arith.constant 2 : index
    %c9_67 = arith.constant 9 : index
    %c0_68 = arith.constant 0 : index
    %69 = vector.load %arg9[%c2_66, %c9_67, %c0_68] : memref<18x32x64xf32, #tpu.memory_space<vmem>>, vector<16x16x64xf32>
    %70 = vector.shape_cast %69 : vector<16x16x64xf32> to vector<256x64xf32>
    %71 = arith.truncf %70 : vector<256x64xf32> to vector<256x64xbf16>
    %72 = tpu.concatenate %47, %50, %53, %56, %59, %62, %65, %68, %71 in 1 : vector<256x64xbf16>, vector<256x64xbf16>, vector<256x64xbf16>, vector<256x64xbf16>, vector<256x64xbf16>, vector<256x64xbf16>, vector<256x64xbf16>, vector<256x64xbf16>, vector<256x64xbf16> -> vector<256x576xbf16>
    %c0_69 = arith.constant 0 : index
    %c0_70 = arith.constant 0 : index
    %73 = vector.load %arg5[%c0_69, %c0_70] : memref<576x64xbf16, #tpu.memory_space<vmem>>, vector<576x64xbf16>
    %cst_71 = arith.constant dense<0.000000e+00> : vector<256x64xf32>
    %74 = tpu.matmul %72, %73, %cst_71 {dimension_numbers = #tpu.dot_dimension_numbers<[1], [0], [0], [1], [0, 0, 1, 1], [], []>} : vector<256x576xbf16>, vector<576x64xbf16>, vector<256x64xf32> -> vector<256x64xf32>
    %c0_72 = arith.constant 0 : index
    %c0_73 = arith.constant 0 : index
    %75 = vector.load %arg6[%c0_72, %c0_73] : memref<1x64xf32, #tpu.memory_space<vmem>>, vector<1x64xf32>
    %76 = vector.broadcast %75 : vector<1x64xf32> to vector<256x64xf32>
    %77 = arith.mulf %74, %76 : vector<256x64xf32>
    %c0_74 = arith.constant 0 : index
    %c0_75 = arith.constant 0 : index
    %78 = vector.load %arg7[%c0_74, %c0_75] : memref<1x64xf32, #tpu.memory_space<vmem>>, vector<1x64xf32>
    %79 = vector.broadcast %78 : vector<1x64xf32> to vector<256x64xf32>
    %80 = arith.addf %77, %79 : vector<256x64xf32>
    %c0_76 = arith.constant 0 : index
    %c0_77 = arith.constant 0 : index
    %c0_78 = arith.constant 0 : index
    %c0_79 = arith.constant 0 : index
    %81 = vector.load %arg1[%c0_76, %c0_77, %c0_78, %c0_79] : memref<1x16x16x64xf32, #tpu.memory_space<vmem>>, vector<1x16x16x64xf32>
    %82 = vector.shape_cast %81 : vector<1x16x16x64xf32> to vector<256x64xf32>
    %83 = arith.addf %80, %82 : vector<256x64xf32>
    %84 = vector.shape_cast %83 : vector<256x64xf32> to vector<1x16x16x64xf32>
    %c0_80 = arith.constant 0 : index
    %c0_81 = arith.constant 0 : index
    %c0_82 = arith.constant 0 : index
    %c0_83 = arith.constant 0 : index
    %85 = vector.load %arg8[%c0_80, %c0_81, %c0_82, %c0_83] : memref<1x16x16x64xf32, #tpu.memory_space<vmem>>, vector<1x16x16x64xf32>
    tpu.vector_store %arg8[%c0_80, %c0_81, %c0_82, %c0_83], %84 {strides = array<i32>} : memref<1x16x16x64xf32, #tpu.memory_space<vmem>>, vector<1x16x16x64xf32>,
    return
  }
  func.func @transform_0(%arg0: i32) -> (i32, i32, i32, i32) {
    %c0_i32 = arith.constant 0 : i32
    %c0_i32_0 = arith.constant 0 : i32
    %c0_i32_1 = arith.constant 0 : i32
    %c0_i32_2 = arith.constant 0 : i32
    return %arg0, %c0_i32, %c0_i32_0, %c0_i32_1 : i32, i32, i32, i32
  }
  func.func @transform_1(%arg0: i32) -> (i32, i32) {
    %c0_i32 = arith.constant 0 : i32
    %c0_i32_0 = arith.constant 0 : i32
    %c0_i32_1 = arith.constant 0 : i32
    return %c0_i32, %c0_i32_0 : i32, i32
  }
  func.func @transform_2(%arg0: i32) -> (i32, i32) {
    %c0_i32 = arith.constant 0 : i32
    %c0_i32_0 = arith.constant 0 : i32
    %c0_i32_1 = arith.constant 0 : i32
    return %c0_i32, %c0_i32_0 : i32, i32
  }
  func.func @transform_3(%arg0: i32) -> (i32, i32) {
    %c0_i32 = arith.constant 0 : i32
    %c0_i32_0 = arith.constant 0 : i32
    %c0_i32_1 = arith.constant 0 : i32
    return %c0_i32, %c0_i32_0 : i32, i32
  }
  func.func @transform_4(%arg0: i32) -> (i32, i32) {
    %c0_i32 = arith.constant 0 : i32
    %c0_i32_0 = arith.constant 0 : i32
    %c0_i32_1 = arith.constant 0 : i32
    return %c0_i32, %c0_i32_0 : i32, i32
  }
  func.func @transform_5(%arg0: i32) -> (i32, i32) {
    %c0_i32 = arith.constant 0 : i32
    %c0_i32_0 = arith.constant 0 : i32
    %c0_i32_1 = arith.constant 0 : i32
    return %c0_i32, %c0_i32_0 : i32, i32
  }
  func.func @transform_6(%arg0: i32) -> (i32, i32) {
    %c0_i32 = arith.constant 0 : i32
    %c0_i32_0 = arith.constant 0 : i32
    %c0_i32_1 = arith.constant 0 : i32
    return %c0_i32, %c0_i32_0 : i32, i32
  }
  func.func @transform_7(%arg0: i32) -> (i32, i32, i32, i32) {
    %c0_i32 = arith.constant 0 : i32
    %c0_i32_0 = arith.constant 0 : i32
    %c0_i32_1 = arith.constant 0 : i32
    %c0_i32_2 = arith.constant 0 : i32
    return %arg0, %c0_i32, %c0_i32_0, %c0_i32_1 : i32, i32, i32, i32
  }
}

</mosaic_0001>

<llo_original>
// kernel: residual_block.1
$region0: #{residual_block.1}
  #allocation0 [shape = 'u32[]', space=smem, size = 0x4, offset = 0x4, fixed_abs, tag = 'smem constant byte address 0x4 - core index']
  #allocation1 [shape = 'u32[72,128]{1,0:T(1,128)}', space=vmem, size = 0x9000, scoped, tag = 'internal scratch']
  #allocation2 [shape = 'f32[18,32,64]{2,1,0:T(8,128)}', space=vmem, size = 0x48000, scoped, tag = 'scratch operand']
  %s0 = inlined_call_operand.vmem [shape: f32[2,16,16,64], index: 0, kind: input, shape index: {}]
  %s1 = inlined_call_operand.vmem [shape: bf16[576,64], index: 1, kind: input, shape index: {}]
  %s2 = inlined_call_operand.vmem [shape: f32[1,64], index: 2, kind: input, shape index: {}]
  %s3 = inlined_call_operand.vmem [shape: f32[1,64], index: 3, kind: input, shape index: {}]
  %s4 = inlined_call_operand.vmem [shape: bf16[576,64], index: 4, kind: input, shape index: {}]
  %s5 = inlined_call_operand.vmem [shape: f32[1,64], index: 5, kind: input, shape index: {}]
  %s6 = inlined_call_operand.vmem [shape: f32[1,64], index: 6, kind: input, shape index: {}]
  %s7 = inlined_call_operand.hbm [shape: f32[2,16,16,64], index: 7, kind: output, shape index: {}]
  %s8 = sld [smem:[#allocation0]]
  $region61: #{residual_block.1} parent=0
    _
  %s10 = ssub.s32 1, %s8
  %s11 = scalar_select 0, %s10, %s8
  $region1: #{residual_block.1} parent=0
    #allocation3 [shape = 'u8[262144]{0}', space=vmem, size = 0x40000, scoped, tag = 'output window, operand 0']
    #allocation4 [shape = 's32[2]{0}', space=sflag, size = 0x8, scoped, tag = 'scoped memory for residual_block.1']
    %12 = vsyncpa [#allocation4], 0
    %s13 = scalar_lea.sflag [#allocation4], 1
    %14 = vsyncpa %s13, 0
    loop: start=0, step=1, limit=4
    $region2: #{residual_block.1} parent=1 // loop_pre_header
      _
    $region3: #{residual_block.1} parent=1 // loop_header
      %s16 = sphi 0, %s20
      %p17 = scmp.ge.s32.totalorder %s16, 4
      %s26 = sphi 0, %s28
      %s29 = sphi 0, %s26
      %s30 = sphi 0, %s29
      %s46 = sphi 0, %s30
      %s50 = sphi 0, %s50
      %s52 = sphi 0, %s50
      %s53 = sphi 0, %s52
      %s67 = sphi 0, %s53
      %s71 = sphi 0, %s71
      %s73 = sphi 0, %s71
      %s74 = sphi 0, %s73
      %s88 = sphi 0, %s74
      %s92 = sphi 0, %s92
      %s94 = sphi 0, %s92
      %s95 = sphi 0, %s94
      %s109 = sphi 0, %s95
      %s113 = sphi 0, %s113
      %s115 = sphi 0, %s113
      %s116 = sphi 0, %s115
      %s130 = sphi 0, %s116
      %s134 = sphi 0, %s134
      %s136 = sphi 0, %s134
      %s137 = sphi 0, %s136
      %s151 = sphi 0, %s137
      %s155 = sphi 0, %s155
      %s157 = sphi 0, %s155
      %s158 = sphi 0, %s157
      %s172 = sphi 0, %s158
      %s178 = sphi 0, %s180
      %s181 = sphi 0, %s178
      %s182 = sphi 0, %s181
      %s198 = sphi 0, %s182
    $region4: #{residual_block.1} parent=1 // loop_header_branch
      %19 = sbr.rel (%p17) target = $region8
    $region5: #{residual_block.1} parent=1 // loop_body
      %s21 = ssub.s32 %s16, 1
      %s22 = ssub.s32 %s16, 2
      %s23 = sadd.s32 %s16, 1
      %s24 = ssub.s32 %s16, %s23
      %p25 = scmp.eq.s32.totalorder %s24, 0
      %s27 = sadd.s32 %s26, 1
      %s28 = scalar_select %p25, %s26, %s27
      %p31 = pneg %p25
      %p32 = scmp.eq.s32.totalorder %s16, 1
      %p33 = por %p31, %p32
      %p34 = scmp.ne.s32.totalorder %s26, %s29
      %p35 = scmp.eq.s32.totalorder %s16, 0
      %p36 = por %p34, %p35
      %p37 = scmp.ne.s32.totalorder %s26, %s29
      %p38 = scmp.eq.s32.totalorder %s21, 1
      %p39 = por %p37, %p38
      %p40 = scmp.ne.s32.totalorder %s29, %s30
      %p41 = scmp.eq.s32.totalorder %s21, 0
      %p42 = por %p40, %p41
      %p43 = scmp.ne.s32.totalorder %s29, %s30
      %p44 = scmp.eq.s32.totalorder %s22, 1
      %p45 = por %p43, %p44
      %p47 = scmp.ne.s32.totalorder %s30, %s46
      %p48 = scmp.eq.s32.totalorder %s22, 0
      %p49 = por %p47, %p48
      %s51 = sadd.s32 %s50, 1
      %p54 = scmp.eq.s32.totalorder %s16, 1
      %p55 = scmp.ne.s32.totalorder %s50, %s52
      %p56 = scmp.eq.s32.totalorder %s16, 0
      %p57 = por %p55, %p56
      %p58 = scmp.ne.s32.totalorder %s50, %s52
      %p59 = scmp.eq.s32.totalorder %s21, 1
      %p60 = por %p58, %p59
      %p61 = scmp.ne.s32.totalorder %s52, %s53
      %p62 = scmp.eq.s32.totalorder %s21, 0
      %p63 = por %p61, %p62
      %p64 = scmp.ne.s32.totalorder %s52, %s53
      %p65 = scmp.eq.s32.totalorder %s22, 1
      %p66 = por %p64, %p65
      %p68 = scmp.ne.s32.totalorder %s53, %s67
      %p69 = scmp.eq.s32.totalorder %s22, 0
      %p70 = por %p68, %p69
      %s72 = sadd.s32 %s71, 1
      %p75 = scmp.eq.s32.totalorder %s16, 1
      %p76 = scmp.ne.s32.totalorder %s71, %s73
      %p77 = scmp.eq.s32.totalorder %s16, 0
      %p78 = por %p76, %p77
      %p79 = scmp.ne.s32.totalorder %s71, %s73
      %p80 = scmp.eq.s32.totalorder %s21, 1
      %p81 = por %p79, %p80
      %p82 = scmp.ne.s32.totalorder %s73, %s74
      %p83 = scmp.eq.s32.totalorder %s21, 0
      %p84 = por %p82, %p83
      %p85 = scmp.ne.s32.totalorder %s73, %s74
      %p86 = scmp.eq.s32.totalorder %s22, 1
      %p87 = por %p85, %p86
      %p89 = scmp.ne.s32.totalorder %s74, %s88
      %p90 = scmp.eq.s32.totalorder %s22, 0
      %p91 = por %p89, %p90
      %s93 = sadd.s32 %s92, 1
      %p96 = scmp.eq.s32.totalorder %s16, 1
      %p97 = scmp.ne.s32.totalorder %s92, %s94
      %p98 = scmp.eq.s32.totalorder %s16, 0
      %p99 = por %p97, %p98
      %p100 = scmp.ne.s32.totalorder %s92, %s94
      %p101 = scmp.eq.s32.totalorder %s21, 1
      %p102 = por %p100, %p101
      %p103 = scmp.ne.s32.totalorder %s94, %s95
      %p104 = scmp.eq.s32.totalorder %s21, 0
      %p105 = por %p103, %p104
      %p106 = scmp.ne.s32.totalorder %s94, %s95
      %p107 = scmp.eq.s32.totalorder %s22, 1
      %p108 = por %p106, %p107
      %p110 = scmp.ne.s32.totalorder %s95, %s109
      %p111 = scmp.eq.s32.totalorder %s22, 0
      %p112 = por %p110, %p111
      %s114 = sadd.s32 %s113, 1
      %p117 = scmp.eq.s32.totalorder %s16, 1
      %p118 = scmp.ne.s32.totalorder %s113, %s115
      %p119 = scmp.eq.s32.totalorder %s16, 0
      %p120 = por %p118, %p119
      %p121 = scmp.ne.s32.totalorder %s113, %s115
      %p122 = scmp.eq.s32.totalorder %s21, 1
      %p123 = por %p121, %p122
      %p124 = scmp.ne.s32.totalorder %s115, %s116
      %p125 = scmp.eq.s32.totalorder %s21, 0
      %p126 = por %p124, %p125
      %p127 = scmp.ne.s32.totalorder %s115, %s116
      %p128 = scmp.eq.s32.totalorder %s22, 1
      %p129 = por %p127, %p128
      %p131 = scmp.ne.s32.totalorder %s116, %s130
      %p132 = scmp.eq.s32.totalorder %s22, 0
      %p133 = por %p131, %p132
      %s135 = sadd.s32 %s134, 1
      %p138 = scmp.eq.s32.totalorder %s16, 1
      %p139 = scmp.ne.s32.totalorder %s134, %s136
      %p140 = scmp.eq.s32.totalorder %s16, 0
      %p141 = por %p139, %p140
      %p142 = scmp.ne.s32.totalorder %s134, %s136
      %p143 = scmp.eq.s32.totalorder %s21, 1
      %p144 = por %p142, %p143
      %p145 = scmp.ne.s32.totalorder %s136, %s137
      %p146 = scmp.eq.s32.totalorder %s21, 0
      %p147 = por %p145, %p146
      %p148 = scmp.ne.s32.totalorder %s136, %s137
      %p149 = scmp.eq.s32.totalorder %s22, 1
      %p150 = por %p148, %p149
      %p152 = scmp.ne.s32.totalorder %s137, %s151
      %p153 = scmp.eq.s32.totalorder %s22, 0
      %p154 = por %p152, %p153
      %s156 = sadd.s32 %s155, 1
      %p159 = scmp.eq.s32.totalorder %s16, 1
      %p160 = scmp.ne.s32.totalorder %s155, %s157
      %p161 = scmp.eq.s32.totalorder %s16, 0
      %p162 = por %p160, %p161
      %p163 = scmp.ne.s32.totalorder %s155, %s157
      %p164 = scmp.eq.s32.totalorder %s21, 1
      %p165 = por %p163, %p164
      %p166 = scmp.ne.s32.totalorder %s157, %s158
      %p167 = scmp.eq.s32.totalorder %s21, 0
      %p168 = por %p166, %p167
      %p169 = scmp.ne.s32.totalorder %s157, %s158
      %p170 = scmp.eq.s32.totalorder %s22, 1
      %p171 = por %p169, %p170
      %p173 = scmp.ne.s32.totalorder %s158, %s172
      %p174 = scmp.eq.s32.totalorder %s22, 0
      %p175 = por %p173, %p174
      %s176 = ssub.s32 %s16, %s23
      %p177 = scmp.eq.s32.totalorder %s176, 0
      %s179 = sadd.s32 %s178, 1
      %s180 = scalar_select %p177, %s178, %s179
      %p183 = pneg %p177
      %p184 = scmp.eq.s32.totalorder %s16, 1
      %p185 = por %p183, %p184
      %p186 = scmp.ne.s32.totalorder %s178, %s181
      %p187 = scmp.eq.s32.totalorder %s16, 0
      %p188 = por %p186, %p187
      %p189 = scmp.ne.s32.totalorder %s178, %s181
      %p190 = scmp.eq.s32.totalorder %s21, 1
      %p191 = por %p189, %p190
      %p192 = scmp.ne.s32.totalorder %s181, %s182
      %p193 = scmp.eq.s32.totalorder %s21, 0
      %p194 = por %p192, %p193
      %p195 = scmp.ne.s32.totalorder %s181, %s182
      %p196 = scmp.eq.s32.totalorder %s22, 1
      %p197 = por %p195, %p196
      %p199 = scmp.ne.s32.totalorder %s182, %s198
      %p200 = scmp.eq.s32.totalorder %s22, 0
      %p201 = por %p199, %p200
      %p202 = scmp.le.s32.totalorder 1, %s16
      %p203 = scmp.lt.s32.totalorder %s16, 3
      %p204 = pnand %p202, %p203
      %p205 = pneg %p204
      // Predicated region
      $region9: #{residual_block.1} parent=5 // pred_check
        _
      $region10: #{residual_block.1} parent=5 // pred_check_branch
        %207 = sbr.rel (%p204) target = $region12
      $region11: #{residual_block.1} parent=5 // pred_region
        %s208 = ssub.s32 %s16, 1
        // Predicated region
        $region13: #{residual_block.1} parent=11 // pred_check
          %p209 = pneg %p63
        $region14: #{residual_block.1} parent=11 // pred_check_branch
          %211 = sbr.rel (%p209) target = $region16
        $region15: #{residual_block.1} parent=11 // pred_region
          _
        $region16: #{residual_block.1} parent=11 // pred_fallthru
          _
        // Predicated region
        $region17: #{residual_block.1} parent=11 // pred_check
          %p212 = pneg %p84
        $region18: #{residual_block.1} parent=11 // pred_check_branch
          %214 = sbr.rel (%p212) target = $region20
        $region19: #{residual_block.1} parent=11 // pred_region
          _
        $region20: #{residual_block.1} parent=11 // pred_fallthru
          _
        // Predicated region
        $region21: #{residual_block.1} parent=11 // pred_check
          %p215 = pneg %p105
        $region22: #{residual_block.1} parent=11 // pred_check_branch
          %217 = sbr.rel (%p215) target = $region24
        $region23: #{residual_block.1} parent=11 // pred_region
          _
        $region24: #{residual_block.1} parent=11 // pred_fallthru
          _
        // Predicated region
        $region25: #{residual_block.1} parent=11 // pred_check
          %p218 = pneg %p126
        $region26: #{residual_block.1} parent=11 // pred_check_branch
          %220 = sbr.rel (%p218) target = $region28
        $region27: #{residual_block.1} parent=11 // pred_region
          _
        $region28: #{residual_block.1} parent=11 // pred_fallthru
          _
        // Predicated region
        $region29: #{residual_block.1} parent=11 // pred_check
          %p221 = pneg %p147
        $region30: #{residual_block.1} parent=11 // pred_check_branch
          %223 = sbr.rel (%p221) target = $region32
        $region31: #{residual_block.1} parent=11 // pred_region
          _
        $region32: #{residual_block.1} parent=11 // pred_fallthru
          _
        // Predicated region
        $region33: #{residual_block.1} parent=11 // pred_check
          %p224 = pneg %p168
        $region34: #{residual_block.1} parent=11 // pred_check_branch
          %226 = sbr.rel (%p224) target = $region36
        $region35: #{residual_block.1} parent=11 // pred_region
          _
        $region36: #{residual_block.1} parent=11 // pred_fallthru
          _
      $region12: #{residual_block.1} parent=5 // pred_fallthru
        _
      %p227 = scmp.lt.s32.totalorder %s16, 2
      // Predicated region
      $region37: #{residual_block.1} parent=5 // pred_check
        %p228 = pneg %p227
      $region38: #{residual_block.1} parent=5 // pred_check_branch
        %230 = sbr.rel (%p228) target = $region40
      $region39: #{residual_block.1} parent=5 // pred_region
        // Predicated region
        $region41: #{residual_block.1} parent=39 // pred_check
          %p231 = pneg %p36
        $region42: #{residual_block.1} parent=39 // pred_check_branch
          %233 = sbr.rel (%p231) target = $region44
        $region43: #{residual_block.1} parent=39 // pred_region
          %p234 = scmp.lt.s32.totalorder %s16, 1
          %s235 = scalar_select %p234, %s16, 1
          %s236 = smul.addr %s235, 32
          %s237 = smul.addr %s236, 8
          %s238 = scalar_lea.vmem %s0, %s237
        $region44: #{residual_block.1} parent=39 // pred_fallthru
          _
      $region40: #{residual_block.1} parent=5 // pred_fallthru
        _
      %p239 = scmp.le.s32.totalorder 1, %s16
      %p240 = scmp.lt.s32.totalorder %s16, 3
      %p241 = pnand %p239, %p240
      %p242 = pneg %p241
      // Predicated region
      $region45: #{residual_block.1} parent=5 // pred_check
        _
      $region46: #{residual_block.1} parent=5 // pred_check_branch
        %244 = sbr.rel (%p241) target = $region48
      $region47: #{residual_block.1} parent=5 // pred_region
        %s245 = ssub.s32 %s16, 1
        %p246 = scmp.lt.s32.totalorder %s21, 1
        %s247 = scalar_select %p246, %s21, 1
        %s248 = smul.addr %s247, 32
        %s249 = smul.addr %s248, 8
        %s250 = scalar_lea.vmem %s0, %s249
        %p251 = pneg %p42
        %p252 = pneg %p39
        %p253 = pneg %p63
        %p254 = pneg %p60
        %p255 = pneg %p84
        %p256 = pneg %p81
        %p257 = pneg %p105
        %p258 = pneg %p102
        %p259 = pneg %p126
        %p260 = pneg %p123
        %p261 = pneg %p147
        %p262 = pneg %p144
        %p263 = pneg %p168
        %p264 = pneg %p165
        %p265 = pneg %p194
        %p266 = pneg %p191
        %s267 = sand.u32 %s181, 1
        %s268 = scalar_lea.sflag [#allocation4], %s267
        %s269 = sand.u32 %s181, 1
        %s270 = smul.addr %s269, 256
        %s271 = scalar_lea.vmem [#allocation3], %s270
        %p272 = scmp.lt.s32.totalorder %s21, 1
        %s273 = scalar_select %p272, %s21, 1
        %s274 = smul.addr %s273, 32
        %s275 = smul.addr %s274, 8
        %s276 = scalar_lea.vmem %s0, %s275
        %vm278 = vcmask 523264
        %279 = vst.msk [vmem:[#allocation2] sm:$0xff] %vm278, 0.0
        %280 = vst.msk [vmem:[#allocation2 + $0x8] sm:$0xff] %vm278, 0.0
        %281 = vst.msk [vmem:[#allocation2 + $0x10] sm:$0xff] %vm278, 0.0
        %282 = vst.msk [vmem:[#allocation2 + $0x18] sm:$0xff] %vm278, 0.0
        %283 = vst.msk [vmem:[#allocation2 + $0x20] sm:$0xff] %vm278, 0.0
        %284 = vst.msk [vmem:[#allocation2 + $0x28] sm:$0xff] %vm278, 0.0
        %285 = vst.msk [vmem:[#allocation2 + $0x30] sm:$0xff] %vm278, 0.0
        %286 = vst.msk [vmem:[#allocation2 + $0x38] sm:$0xff] %vm278, 0.0
        %287 = vst.msk [vmem:[#allocation2 + $0x40] sm:$0xff] %vm278, 0.0
        %288 = vst.msk [vmem:[#allocation2 + $0x48] sm:$0xff] %vm278, 0.0
        %289 = vst.msk [vmem:[#allocation2 + $0x50] sm:$0xff] %vm278, 0.0
        %290 = vst.msk [vmem:[#allocation2 + $0x58] sm:$0xff] %vm278, 0.0
        %291 = vst.msk [vmem:[#allocation2 + $0x60] sm:$0xff] %vm278, 0.0
        %292 = vst.msk [vmem:[#allocation2 + $0x68] sm:$0xff] %vm278, 0.0
        %293 = vst.msk [vmem:[#allocation2 + $0x70] sm:$0xff] %vm278, 0.0
        %294 = vst.msk [vmem:[#allocation2 + $0x78] sm:$0xff] %vm278, 0.0
        %295 = vst.msk [vmem:[#allocation2 + $0x80] sm:$0xff] %vm278, 0.0
        %296 = vst.msk [vmem:[#allocation2 + $0x88] sm:$0xff] %vm278, 0.0
        %297 = vst.msk [vmem:[#allocation2 + $0x90] sm:$0xff] %vm278, 0.0
        %298 = vst.msk [vmem:[#allocation2 + $0x98] sm:$0xff] %vm278, 0.0
        %299 = vst.msk [vmem:[#allocation2 + $0xa0] sm:$0xff] %vm278, 0.0
        %300 = vst.msk [vmem:[#allocation2 + $0xa8] sm:$0xff] %vm278, 0.0
        %301 = vst.msk [vmem:[#allocation2 + $0xb0] sm:$0xff] %vm278, 0.0
        %302 = vst.msk [vmem:[#allocation2 + $0xb8] sm:$0xff] %vm278, 0.0
        %303 = vst.msk [vmem:[#allocation2 + $0xc0] sm:$0xff] %vm278, 0.0
        %304 = vst.msk [vmem:[#allocation2 + $0xc8] sm:$0xff] %vm278, 0.0
        %305 = vst.msk [vmem:[#allocation2 + $0xd0] sm:$0xff] %vm278, 0.0
        %306 = vst.msk [vmem:[#allocation2 + $0xd8] sm:$0xff] %vm278, 0.0
        %307 = vst.msk [vmem:[#allocation2 + $0xe0] sm:$0xff] %vm278, 0.0
        %308 = vst.msk [vmem:[#allocation2 + $0xe8] sm:$0xff] %vm278, 0.0
        %309 = vst.msk [vmem:[#allocation2 + $0xf0] sm:$0xff] %vm278, 0.0
        %310 = vst.msk [vmem:[#allocation2 + $0xf8] sm:$0xff] %vm278, 0.0
        %311 = vst.msk [vmem:[#allocation2 + $0x100] sm:$0xff] %vm278, 0.0
        %312 = vst.msk [vmem:[#allocation2 + $0x108] sm:$0xff] %vm278, 0.0
        %313 = vst.msk [vmem:[#allocation2 + $0x110] sm:$0xff] %vm278, 0.0
        %314 = vst.msk [vmem:[#allocation2 + $0x118] sm:$0xff] %vm278, 0.0
        %315 = vst.msk [vmem:[#allocation2 + $0x120] sm:$0xff] %vm278, 0.0
        %316 = vst.msk [vmem:[#allocation2 + $0x128] sm:$0xff] %vm278, 0.0
        %317 = vst.msk [vmem:[#allocation2 + $0x130] sm:$0xff] %vm278, 0.0
        %318 = vst.msk [vmem:[#allocation2 + $0x138] sm:$0xff] %vm278, 0.0
        %319 = vst.msk [vmem:[#allocation2 + $0x140] sm:$0xff] %vm278, 0.0
        %320 = vst.msk [vmem:[#allocation2 + $0x148] sm:$0xff] %vm278, 0.0
        %321 = vst.msk [vmem:[#allocation2 + $0x150] sm:$0xff] %vm278, 0.0
        %322 = vst.msk [vmem:[#allocation2 + $0x158] sm:$0xff] %vm278, 0.0
        %323 = vst.msk [vmem:[#allocation2 + $0x160] sm:$0xff] %vm278, 0.0
        %324 = vst.msk [vmem:[#allocation2 + $0x168] sm:$0xff] %vm278, 0.0
        %325 = vst.msk [vmem:[#allocation2 + $0x170] sm:$0xff] %vm278, 0.0
        %326 = vst.msk [vmem:[#allocation2 + $0x178] sm:$0xff] %vm278, 0.0
        %327 = vst.msk [vmem:[#allocation2 + $0x180] sm:$0xff] %vm278, 0.0
        %328 = vst.msk [vmem:[#allocation2 + $0x188] sm:$0xff] %vm278, 0.0
        %329 = vst.msk [vmem:[#allocation2 + $0x190] sm:$0xff] %vm278, 0.0
        %330 = vst.msk [vmem:[#allocation2 + $0x198] sm:$0xff] %vm278, 0.0
        %331 = vst.msk [vmem:[#allocation2 + $0x1a0] sm:$0xff] %vm278, 0.0
        %332 = vst.msk [vmem:[#allocation2 + $0x1a8] sm:$0xff] %vm278, 0.0
        %333 = vst.msk [vmem:[#allocation2 + $0x1b0] sm:$0xff] %vm278, 0.0
        %334 = vst.msk [vmem:[#allocation2 + $0x1b8] sm:$0xff] %vm278, 0.0
        %335 = vst.msk [vmem:[#allocation2 + $0x1c0] sm:$0xff] %vm278, 0.0
        %336 = vst.msk [vmem:[#allocation2 + $0x1c8] sm:$0xff] %vm278, 0.0
        %337 = vst.msk [vmem:[#allocation2 + $0x1d0] sm:$0xff] %vm278, 0.0
        %338 = vst.msk [vmem:[#allocation2 + $0x1d8] sm:$0xff] %vm278, 0.0
        %339 = vst.msk [vmem:[#allocation2 + $0x1e0] sm:$0xff] %vm278, 0.0
        %340 = vst.msk [vmem:[#allocation2 + $0x1e8] sm:$0xff] %vm278, 0.0
        %341 = vst.msk [vmem:[#allocation2 + $0x1f0] sm:$0xff] %vm278, 0.0
        %342 = vst.msk [vmem:[#allocation2 + $0x1f8] sm:$0xff] %vm278, 0.0
        %343 = vst.msk [vmem:[#allocation2 + $0x200] sm:$0xff] %vm278, 0.0
        %344 = vst.msk [vmem:[#allocation2 + $0x208] sm:$0xff] %vm278, 0.0
        %345 = vst.msk [vmem:[#allocation2 + $0x210] sm:$0xff] %vm278, 0.0
        %346 = vst.msk [vmem:[#allocation2 + $0x218] sm:$0xff] %vm278, 0.0
        %347 = vst.msk [vmem:[#allocation2 + $0x220] sm:$0xff] %vm278, 0.0
        %348 = vst.msk [vmem:[#allocation2 + $0x228] sm:$0xff] %vm278, 0.0
        %349 = vst.msk [vmem:[#allocation2 + $0x230] sm:$0xff] %vm278, 0.0
        %350 = vst.msk [vmem:[#allocation2 + $0x238] sm:$0xff] %vm278, 0.0
        %v351 = vld [vmem:[%s276] sm:$0xff]
        %v352 = vld [vmem:[%s276 + $0x8] sm:$0xff]
        %v353 = vld [vmem:[%s276 + $0x10] sm:$0xff]
        %v354 = vld [vmem:[%s276 + $0x18] sm:$0xff]
        %v355 = vld [vmem:[%s276 + $0x20] sm:$0xff]
        %v356 = vld [vmem:[%s276 + $0x28] sm:$0xff]
        %v357 = vld [vmem:[%s276 + $0x30] sm:$0xff]
        %v358 = vld [vmem:[%s276 + $0x38] sm:$0xff]
        %v359 = vld [vmem:[%s276 + $0x40] sm:$0xff]
        %v360 = vld [vmem:[%s276 + $0x48] sm:$0xff]
        %v361 = vld [vmem:[%s276 + $0x50] sm:$0xff]
        %v362 = vld [vmem:[%s276 + $0x58] sm:$0xff]
        %v363 = vld [vmem:[%s276 + $0x60] sm:$0xff]
        %v364 = vld [vmem:[%s276 + $0x68] sm:$0xff]
        %v365 = vld [vmem:[%s276 + $0x70] sm:$0xff]
        %v366 = vld [vmem:[%s276 + $0x78] sm:$0xff]
        %v367 = vld [vmem:[%s276 + $0x80] sm:$0xff]
        %v368 = vld [vmem:[%s276 + $0x88] sm:$0xff]
        %v369 = vld [vmem:[%s276 + $0x90] sm:$0xff]
        %v370 = vld [vmem:[%s276 + $0x98] sm:$0xff]
        %v371 = vld [vmem:[%s276 + $0xa0] sm:$0xff]
        %v372 = vld [vmem:[%s276 + $0xa8] sm:$0xff]
        %v373 = vld [vmem:[%s276 + $0xb0] sm:$0xff]
        %v374 = vld [vmem:[%s276 + $0xb8] sm:$0xff]
        %v375 = vld [vmem:[%s276 + $0xc0] sm:$0xff]
        %v376 = vld [vmem:[%s276 + $0xc8] sm:$0xff]
        %v377 = vld [vmem:[%s276 + $0xd0] sm:$0xff]
        %v378 = vld [vmem:[%s276 + $0xd8] sm:$0xff]
        %v379 = vld [vmem:[%s276 + $0xe0] sm:$0xff]
        %v380 = vld [vmem:[%s276 + $0xe8] sm:$0xff]
        %v381 = vld [vmem:[%s276 + $0xf0] sm:$0xff]
        %v382 = vld [vmem:[%s276 + $0xf8] sm:$0xff]
        %s383 = scalar_lea.vmem [#allocation2], 32
        %384 = vst.msk [vmem:[%s383 + $0x8] sm:$0xff] %vm278, %v351
        %385 = vst.msk [vmem:[%s383 + $0x10] sm:$0xff] %vm278, %v352
        %386 = vst.msk [vmem:[%s383 + $0x28] sm:$0xff] %vm278, %v353
        %387 = vst.msk [vmem:[%s383 + $0x30] sm:$0xff] %vm278, %v354
        %388 = vst.msk [vmem:[%s383 + $0x48] sm:$0xff] %vm278, %v355
        %389 = vst.msk [vmem:[%s383 + $0x50] sm:$0xff] %vm278, %v356
        %390 = vst.msk [vmem:[%s383 + $0x68] sm:$0xff] %vm278, %v357
        %391 = vst.msk [vmem:[%s383 + $0x70] sm:$0xff] %vm278, %v358
        %392 = vst.msk [vmem:[%s383 + $0x88] sm:$0xff] %vm278, %v359
        %393 = vst.msk [vmem:[%s383 + $0x90] sm:$0xff] %vm278, %v360
        %394 = vst.msk [vmem:[%s383 + $0xa8] sm:$0xff] %vm278, %v361
        %395 = vst.msk [vmem:[%s383 + $0xb0] sm:$0xff] %vm278, %v362
        %396 = vst.msk [vmem:[%s383 + $0xc8] sm:$0xff] %vm278, %v363
        %397 = vst.msk [vmem:[%s383 + $0xd0] sm:$0xff] %vm278, %v364
        %398 = vst.msk [vmem:[%s383 + $0xe8] sm:$0xff] %vm278, %v365
        %399 = vst.msk [vmem:[%s383 + $0xf0] sm:$0xff] %vm278, %v366
        %400 = vst.msk [vmem:[%s383 + $0x108] sm:$0xff] %vm278, %v367
        %401 = vst.msk [vmem:[%s383 + $0x110] sm:$0xff] %vm278, %v368
        %402 = vst.msk [vmem:[%s383 + $0x128] sm:$0xff] %vm278, %v369
        %403 = vst.msk [vmem:[%s383 + $0x130] sm:$0xff] %vm278, %v370
        %404 = vst.msk [vmem:[%s383 + $0x148] sm:$0xff] %vm278, %v371
        %405 = vst.msk [vmem:[%s383 + $0x150] sm:$0xff] %vm278, %v372
        %406 = vst.msk [vmem:[%s383 + $0x168] sm:$0xff] %vm278, %v373
        %407 = vst.msk [vmem:[%s383 + $0x170] sm:$0xff] %vm278, %v374
        %408 = vst.msk [vmem:[%s383 + $0x188] sm:$0xff] %vm278, %v375
        %409 = vst.msk [vmem:[%s383 + $0x190] sm:$0xff] %vm278, %v376
        %410 = vst.msk [vmem:[%s383 + $0x1a8] sm:$0xff] %vm278, %v377
        %411 = vst.msk [vmem:[%s383 + $0x1b0] sm:$0xff] %vm278, %v378
        %412 = vst.msk [vmem:[%s383 + $0x1c8] sm:$0xff] %vm278, %v379
        %413 = vst.msk [vmem:[%s383 + $0x1d0] sm:$0xff] %vm278, %v380
        %414 = vst.msk [vmem:[%s383 + $0x1e8] sm:$0xff] %vm278, %v381
        %415 = vst.msk [vmem:[%s383 + $0x1f0] sm:$0xff] %vm278, %v382
        %v416 = vld [vmem:[#allocation2 + $0x7] sm:$0xff]
        %v417 = vld [vmem:[#allocation2 + $0xf] sm:$0xff]
        %v418 = vld [vmem:[#allocation2 + $0x27] sm:$0xff]
        %v419 = vld [vmem:[#allocation2 + $0x2f] sm:$0xff]
        %v420 = vld [vmem:[#allocation2 + $0x47] sm:$0xff]
        %v421 = vld [vmem:[#allocation2 + $0x4f] sm:$0xff]
        %v422 = vld [vmem:[#allocation2 + $0x67] sm:$0xff]
        %v423 = vld [vmem:[#allocation2 + $0x6f] sm:$0xff]
        %v424 = vld [vmem:[#allocation2 + $0x87] sm:$0xff]
        %v425 = vld [vmem:[#allocation2 + $0x8f] sm:$0xff]
        %v426 = vld [vmem:[#allocation2 + $0xa7] sm:$0xff]
        %v427 = vld [vmem:[#allocation2 + $0xaf] sm:$0xff]
        %v428 = vld [vmem:[#allocation2 + $0xc7] sm:$0xff]
        %v429 = vld [vmem:[#allocation2 + $0xcf] sm:$0xff]
        %v430 = vld [vmem:[#allocation2 + $0xe7] sm:$0xff]
        %v431 = vld [vmem:[#allocation2 + $0xef] sm:$0xff]
        %v432 = vld [vmem:[#allocation2 + $0x107] sm:$0xff]
        %v433 = vld [vmem:[#allocation2 + $0x10f] sm:$0xff]
        %v434 = vld [vmem:[#allocation2 + $0x127] sm:$0xff]
        %v435 = vld [vmem:[#allocation2 + $0x12f] sm:$0xff]
        %v436 = vld [vmem:[#allocation2 + $0x147] sm:$0xff]
        %v437 = vld [vmem:[#allocation2 + $0x14f] sm:$0xff]
        %v438 = vld [vmem:[#allocation2 + $0x167] sm:$0xff]
        %v439 = vld [vmem:[#allocation2 + $0x16f] sm:$0xff]
        %v440 = vld [vmem:[#allocation2 + $0x187] sm:$0xff]
        %v441 = vld [vmem:[#allocation2 + $0x18f] sm:$0xff]
        %v442 = vld [vmem:[#allocation2 + $0x1a7] sm:$0xff]
        %v443 = vld [vmem:[#allocation2 + $0x1af] sm:$0xff]
        %v444 = vld [vmem:[#allocation2 + $0x1c7] sm:$0xff]
        %v445 = vld [vmem:[#allocation2 + $0x1cf] sm:$0xff]
        %v446 = vld [vmem:[#allocation2 + $0x1e7] sm:$0xff]
        %v447 = vld [vmem:[#allocation2 + $0x1ef] sm:$0xff]
        %v448 = vpack.c.bf16 %v416, %v416
        %v449 = vpack.c.bf16 %v417, %v417
        %v450 = vpack.c.bf16 %v418, %v418
        %v451 = vpack.c.bf16 %v419, %v419
        %v452 = vpack.c.bf16 %v420, %v420
        %v453 = vpack.c.bf16 %v421, %v421
        %v454 = vpack.c.bf16 %v422, %v422
        %v455 = vpack.c.bf16 %v423, %v423
        %v456 = vpack.c.bf16 %v424, %v424
        %v457 = vpack.c.bf16 %v425, %v425
        %v458 = vpack.c.bf16 %v426, %v426
        %v459 = vpack.c.bf16 %v427, %v427
        %v460 = vpack.c.bf16 %v428, %v428
        %v461 = vpack.c.bf16 %v429, %v429
        %v462 = vpack.c.bf16 %v430, %v430
        %v463 = vpack.c.bf16 %v431, %v431
        %v464 = vpack.c.bf16 %v432, %v432
        %v465 = vpack.c.bf16 %v433, %v433
        %v466 = vpack.c.bf16 %v434, %v434
        %v467 = vpack.c.bf16 %v435, %v435
        %v468 = vpack.c.bf16 %v436, %v436
        %v469 = vpack.c.bf16 %v437, %v437
        %v470 = vpack.c.bf16 %v438, %v438
        %v471 = vpack.c.bf16 %v439, %v439
        %v472 = vpack.c.bf16 %v440, %v440
        %v473 = vpack.c.bf16 %v441, %v441
        %v474 = vpack.c.bf16 %v442, %v442
        %v475 = vpack.c.bf16 %v443, %v443
        %v476 = vpack.c.bf16 %v444, %v444
        %v477 = vpack.c.bf16 %v445, %v445
        %v478 = vpack.c.bf16 %v446, %v446
        %v479 = vpack.c.bf16 %v447, %v447
        %v480 = vld [vmem:[#allocation2 + $0x8] sm:$0xff]
        %v481 = vld [vmem:[#allocation2 + $0x10] sm:$0xff]
        %v482 = vld [vmem:[#allocation2 + $0x28] sm:$0xff]
        %v483 = vld [vmem:[#allocation2 + $0x30] sm:$0xff]
        %v484 = vld [vmem:[#allocation2 + $0x48] sm:$0xff]
        %v485 = vld [vmem:[#allocation2 + $0x50] sm:$0xff]
        %v486 = vld [vmem:[#allocation2 + $0x68] sm:$0xff]
        %v487 = vld [vmem:[#allocation2 + $0x70] sm:$0xff]
        %v488 = vld [vmem:[#allocation2 + $0x88] sm:$0xff]
        %v489 = vld [vmem:[#allocation2 + $0x90] sm:$0xff]
        %v490 = vld [vmem:[#allocation2 + $0xa8] sm:$0xff]
        %v491 = vld [vmem:[#allocation2 + $0xb0] sm:$0xff]
        %v492 = vld [vmem:[#allocation2 + $0xc8] sm:$0xff]
        %v493 = vld [vmem:[#allocation2 + $0xd0] sm:$0xff]
        %v494 = vld [vmem:[#allocation2 + $0xe8] sm:$0xff]
        %v495 = vld [vmem:[#allocation2 + $0xf0] sm:$0xff]
        %v496 = vld [vmem:[#allocation2 + $0x108] sm:$0xff]
        %v497 = vld [vmem:[#allocation2 + $0x110] sm:$0xff]
        %v498 = vld [vmem:[#allocation2 + $0x128] sm:$0xff]
        %v499 = vld [vmem:[#allocation2 + $0x130] sm:$0xff]
        %v500 = vld [vmem:[#allocation2 + $0x148] sm:$0xff]
        %v501 = vld [vmem:[#allocation2 + $0x150] sm:$0xff]
        %v502 = vld [vmem:[#allocation2 + $0x168] sm:$0xff]
        %v503 = vld [vmem:[#allocation2 + $0x170] sm:$0xff]
        %v504 = vld [vmem:[#allocation2 + $0x188] sm:$0xff]
        %v505 = vld [vmem:[#allocation2 + $0x190] sm:$0xff]
        %v506 = vld [vmem:[#allocation2 + $0x1a8] sm:$0xff]
        %v507 = vld [vmem:[#allocation2 + $0x1b0] sm:$0xff]
        %v508 = vld [vmem:[#allocation2 + $0x1c8] sm:$0xff]
        %v509 = vld [vmem:[#allocation2 + $0x1d0] sm:$0xff]
        %v510 = vld [vmem:[#allocation2 + $0x1e8] sm:$0xff]
        %v511 = vld [vmem:[#allocation2 + $0x1f0] sm:$0xff]
        %v512 = vpack.c.bf16 %v480, %v480
        %v513 = vpack.c.bf16 %v481, %v481
        %v514 = vpack.c.bf16 %v482, %v482
        %v515 = vpack.c.bf16 %v483, %v483
        %v516 = vpack.c.bf16 %v484, %v484
        %v517 = vpack.c.bf16 %v485, %v485
        %v518 = vpack.c.bf16 %v486, %v486
        %v519 = vpack.c.bf16 %v487, %v487
        %v520 = vpack.c.bf16 %v488, %v488
        %v521 = vpack.c.bf16 %v489, %v489
        %v522 = vpack.c.bf16 %v490, %v490
        %v523 = vpack.c.bf16 %v491, %v491
        %v524 = vpack.c.bf16 %v492, %v492
        %v525 = vpack.c.bf16 %v493, %v493
        %v526 = vpack.c.bf16 %v494, %v494
        %v527 = vpack.c.bf16 %v495, %v495
        %v528 = vpack.c.bf16 %v496, %v496
        %v529 = vpack.c.bf16 %v497, %v497
        %v530 = vpack.c.bf16 %v498, %v498
        %v531 = vpack.c.bf16 %v499, %v499
        %v532 = vpack.c.bf16 %v500, %v500
        %v533 = vpack.c.bf16 %v501, %v501
        %v534 = vpack.c.bf16 %v502, %v502
        %v535 = vpack.c.bf16 %v503, %v503
        %v536 = vpack.c.bf16 %v504, %v504
        %v537 = vpack.c.bf16 %v505, %v505
        %v538 = vpack.c.bf16 %v506, %v506
        %v539 = vpack.c.bf16 %v507, %v507
        %v540 = vpack.c.bf16 %v508, %v508
        %v541 = vpack.c.bf16 %v509, %v509
        %v542 = vpack.c.bf16 %v510, %v510
        %v543 = vpack.c.bf16 %v511, %v511
        %v544 = vld [vmem:[#allocation2 + $0x9] sm:$0xff]
        %v545 = vld [vmem:[#allocation2 + $0x11] sm:$0xff]
        %v546 = vld [vmem:[#allocation2 + $0x29] sm:$0xff]
        %v547 = vld [vmem:[#allocation2 + $0x31] sm:$0xff]
        %v548 = vld [vmem:[#allocation2 + $0x49] sm:$0xff]
        %v549 = vld [vmem:[#allocation2 + $0x51] sm:$0xff]
        %v550 = vld [vmem:[#allocation2 + $0x69] sm:$0xff]
        %v551 = vld [vmem:[#allocation2 + $0x71] sm:$0xff]
        %v552 = vld [vmem:[#allocation2 + $0x89] sm:$0xff]
        %v553 = vld [vmem:[#allocation2 + $0x91] sm:$0xff]
        %v554 = vld [vmem:[#allocation2 + $0xa9] sm:$0xff]
        %v555 = vld [vmem:[#allocation2 + $0xb1] sm:$0xff]
        %v556 = vld [vmem:[#allocation2 + $0xc9] sm:$0xff]
        %v557 = vld [vmem:[#allocation2 + $0xd1] sm:$0xff]
        %v558 = vld [vmem:[#allocation2 + $0xe9] sm:$0xff]
        %v559 = vld [vmem:[#allocation2 + $0xf1] sm:$0xff]
        %v560 = vld [vmem:[#allocation2 + $0x109] sm:$0xff]
        %v561 = vld [vmem:[#allocation2 + $0x111] sm:$0xff]
        %v562 = vld [vmem:[#allocation2 + $0x129] sm:$0xff]
        %v563 = vld [vmem:[#allocation2 + $0x131] sm:$0xff]
        %v564 = vld [vmem:[#allocation2 + $0x149] sm:$0xff]
        %v565 = vld [vmem:[#allocation2 + $0x151] sm:$0xff]
        %v566 = vld [vmem:[#allocation2 + $0x169] sm:$0xff]
        %v567 = vld [vmem:[#allocation2 + $0x171] sm:$0xff]
        %v568 = vld [vmem:[#allocation2 + $0x189] sm:$0xff]
        %v569 = vld [vmem:[#allocation2 + $0x191] sm:$0xff]
        %v570 = vld [vmem:[#allocation2 + $0x1a9] sm:$0xff]
        %v571 = vld [vmem:[#allocation2 + $0x1b1] sm:$0xff]
        %v572 = vld [vmem:[#allocation2 + $0x1c9] sm:$0xff]
        %v573 = vld [vmem:[#allocation2 + $0x1d1] sm:$0xff]
        %v574 = vld [vmem:[#allocation2 + $0x1e9] sm:$0xff]
        %v575 = vld [vmem:[#allocation2 + $0x1f1] sm:$0xff]
        %v576 = vpack.c.bf16 %v544, %v544
        %v577 = vpack.c.bf16 %v545, %v545
        %v578 = vpack.c.bf16 %v546, %v546
        %v579 = vpack.c.bf16 %v547, %v547
        %v580 = vpack.c.bf16 %v548, %v548
        %v581 = vpack.c.bf16 %v549, %v549
        %v582 = vpack.c.bf16 %v550, %v550
        %v583 = vpack.c.bf16 %v551, %v551
        %v584 = vpack.c.bf16 %v552, %v552
        %v585 = vpack.c.bf16 %v553, %v553
        %v586 = vpack.c.bf16 %v554, %v554
        %v587 = vpack.c.bf16 %v555, %v555
        %v588 = vpack.c.bf16 %v556, %v556
        %v589 = vpack.c.bf16 %v557, %v557
        %v590 = vpack.c.bf16 %v558, %v558
        %v591 = vpack.c.bf16 %v559, %v559
        %v592 = vpack.c.bf16 %v560, %v560
        %v593 = vpack.c.bf16 %v561, %v561
        %v594 = vpack.c.bf16 %v562, %v562
        %v595 = vpack.c.bf16 %v563, %v563
        %v596 = vpack.c.bf16 %v564, %v564
        %v597 = vpack.c.bf16 %v565, %v565
        %v598 = vpack.c.bf16 %v566, %v566
        %v599 = vpack.c.bf16 %v567, %v567
        %v600 = vpack.c.bf16 %v568, %v568
        %v601 = vpack.c.bf16 %v569, %v569
        %v602 = vpack.c.bf16 %v570, %v570
        %v603 = vpack.c.bf16 %v571, %v571
        %v604 = vpack.c.bf16 %v572, %v572
        %v605 = vpack.c.bf16 %v573, %v573
        %v606 = vpack.c.bf16 %v574, %v574
        %v607 = vpack.c.bf16 %v575, %v575
        %v608 = vld [vmem:[%s383 + $0x7] sm:$0xff]
        %v609 = vld [vmem:[%s383 + $0xf] sm:$0xff]
        %v610 = vld [vmem:[%s383 + $0x27] sm:$0xff]
        %v611 = vld [vmem:[%s383 + $0x2f] sm:$0xff]
        %v612 = vld [vmem:[%s383 + $0x47] sm:$0xff]
        %v613 = vld [vmem:[%s383 + $0x4f] sm:$0xff]
        %v614 = vld [vmem:[%s383 + $0x67] sm:$0xff]
        %v615 = vld [vmem:[%s383 + $0x6f] sm:$0xff]
        %v616 = vld [vmem:[%s383 + $0x87] sm:$0xff]
        %v617 = vld [vmem:[%s383 + $0x8f] sm:$0xff]
        %v618 = vld [vmem:[%s383 + $0xa7] sm:$0xff]
        %v619 = vld [vmem:[%s383 + $0xaf] sm:$0xff]
        %v620 = vld [vmem:[%s383 + $0xc7] sm:$0xff]
        %v621 = vld [vmem:[%s383 + $0xcf] sm:$0xff]
        %v622 = vld [vmem:[%s383 + $0xe7] sm:$0xff]
        %v623 = vld [vmem:[%s383 + $0xef] sm:$0xff]
        %v624 = vld [vmem:[%s383 + $0x107] sm:$0xff]
        %v625 = vld [vmem:[%s383 + $0x10f] sm:$0xff]
        %v626 = vld [vmem:[%s383 + $0x127] sm:$0xff]
        %v627 = vld [vmem:[%s383 + $0x12f] sm:$0xff]
        %v628 = vld [vmem:[%s383 + $0x147] sm:$0xff]
        %v629 = vld [vmem:[%s383 + $0x14f] sm:$0xff]
        %v630 = vld [vmem:[%s383 + $0x167] sm:$0xff]
        %v631 = vld [vmem:[%s383 + $0x16f] sm:$0xff]
        %v632 = vld [vmem:[%s383 + $0x187] sm:$0xff]
        %v633 = vld [vmem:[%s383 + $0x18f] sm:$0xff]
        %v634 = vld [vmem:[%s383 + $0x1a7] sm:$0xff]
        %v635 = vld [vmem:[%s383 + $0x1af] sm:$0xff]
        %v636 = vld [vmem:[%s383 + $0x1c7] sm:$0xff]
        %v637 = vld [vmem:[%s383 + $0x1cf] sm:$0xff]
        %v638 = vld [vmem:[%s383 + $0x1e7] sm:$0xff]
        %v639 = vld [vmem:[%s383 + $0x1ef] sm:$0xff]
        %v640 = vpack.c.bf16 %v608, %v608
        %v641 = vpack.c.bf16 %v609, %v609
        %v642 = vpack.c.bf16 %v610, %v610
        %v643 = vpack.c.bf16 %v611, %v611
        %v644 = vpack.c.bf16 %v612, %v612
        %v645 = vpack.c.bf16 %v613, %v613
        %v646 = vpack.c.bf16 %v614, %v614
        %v647 = vpack.c.bf16 %v615, %v615
        %v648 = vpack.c.bf16 %v616, %v616
        %v649 = vpack.c.bf16 %v617, %v617
        %v650 = vpack.c.bf16 %v618, %v618
        %v651 = vpack.c.bf16 %v619, %v619
        %v652 = vpack.c.bf16 %v620, %v620
        %v653 = vpack.c.bf16 %v621, %v621
        %v654 = vpack.c.bf16 %v622, %v622
        %v655 = vpack.c.bf16 %v623, %v623
        %v656 = vpack.c.bf16 %v624, %v624
        %v657 = vpack.c.bf16 %v625, %v625
        %v658 = vpack.c.bf16 %v626, %v626
        %v659 = vpack.c.bf16 %v627, %v627
        %v660 = vpack.c.bf16 %v628, %v628
        %v661 = vpack.c.bf16 %v629, %v629
        %v662 = vpack.c.bf16 %v630, %v630
        %v663 = vpack.c.bf16 %v631, %v631
        %v664 = vpack.c.bf16 %v632, %v632
        %v665 = vpack.c.bf16 %v633, %v633
        %v666 = vpack.c.bf16 %v634, %v634
        %v667 = vpack.c.bf16 %v635, %v635
        %v668 = vpack.c.bf16 %v636, %v636
        %v669 = vpack.c.bf16 %v637, %v637
        %v670 = vpack.c.bf16 %v638, %v638
        %v671 = vpack.c.bf16 %v639, %v639
        %v672 = vld [vmem:[%s383 + $0x8] sm:$0xff]
        %v673 = vld [vmem:[%s383 + $0x10] sm:$0xff]
        %v674 = vld [vmem:[%s383 + $0x28] sm:$0xff]
        %v675 = vld [vmem:[%s383 + $0x30] sm:$0xff]
        %v676 = vld [vmem:[%s383 + $0x48] sm:$0xff]
        %v677 = vld [vmem:[%s383 + $0x50] sm:$0xff]
        %v678 = vld [vmem:[%s383 + $0x68] sm:$0xff]
        %v679 = vld [vmem:[%s383 + $0x70] sm:$0xff]
        %v680 = vld [vmem:[%s383 + $0x88] sm:$0xff]
        %v681 = vld [vmem:[%s383 + $0x90] sm:$0xff]
        %v682 = vld [vmem:[%s383 + $0xa8] sm:$0xff]
        %v683 = vld [vmem:[%s383 + $0xb0] sm:$0xff]
        %v684 = vld [vmem:[%s383 + $0xc8] sm:$0xff]
        %v685 = vld [vmem:[%s383 + $0xd0] sm:$0xff]
        %v686 = vld [vmem:[%s383 + $0xe8] sm:$0xff]
        %v687 = vld [vmem:[%s383 + $0xf0] sm:$0xff]
        %v688 = vld [vmem:[%s383 + $0x108] sm:$0xff]
        %v689 = vld [vmem:[%s383 + $0x110] sm:$0xff]
        %v690 = vld [vmem:[%s383 + $0x128] sm:$0xff]
        %v691 = vld [vmem:[%s383 + $0x130] sm:$0xff]
        %v692 = vld [vmem:[%s383 + $0x148] sm:$0xff]
        %v693 = vld [vmem:[%s383 + $0x150] sm:$0xff]
        %v694 = vld [vmem:[%s383 + $0x168] sm:$0xff]
        %v695 = vld [vmem:[%s383 + $0x170] sm:$0xff]
        %v696 = vld [vmem:[%s383 + $0x188] sm:$0xff]
        %v697 = vld [vmem:[%s383 + $0x190] sm:$0xff]
        %v698 = vld [vmem:[%s383 + $0x1a8] sm:$0xff]
        %v699 = vld [vmem:[%s383 + $0x1b0] sm:$0xff]
        %v700 = vld [vmem:[%s383 + $0x1c8] sm:$0xff]
        %v701 = vld [vmem:[%s383 + $0x1d0] sm:$0xff]
        %v702 = vld [vmem:[%s383 + $0x1e8] sm:$0xff]
        %v703 = vld [vmem:[%s383 + $0x1f0] sm:$0xff]
        %v704 = vpack.c.bf16 %v672, %v672
        %v705 = vpack.c.bf16 %v673, %v673
        %v706 = vpack.c.bf16 %v674, %v674
        %v707 = vpack.c.bf16 %v675, %v675
        %v708 = vpack.c.bf16 %v676, %v676
        %v709 = vpack.c.bf16 %v677, %v677
        %v710 = vpack.c.bf16 %v678, %v678
        %v711 = vpack.c.bf16 %v679, %v679
        %v712 = vpack.c.bf16 %v680, %v680
        %v713 = vpack.c.bf16 %v681, %v681
        %v714 = vpack.c.bf16 %v682, %v682
        %v715 = vpack.c.bf16 %v683, %v683
        %v716 = vpack.c.bf16 %v684, %v684
        %v717 = vpack.c.bf16 %v685, %v685
        %v718 = vpack.c.bf16 %v686, %v686
        %v719 = vpack.c.bf16 %v687, %v687
        %v720 = vpack.c.bf16 %v688, %v688
        %v721 = vpack.c.bf16 %v689, %v689
        %v722 = vpack.c.bf16 %v690, %v690
        %v723 = vpack.c.bf16 %v691, %v691
        %v724 = vpack.c.bf16 %v692, %v692
        %v725 = vpack.c.bf16 %v693, %v693
        %v726 = vpack.c.bf16 %v694, %v694
        %v727 = vpack.c.bf16 %v695, %v695
        %v728 = vpack.c.bf16 %v696, %v696
        %v729 = vpack.c.bf16 %v697, %v697
        %v730 = vpack.c.bf16 %v698, %v698
        %v731 = vpack.c.bf16 %v699, %v699
        %v732 = vpack.c.bf16 %v700, %v700
        %v733 = vpack.c.bf16 %v701, %v701
        %v734 = vpack.c.bf16 %v702, %v702
        %v735 = vpack.c.bf16 %v703, %v703
        %v736 = vld [vmem:[%s383 + $0x9] sm:$0xff]
        %v737 = vld [vmem:[%s383 + $0x11] sm:$0xff]
        %v738 = vld [vmem:[%s383 + $0x29] sm:$0xff]
        %v739 = vld [vmem:[%s383 + $0x31] sm:$0xff]
        %v740 = vld [vmem:[%s383 + $0x49] sm:$0xff]
        %v741 = vld [vmem:[%s383 + $0x51] sm:$0xff]
        %v742 = vld [vmem:[%s383 + $0x69] sm:$0xff]
        %v743 = vld [vmem:[%s383 + $0x71] sm:$0xff]
        %v744 = vld [vmem:[%s383 + $0x89] sm:$0xff]
        %v745 = vld [vmem:[%s383 + $0x91] sm:$0xff]
        %v746 = vld [vmem:[%s383 + $0xa9] sm:$0xff]
        %v747 = vld [vmem:[%s383 + $0xb1] sm:$0xff]
        %v748 = vld [vmem:[%s383 + $0xc9] sm:$0xff]
        %v749 = vld [vmem:[%s383 + $0xd1] sm:$0xff]
        %v750 = vld [vmem:[%s383 + $0xe9] sm:$0xff]
        %v751 = vld [vmem:[%s383 + $0xf1] sm:$0xff]
        %v752 = vld [vmem:[%s383 + $0x109] sm:$0xff]
        %v753 = vld [vmem:[%s383 + $0x111] sm:$0xff]
        %v754 = vld [vmem:[%s383 + $0x129] sm:$0xff]
        %v755 = vld [vmem:[%s383 + $0x131] sm:$0xff]
        %v756 = vld [vmem:[%s383 + $0x149] sm:$0xff]
        %v757 = vld [vmem:[%s383 + $0x151] sm:$0xff]
        %v758 = vld [vmem:[%s383 + $0x169] sm:$0xff]
        %v759 = vld [vmem:[%s383 + $0x171] sm:$0xff]
        %v760 = vld [vmem:[%s383 + $0x189] sm:$0xff]
        %v761 = vld [vmem:[%s383 + $0x191] sm:$0xff]
        %v762 = vld [vmem:[%s383 + $0x1a9] sm:$0xff]
        %v763 = vld [vmem:[%s383 + $0x1b1] sm:$0xff]
        %v764 = vld [vmem:[%s383 + $0x1c9] sm:$0xff]
        %v765 = vld [vmem:[%s383 + $0x1d1] sm:$0xff]
        %v766 = vld [vmem:[%s383 + $0x1e9] sm:$0xff]
        %v767 = vld [vmem:[%s383 + $0x1f1] sm:$0xff]
        %v768 = vpack.c.bf16 %v736, %v736
        %v769 = vpack.c.bf16 %v737, %v737
        %v770 = vpack.c.bf16 %v738, %v738
        %v771 = vpack.c.bf16 %v739, %v739
        %v772 = vpack.c.bf16 %v740, %v740
        %v773 = vpack.c.bf16 %v741, %v741
        %v774 = vpack.c.bf16 %v742, %v742
        %v775 = vpack.c.bf16 %v743, %v743
        %v776 = vpack.c.bf16 %v744, %v744
        %v777 = vpack.c.bf16 %v745, %v745
        %v778 = vpack.c.bf16 %v746, %v746
        %v779 = vpack.c.bf16 %v747, %v747
        %v780 = vpack.c.bf16 %v748, %v748
        %v781 = vpack.c.bf16 %v749, %v749
        %v782 = vpack.c.bf16 %v750, %v750
        %v783 = vpack.c.bf16 %v751, %v751
        %v784 = vpack.c.bf16 %v752, %v752
        %v785 = vpack.c.bf16 %v753, %v753
        %v786 = vpack.c.bf16 %v754, %v754
        %v787 = vpack.c.bf16 %v755, %v755
        %v788 = vpack.c.bf16 %v756, %v756
        %v789 = vpack.c.bf16 %v757, %v757
        %v790 = vpack.c.bf16 %v758, %v758
        %v791 = vpack.c.bf16 %v759, %v759
        %v792 = vpack.c.bf16 %v760, %v760
        %v793 = vpack.c.bf16 %v761, %v761
        %v794 = vpack.c.bf16 %v762, %v762
        %v795 = vpack.c.bf16 %v763, %v763
        %v796 = vpack.c.bf16 %v764, %v764
        %v797 = vpack.c.bf16 %v765, %v765
        %v798 = vpack.c.bf16 %v766, %v766
        %v799 = vpack.c.bf16 %v767, %v767
        %s800 = scalar_lea.vmem [#allocation2], 64
        %v801 = vld [vmem:[%s800 + $0x7] sm:$0xff]
        %v802 = vld [vmem:[%s800 + $0xf] sm:$0xff]
        %v803 = vld [vmem:[%s800 + $0x27] sm:$0xff]
        %v804 = vld [vmem:[%s800 + $0x2f] sm:$0xff]
        %v805 = vld [vmem:[%s800 + $0x47] sm:$0xff]
        %v806 = vld [vmem:[%s800 + $0x4f] sm:$0xff]
        %v807 = vld [vmem:[%s800 + $0x67] sm:$0xff]
        %v808 = vld [vmem:[%s800 + $0x6f] sm:$0xff]
        %v809 = vld [vmem:[%s800 + $0x87] sm:$0xff]
        %v810 = vld [vmem:[%s800 + $0x8f] sm:$0xff]
        %v811 = vld [vmem:[%s800 + $0xa7] sm:$0xff]
        %v812 = vld [vmem:[%s800 + $0xaf] sm:$0xff]
        %v813 = vld [vmem:[%s800 + $0xc7] sm:$0xff]
        %v814 = vld [vmem:[%s800 + $0xcf] sm:$0xff]
        %v815 = vld [vmem:[%s800 + $0xe7] sm:$0xff]
        %v816 = vld [vmem:[%s800 + $0xef] sm:$0xff]
        %v817 = vld [vmem:[%s800 + $0x107] sm:$0xff]
        %v818 = vld [vmem:[%s800 + $0x10f] sm:$0xff]
        %v819 = vld [vmem:[%s800 + $0x127] sm:$0xff]
        %v820 = vld [vmem:[%s800 + $0x12f] sm:$0xff]
        %v821 = vld [vmem:[%s800 + $0x147] sm:$0xff]
        %v822 = vld [vmem:[%s800 + $0x14f] sm:$0xff]
        %v823 = vld [vmem:[%s800 + $0x167] sm:$0xff]
        %v824 = vld [vmem:[%s800 + $0x16f] sm:$0xff]
        %v825 = vld [vmem:[%s800 + $0x187] sm:$0xff]
        %v826 = vld [vmem:[%s800 + $0x18f] sm:$0xff]
        %v827 = vld [vmem:[%s800 + $0x1a7] sm:$0xff]
        %v828 = vld [vmem:[%s800 + $0x1af] sm:$0xff]
        %v829 = vld [vmem:[%s800 + $0x1c7] sm:$0xff]
        %v830 = vld [vmem:[%s800 + $0x1cf] sm:$0xff]
        %v831 = vld [vmem:[%s800 + $0x1e7] sm:$0xff]
        %v832 = vld [vmem:[%s800 + $0x1ef] sm:$0xff]
        %v833 = vpack.c.bf16 %v801, %v801
        %v834 = vpack.c.bf16 %v802, %v802
        %v835 = vpack.c.bf16 %v803, %v803
        %v836 = vpack.c.bf16 %v804, %v804
        %v837 = vpack.c.bf16 %v805, %v805
        %v838 = vpack.c.bf16 %v806, %v806
        %v839 = vpack.c.bf16 %v807, %v807
        %v840 = vpack.c.bf16 %v808, %v808
        %v841 = vpack.c.bf16 %v809, %v809
        %v842 = vpack.c.bf16 %v810, %v810
        %v843 = vpack.c.bf16 %v811, %v811
        %v844 = vpack.c.bf16 %v812, %v812
        %v845 = vpack.c.bf16 %v813, %v813
        %v846 = vpack.c.bf16 %v814, %v814
        %v847 = vpack.c.bf16 %v815, %v815
        %v848 = vpack.c.bf16 %v816, %v816
        %v849 = vpack.c.bf16 %v817, %v817
        %v850 = vpack.c.bf16 %v818, %v818
        %v851 = vpack.c.bf16 %v819, %v819
        %v852 = vpack.c.bf16 %v820, %v820
        %v853 = vpack.c.bf16 %v821, %v821
        %v854 = vpack.c.bf16 %v822, %v822
        %v855 = vpack.c.bf16 %v823, %v823
        %v856 = vpack.c.bf16 %v824, %v824
        %v857 = vpack.c.bf16 %v825, %v825
        %v858 = vpack.c.bf16 %v826, %v826
        %v859 = vpack.c.bf16 %v827, %v827
        %v860 = vpack.c.bf16 %v828, %v828
        %v861 = vpack.c.bf16 %v829, %v829
        %v862 = vpack.c.bf16 %v830, %v830
        %v863 = vpack.c.bf16 %v831, %v831
        %v864 = vpack.c.bf16 %v832, %v832
        %v865 = vld [vmem:[%s800 + $0x8] sm:$0xff]
        %v866 = vld [vmem:[%s800 + $0x10] sm:$0xff]
        %v867 = vld [vmem:[%s800 + $0x28] sm:$0xff]
        %v868 = vld [vmem:[%s800 + $0x30] sm:$0xff]
        %v869 = vld [vmem:[%s800 + $0x48] sm:$0xff]
        %v870 = vld [vmem:[%s800 + $0x50] sm:$0xff]
        %v871 = vld [vmem:[%s800 + $0x68] sm:$0xff]
        %v872 = vld [vmem:[%s800 + $0x70] sm:$0xff]
        %v873 = vld [vmem:[%s800 + $0x88] sm:$0xff]
        %v874 = vld [vmem:[%s800 + $0x90] sm:$0xff]
        %v875 = vld [vmem:[%s800 + $0xa8] sm:$0xff]
        %v876 = vld [vmem:[%s800 + $0xb0] sm:$0xff]
        %v877 = vld [vmem:[%s800 + $0xc8] sm:$0xff]
        %v878 = vld [vmem:[%s800 + $0xd0] sm:$0xff]
        %v879 = vld [vmem:[%s800 + $0xe8] sm:$0xff]
        %v880 = vld [vmem:[%s800 + $0xf0] sm:$0xff]
        %v881 = vld [vmem:[%s800 + $0x108] sm:$0xff]
        %v882 = vld [vmem:[%s800 + $0x110] sm:$0xff]
        %v883 = vld [vmem:[%s800 + $0x128] sm:$0xff]
        %v884 = vld [vmem:[%s800 + $0x130] sm:$0xff]
        %v885 = vld [vmem:[%s800 + $0x148] sm:$0xff]
        %v886 = vld [vmem:[%s800 + $0x150] sm:$0xff]
        %v887 = vld [vmem:[%s800 + $0x168] sm:$0xff]
        %v888 = vld [vmem:[%s800 + $0x170] sm:$0xff]
        %v889 = vld [vmem:[%s800 + $0x188] sm:$0xff]
        %v890 = vld [vmem:[%s800 + $0x190] sm:$0xff]
        %v891 = vld [vmem:[%s800 + $0x1a8] sm:$0xff]
        %v892 = vld [vmem:[%s800 + $0x1b0] sm:$0xff]
        %v893 = vld [vmem:[%s800 + $0x1c8] sm:$0xff]
        %v894 = vld [vmem:[%s800 + $0x1d0] sm:$0xff]
        %v895 = vld [vmem:[%s800 + $0x1e8] sm:$0xff]
        %v896 = vld [vmem:[%s800 + $0x1f0] sm:$0xff]
        %v897 = vpack.c.bf16 %v865, %v865
        %v898 = vpack.c.bf16 %v866, %v866
        %v899 = vpack.c.bf16 %v867, %v867
        %v900 = vpack.c.bf16 %v868, %v868
        %v901 = vpack.c.bf16 %v869, %v869
        %v902 = vpack.c.bf16 %v870, %v870
        %v903 = vpack.c.bf16 %v871, %v871
        %v904 = vpack.c.bf16 %v872, %v872
        %v905 = vpack.c.bf16 %v873, %v873
        %v906 = vpack.c.bf16 %v874, %v874
        %v907 = vpack.c.bf16 %v875, %v875
        %v908 = vpack.c.bf16 %v876, %v876
        %v909 = vpack.c.bf16 %v877, %v877
        %v910 = vpack.c.bf16 %v878, %v878
        %v911 = vpack.c.bf16 %v879, %v879
        %v912 = vpack.c.bf16 %v880, %v880
        %v913 = vpack.c.bf16 %v881, %v881
        %v914 = vpack.c.bf16 %v882, %v882
        %v915 = vpack.c.bf16 %v883, %v883
        %v916 = vpack.c.bf16 %v884, %v884
        %v917 = vpack.c.bf16 %v885, %v885
        %v918 = vpack.c.bf16 %v886, %v886
        %v919 = vpack.c.bf16 %v887, %v887
        %v920 = vpack.c.bf16 %v888, %v888
        %v921 = vpack.c.bf16 %v889, %v889
        %v922 = vpack.c.bf16 %v890, %v890
        %v923 = vpack.c.bf16 %v891, %v891
        %v924 = vpack.c.bf16 %v892, %v892
        %v925 = vpack.c.bf16 %v893, %v893
        %v926 = vpack.c.bf16 %v894, %v894
        %v927 = vpack.c.bf16 %v895, %v895
        %v928 = vpack.c.bf16 %v896, %v896
        %v929 = vld [vmem:[%s800 + $0x9] sm:$0xff]
        %v930 = vld [vmem:[%s800 + $0x11] sm:$0xff]
        %v931 = vld [vmem:[%s800 + $0x29] sm:$0xff]
        %v932 = vld [vmem:[%s800 + $0x31] sm:$0xff]
        %v933 = vld [vmem:[%s800 + $0x49] sm:$0xff]
        %v934 = vld [vmem:[%s800 + $0x51] sm:$0xff]
        %v935 = vld [vmem:[%s800 + $0x69] sm:$0xff]
        %v936 = vld [vmem:[%s800 + $0x71] sm:$0xff]
        %v937 = vld [vmem:[%s800 + $0x89] sm:$0xff]
        %v938 = vld [vmem:[%s800 + $0x91] sm:$0xff]
        %v939 = vld [vmem:[%s800 + $0xa9] sm:$0xff]
        %v940 = vld [vmem:[%s800 + $0xb1] sm:$0xff]
        %v941 = vld [vmem:[%s800 + $0xc9] sm:$0xff]
        %v942 = vld [vmem:[%s800 + $0xd1] sm:$0xff]
        %v943 = vld [vmem:[%s800 + $0xe9] sm:$0xff]
        %v944 = vld [vmem:[%s800 + $0xf1] sm:$0xff]
        %v945 = vld [vmem:[%s800 + $0x109] sm:$0xff]
        %v946 = vld [vmem:[%s800 + $0x111] sm:$0xff]
        %v947 = vld [vmem:[%s800 + $0x129] sm:$0xff]
        %v948 = vld [vmem:[%s800 + $0x131] sm:$0xff]
        %v949 = vld [vmem:[%s800 + $0x149] sm:$0xff]
        %v950 = vld [vmem:[%s800 + $0x151] sm:$0xff]
        %v951 = vld [vmem:[%s800 + $0x169] sm:$0xff]
        %v952 = vld [vmem:[%s800 + $0x171] sm:$0xff]
        %v953 = vld [vmem:[%s800 + $0x189] sm:$0xff]
        %v954 = vld [vmem:[%s800 + $0x191] sm:$0xff]
        %v955 = vld [vmem:[%s800 + $0x1a9] sm:$0xff]
        %v956 = vld [vmem:[%s800 + $0x1b1] sm:$0xff]
        %v957 = vld [vmem:[%s800 + $0x1c9] sm:$0xff]
        %v958 = vld [vmem:[%s800 + $0x1d1] sm:$0xff]
        %v959 = vld [vmem:[%s800 + $0x1e9] sm:$0xff]
        %v960 = vld [vmem:[%s800 + $0x1f1] sm:$0xff]
        %v961 = vpack.c.bf16 %v929, %v929
        %v962 = vpack.c.bf16 %v930, %v930
        %v963 = vpack.c.bf16 %v931, %v931
        %v964 = vpack.c.bf16 %v932, %v932
        %v965 = vpack.c.bf16 %v933, %v933
        %v966 = vpack.c.bf16 %v934, %v934
        %v967 = vpack.c.bf16 %v935, %v935
        %v968 = vpack.c.bf16 %v936, %v936
        %v969 = vpack.c.bf16 %v937, %v937
        %v970 = vpack.c.bf16 %v938, %v938
        %v971 = vpack.c.bf16 %v939, %v939
        %v972 = vpack.c.bf16 %v940, %v940
        %v973 = vpack.c.bf16 %v941, %v941
        %v974 = vpack.c.bf16 %v942, %v942
        %v975 = vpack.c.bf16 %v943, %v943
        %v976 = vpack.c.bf16 %v944, %v944
        %v977 = vpack.c.bf16 %v945, %v945
        %v978 = vpack.c.bf16 %v946, %v946
        %v979 = vpack.c.bf16 %v947, %v947
        %v980 = vpack.c.bf16 %v948, %v948
        %v981 = vpack.c.bf16 %v949, %v949
        %v982 = vpack.c.bf16 %v950, %v950
        %v983 = vpack.c.bf16 %v951, %v951
        %v984 = vpack.c.bf16 %v952, %v952
        %v985 = vpack.c.bf16 %v953, %v953
        %v986 = vpack.c.bf16 %v954, %v954
        %v987 = vpack.c.bf16 %v955, %v955
        %v988 = vpack.c.bf16 %v956, %v956
        %v989 = vpack.c.bf16 %v957, %v957
        %v990 = vpack.c.bf16 %v958, %v958
        %v991 = vpack.c.bf16 %v959, %v959
        %v992 = vpack.c.bf16 %v960, %v960
        %v1025 = vunpack.c.l.b16 %v448
        %v1026 = vunpack.c.l.b16 %v449
        %v1027 = vunpack.c.l.b16 %v450
        %v1028 = vunpack.c.l.b16 %v451
        %v1029 = vunpack.c.l.b16 %v452
        %v1030 = vunpack.c.l.b16 %v453
        %v1031 = vunpack.c.l.b16 %v454
        %v1032 = vunpack.c.l.b16 %v455
        %v1033 = vunpack.c.l.b16 %v456
        %v1034 = vunpack.c.l.b16 %v457
        %v1035 = vunpack.c.l.b16 %v458
        %v1036 = vunpack.c.l.b16 %v459
        %v1037 = vunpack.c.l.b16 %v460
        %v1038 = vunpack.c.l.b16 %v461
        %v1039 = vunpack.c.l.b16 %v462
        %v1040 = vunpack.c.l.b16 %v463
        %v1041 = vunpack.c.l.b16 %v464
        %v1042 = vunpack.c.l.b16 %v465
        %v1043 = vunpack.c.l.b16 %v466
        %v1044 = vunpack.c.l.b16 %v467
        %v1045 = vunpack.c.l.b16 %v468
        %v1046 = vunpack.c.l.b16 %v469
        %v1047 = vunpack.c.l.b16 %v470
        %v1048 = vunpack.c.l.b16 %v471
        %v1049 = vunpack.c.l.b16 %v472
        %v1050 = vunpack.c.l.b16 %v473
        %v1051 = vunpack.c.l.b16 %v474
        %v1052 = vunpack.c.l.b16 %v475
        %v1053 = vunpack.c.l.b16 %v476
        %v1054 = vunpack.c.l.b16 %v477
        %v1055 = vunpack.c.l.b16 %v478
        %v1056 = vunpack.c.l.b16 %v479
        %v1057 = vpack.c.b16 %v1026, %v1025
        %v1058 = vpack.c.b16 %v1028, %v1027
        %v1059 = vpack.c.b16 %v1030, %v1029
        %v1060 = vpack.c.b16 %v1032, %v1031
        %v1061 = vpack.c.b16 %v1034, %v1033
        %v1062 = vpack.c.b16 %v1036, %v1035
        %v1063 = vpack.c.b16 %v1038, %v1037
        %v1064 = vpack.c.b16 %v1040, %v1039
        %v1065 = vpack.c.b16 %v1042, %v1041
        %v1066 = vpack.c.b16 %v1044, %v1043
        %v1067 = vpack.c.b16 %v1046, %v1045
        %v1068 = vpack.c.b16 %v1048, %v1047
        %v1069 = vpack.c.b16 %v1050, %v1049
        %v1070 = vpack.c.b16 %v1052, %v1051
        %v1071 = vpack.c.b16 %v1054, %v1053
        %v1072 = vpack.c.b16 %v1056, %v1055
        %v1105 = vunpack.c.l.b16 %v512
        %v1106 = vunpack.c.l.b16 %v513
        %v1107 = vunpack.c.l.b16 %v514
        %v1108 = vunpack.c.l.b16 %v515
        %v1109 = vunpack.c.l.b16 %v516
        %v1110 = vunpack.c.l.b16 %v517
        %v1111 = vunpack.c.l.b16 %v518
        %v1112 = vunpack.c.l.b16 %v519
        %v1113 = vunpack.c.l.b16 %v520
        %v1114 = vunpack.c.l.b16 %v521
        %v1115 = vunpack.c.l.b16 %v522
        %v1116 = vunpack.c.l.b16 %v523
        %v1117 = vunpack.c.l.b16 %v524
        %v1118 = vunpack.c.l.b16 %v525
        %v1119 = vunpack.c.l.b16 %v526
        %v1120 = vunpack.c.l.b16 %v527
        %v1121 = vunpack.c.l.b16 %v528
        %v1122 = vunpack.c.l.b16 %v529
        %v1123 = vunpack.c.l.b16 %v530
        %v1124 = vunpack.c.l.b16 %v531
        %v1125 = vunpack.c.l.b16 %v532
        %v1126 = vunpack.c.l.b16 %v533
        %v1127 = vunpack.c.l.b16 %v534
        %v1128 = vunpack.c.l.b16 %v535
        %v1129 = vunpack.c.l.b16 %v536
        %v1130 = vunpack.c.l.b16 %v537
        %v1131 = vunpack.c.l.b16 %v538
        %v1132 = vunpack.c.l.b16 %v539
        %v1133 = vunpack.c.l.b16 %v540
        %v1134 = vunpack.c.l.b16 %v541
        %v1135 = vunpack.c.l.b16 %v542
        %v1136 = vunpack.c.l.b16 %v543
        %v1137 = vpack.c.b16 %v1106, %v1105
        %v1138 = vpack.c.b16 %v1108, %v1107
        %v1139 = vpack.c.b16 %v1110, %v1109
        %v1140 = vpack.c.b16 %v1112, %v1111
        %v1141 = vpack.c.b16 %v1114, %v1113
        %v1142 = vpack.c.b16 %v1116, %v1115
        %v1143 = vpack.c.b16 %v1118, %v1117
        %v1144 = vpack.c.b16 %v1120, %v1119
        %v1145 = vpack.c.b16 %v1122, %v1121
        %v1146 = vpack.c.b16 %v1124, %v1123
        %v1147 = vpack.c.b16 %v1126, %v1125
        %v1148 = vpack.c.b16 %v1128, %v1127
        %v1149 = vpack.c.b16 %v1130, %v1129
        %v1150 = vpack.c.b16 %v1132, %v1131
        %v1151 = vpack.c.b16 %v1134, %v1133
        %v1152 = vpack.c.b16 %v1136, %v1135
        %1153 = vrot.lane.b32.xlu0 %v1137, 64
        %v1154 = vpop.permute.xlu0 %1153
        %1155 = vrot.lane.b32.xlu0 %v1138, 64
        %v1156 = vpop.permute.xlu0 %1155
        %1157 = vrot.lane.b32.xlu0 %v1139, 64
        %v1158 = vpop.permute.xlu0 %1157
        %1159 = vrot.lane.b32.xlu0 %v1140, 64
        %v1160 = vpop.permute.xlu0 %1159
        %1161 = vrot.lane.b32.xlu0 %v1141, 64
        %v1162 = vpop.permute.xlu0 %1161
        %1163 = vrot.lane.b32.xlu0 %v1142, 64
        %v1164 = vpop.permute.xlu0 %1163
        %1165 = vrot.lane.b32.xlu0 %v1143, 64
        %v1166 = vpop.permute.xlu0 %1165
        %1167 = vrot.lane.b32.xlu0 %v1144, 64
        %v1168 = vpop.permute.xlu0 %1167
        %1169 = vrot.lane.b32.xlu0 %v1145, 64
        %v1170 = vpop.permute.xlu0 %1169
        %1171 = vrot.lane.b32.xlu0 %v1146, 64
        %v1172 = vpop.permute.xlu0 %1171
        %1173 = vrot.lane.b32.xlu0 %v1147, 64
        %v1174 = vpop.permute.xlu0 %1173
        %1175 = vrot.lane.b32.xlu0 %v1148, 64
        %v1176 = vpop.permute.xlu0 %1175
        %1177 = vrot.lane.b32.xlu0 %v1149, 64
        %v1178 = vpop.permute.xlu0 %1177
        %1179 = vrot.lane.b32.xlu0 %v1150, 64
        %v1180 = vpop.permute.xlu0 %1179
        %1181 = vrot.lane.b32.xlu0 %v1151, 64
        %v1182 = vpop.permute.xlu0 %1181
        %1183 = vrot.lane.b32.xlu0 %v1152, 64
        %v1184 = vpop.permute.xlu0 %1183
        %v1217 = vunpack.c.l.b16 %v576
        %v1218 = vunpack.c.l.b16 %v577
        %v1219 = vunpack.c.l.b16 %v578
        %v1220 = vunpack.c.l.b16 %v579
        %v1221 = vunpack.c.l.b16 %v580
        %v1222 = vunpack.c.l.b16 %v581
        %v1223 = vunpack.c.l.b16 %v582
        %v1224 = vunpack.c.l.b16 %v583
        %v1225 = vunpack.c.l.b16 %v584
        %v1226 = vunpack.c.l.b16 %v585
        %v1227 = vunpack.c.l.b16 %v586
        %v1228 = vunpack.c.l.b16 %v587
        %v1229 = vunpack.c.l.b16 %v588
        %v1230 = vunpack.c.l.b16 %v589
        %v1231 = vunpack.c.l.b16 %v590
        %v1232 = vunpack.c.l.b16 %v591
        %v1233 = vunpack.c.l.b16 %v592
        %v1234 = vunpack.c.l.b16 %v593
        %v1235 = vunpack.c.l.b16 %v594
        %v1236 = vunpack.c.l.b16 %v595
        %v1237 = vunpack.c.l.b16 %v596
        %v1238 = vunpack.c.l.b16 %v597
        %v1239 = vunpack.c.l.b16 %v598
        %v1240 = vunpack.c.l.b16 %v599
        %v1241 = vunpack.c.l.b16 %v600
        %v1242 = vunpack.c.l.b16 %v601
        %v1243 = vunpack.c.l.b16 %v602
        %v1244 = vunpack.c.l.b16 %v603
        %v1245 = vunpack.c.l.b16 %v604
        %v1246 = vunpack.c.l.b16 %v605
        %v1247 = vunpack.c.l.b16 %v606
        %v1248 = vunpack.c.l.b16 %v607
        %v1249 = vpack.c.b16 %v1218, %v1217
        %v1250 = vpack.c.b16 %v1220, %v1219
        %v1251 = vpack.c.b16 %v1222, %v1221
        %v1252 = vpack.c.b16 %v1224, %v1223
        %v1253 = vpack.c.b16 %v1226, %v1225
        %v1254 = vpack.c.b16 %v1228, %v1227
        %v1255 = vpack.c.b16 %v1230, %v1229
        %v1256 = vpack.c.b16 %v1232, %v1231
        %v1257 = vpack.c.b16 %v1234, %v1233
        %v1258 = vpack.c.b16 %v1236, %v1235
        %v1259 = vpack.c.b16 %v1238, %v1237
        %v1260 = vpack.c.b16 %v1240, %v1239
        %v1261 = vpack.c.b16 %v1242, %v1241
        %v1262 = vpack.c.b16 %v1244, %v1243
        %v1263 = vpack.c.b16 %v1246, %v1245
        %v1264 = vpack.c.b16 %v1248, %v1247
        %v1297 = vunpack.c.l.b16 %v640
        %v1298 = vunpack.c.l.b16 %v641
        %v1299 = vunpack.c.l.b16 %v642
        %v1300 = vunpack.c.l.b16 %v643
        %v1301 = vunpack.c.l.b16 %v644
        %v1302 = vunpack.c.l.b16 %v645
        %v1303 = vunpack.c.l.b16 %v646
        %v1304 = vunpack.c.l.b16 %v647
        %v1305 = vunpack.c.l.b16 %v648
        %v1306 = vunpack.c.l.b16 %v649
        %v1307 = vunpack.c.l.b16 %v650
        %v1308 = vunpack.c.l.b16 %v651
        %v1309 = vunpack.c.l.b16 %v652
        %v1310 = vunpack.c.l.b16 %v653
        %v1311 = vunpack.c.l.b16 %v654
        %v1312 = vunpack.c.l.b16 %v655
        %v1313 = vunpack.c.l.b16 %v656
        %v1314 = vunpack.c.l.b16 %v657
        %v1315 = vunpack.c.l.b16 %v658
        %v1316 = vunpack.c.l.b16 %v659
        %v1317 = vunpack.c.l.b16 %v660
        %v1318 = vunpack.c.l.b16 %v661
        %v1319 = vunpack.c.l.b16 %v662
        %v1320 = vunpack.c.l.b16 %v663
        %v1321 = vunpack.c.l.b16 %v664
        %v1322 = vunpack.c.l.b16 %v665
        %v1323 = vunpack.c.l.b16 %v666
        %v1324 = vunpack.c.l.b16 %v667
        %v1325 = vunpack.c.l.b16 %v668
        %v1326 = vunpack.c.l.b16 %v669
        %v1327 = vunpack.c.l.b16 %v670
        %v1328 = vunpack.c.l.b16 %v671
        %v1329 = vpack.c.b16 %v1298, %v1297
        %v1330 = vpack.c.b16 %v1300, %v1299
        %v1331 = vpack.c.b16 %v1302, %v1301
        %v1332 = vpack.c.b16 %v1304, %v1303
        %v1333 = vpack.c.b16 %v1306, %v1305
        %v1334 = vpack.c.b16 %v1308, %v1307
        %v1335 = vpack.c.b16 %v1310, %v1309
        %v1336 = vpack.c.b16 %v1312, %v1311
        %v1337 = vpack.c.b16 %v1314, %v1313
        %v1338 = vpack.c.b16 %v1316, %v1315
        %v1339 = vpack.c.b16 %v1318, %v1317
        %v1340 = vpack.c.b16 %v1320, %v1319
        %v1341 = vpack.c.b16 %v1322, %v1321
        %v1342 = vpack.c.b16 %v1324, %v1323
        %v1343 = vpack.c.b16 %v1326, %v1325
        %v1344 = vpack.c.b16 %v1328, %v1327
        %1345 = vrot.lane.b32.xlu0 %v1329, 64
        %v1346 = vpop.permute.xlu0 %1345
        %1347 = vrot.lane.b32.xlu0 %v1330, 64
        %v1348 = vpop.permute.xlu0 %1347
        %1349 = vrot.lane.b32.xlu0 %v1331, 64
        %v1350 = vpop.permute.xlu0 %1349
        %1351 = vrot.lane.b32.xlu0 %v1332, 64
        %v1352 = vpop.permute.xlu0 %1351
        %1353 = vrot.lane.b32.xlu0 %v1333, 64
        %v1354 = vpop.permute.xlu0 %1353
        %1355 = vrot.lane.b32.xlu0 %v1334, 64
        %v1356 = vpop.permute.xlu0 %1355
        %1357 = vrot.lane.b32.xlu0 %v1335, 64
        %v1358 = vpop.permute.xlu0 %1357
        %1359 = vrot.lane.b32.xlu0 %v1336, 64
        %v1360 = vpop.permute.xlu0 %1359
        %1361 = vrot.lane.b32.xlu0 %v1337, 64
        %v1362 = vpop.permute.xlu0 %1361
        %1363 = vrot.lane.b32.xlu0 %v1338, 64
        %v1364 = vpop.permute.xlu0 %1363
        %1365 = vrot.lane.b32.xlu0 %v1339, 64
        %v1366 = vpop.permute.xlu0 %1365
        %1367 = vrot.lane.b32.xlu0 %v1340, 64
        %v1368 = vpop.permute.xlu0 %1367
        %1369 = vrot.lane.b32.xlu0 %v1341, 64
        %v1370 = vpop.permute.xlu0 %1369
        %1371 = vrot.lane.b32.xlu0 %v1342, 64
        %v1372 = vpop.permute.xlu0 %1371
        %1373 = vrot.lane.b32.xlu0 %v1343, 64
        %v1374 = vpop.permute.xlu0 %1373
        %1375 = vrot.lane.b32.xlu0 %v1344, 64
        %v1376 = vpop.permute.xlu0 %1375
        %v1409 = vunpack.c.l.b16 %v704
        %v1410 = vunpack.c.l.b16 %v705
        %v1411 = vunpack.c.l.b16 %v706
        %v1412 = vunpack.c.l.b16 %v707
        %v1413 = vunpack.c.l.b16 %v708
        %v1414 = vunpack.c.l.b16 %v709
        %v1415 = vunpack.c.l.b16 %v710
        %v1416 = vunpack.c.l.b16 %v711
        %v1417 = vunpack.c.l.b16 %v712
        %v1418 = vunpack.c.l.b16 %v713
        %v1419 = vunpack.c.l.b16 %v714
        %v1420 = vunpack.c.l.b16 %v715
        %v1421 = vunpack.c.l.b16 %v716
        %v1422 = vunpack.c.l.b16 %v717
        %v1423 = vunpack.c.l.b16 %v718
        %v1424 = vunpack.c.l.b16 %v719
        %v1425 = vunpack.c.l.b16 %v720
        %v1426 = vunpack.c.l.b16 %v721
        %v1427 = vunpack.c.l.b16 %v722
        %v1428 = vunpack.c.l.b16 %v723
        %v1429 = vunpack.c.l.b16 %v724
        %v1430 = vunpack.c.l.b16 %v725
        %v1431 = vunpack.c.l.b16 %v726
        %v1432 = vunpack.c.l.b16 %v727
        %v1433 = vunpack.c.l.b16 %v728
        %v1434 = vunpack.c.l.b16 %v729
        %v1435 = vunpack.c.l.b16 %v730
        %v1436 = vunpack.c.l.b16 %v731
        %v1437 = vunpack.c.l.b16 %v732
        %v1438 = vunpack.c.l.b16 %v733
        %v1439 = vunpack.c.l.b16 %v734
        %v1440 = vunpack.c.l.b16 %v735
        %v1441 = vpack.c.b16 %v1410, %v1409
        %v1442 = vpack.c.b16 %v1412, %v1411
        %v1443 = vpack.c.b16 %v1414, %v1413
        %v1444 = vpack.c.b16 %v1416, %v1415
        %v1445 = vpack.c.b16 %v1418, %v1417
        %v1446 = vpack.c.b16 %v1420, %v1419
        %v1447 = vpack.c.b16 %v1422, %v1421
        %v1448 = vpack.c.b16 %v1424, %v1423
        %v1449 = vpack.c.b16 %v1426, %v1425
        %v1450 = vpack.c.b16 %v1428, %v1427
        %v1451 = vpack.c.b16 %v1430, %v1429
        %v1452 = vpack.c.b16 %v1432, %v1431
        %v1453 = vpack.c.b16 %v1434, %v1433
        %v1454 = vpack.c.b16 %v1436, %v1435
        %v1455 = vpack.c.b16 %v1438, %v1437
        %v1456 = vpack.c.b16 %v1440, %v1439
        %v1489 = vunpack.c.l.b16 %v768
        %v1490 = vunpack.c.l.b16 %v769
        %v1491 = vunpack.c.l.b16 %v770
        %v1492 = vunpack.c.l.b16 %v771
        %v1493 = vunpack.c.l.b16 %v772
        %v1494 = vunpack.c.l.b16 %v773
        %v1495 = vunpack.c.l.b16 %v774
        %v1496 = vunpack.c.l.b16 %v775
        %v1497 = vunpack.c.l.b16 %v776
        %v1498 = vunpack.c.l.b16 %v777
        %v1499 = vunpack.c.l.b16 %v778
        %v1500 = vunpack.c.l.b16 %v779
        %v1501 = vunpack.c.l.b16 %v780
        %v1502 = vunpack.c.l.b16 %v781
        %v1503 = vunpack.c.l.b16 %v782
        %v1504 = vunpack.c.l.b16 %v783
        %v1505 = vunpack.c.l.b16 %v784
        %v1506 = vunpack.c.l.b16 %v785
        %v1507 = vunpack.c.l.b16 %v786
        %v1508 = vunpack.c.l.b16 %v787
        %v1509 = vunpack.c.l.b16 %v788
        %v1510 = vunpack.c.l.b16 %v789
        %v1511 = vunpack.c.l.b16 %v790
        %v1512 = vunpack.c.l.b16 %v791
        %v1513 = vunpack.c.l.b16 %v792
        %v1514 = vunpack.c.l.b16 %v793
        %v1515 = vunpack.c.l.b16 %v794
        %v1516 = vunpack.c.l.b16 %v795
        %v1517 = vunpack.c.l.b16 %v796
        %v1518 = vunpack.c.l.b16 %v797
        %v1519 = vunpack.c.l.b16 %v798
        %v1520 = vunpack.c.l.b16 %v799
        %v1521 = vpack.c.b16 %v1490, %v1489
        %v1522 = vpack.c.b16 %v1492, %v1491
        %v1523 = vpack.c.b16 %v1494, %v1493
        %v1524 = vpack.c.b16 %v1496, %v1495
        %v1525 = vpack.c.b16 %v1498, %v1497
        %v1526 = vpack.c.b16 %v1500, %v1499
        %v1527 = vpack.c.b16 %v1502, %v1501
        %v1528 = vpack.c.b16 %v1504, %v1503
        %v1529 = vpack.c.b16 %v1506, %v1505
        %v1530 = vpack.c.b16 %v1508, %v1507
        %v1531 = vpack.c.b16 %v1510, %v1509
        %v1532 = vpack.c.b16 %v1512, %v1511
        %v1533 = vpack.c.b16 %v1514, %v1513
        %v1534 = vpack.c.b16 %v1516, %v1515
        %v1535 = vpack.c.b16 %v1518, %v1517
        %v1536 = vpack.c.b16 %v1520, %v1519
        %1537 = vrot.lane.b32.xlu0 %v1521, 64
        %v1538 = vpop.permute.xlu0 %1537
        %1539 = vrot.lane.b32.xlu0 %v1522, 64
        %v1540 = vpop.permute.xlu0 %1539
        %1541 = vrot.lane.b32.xlu0 %v1523, 64
        %v1542 = vpop.permute.xlu0 %1541
        %1543 = vrot.lane.b32.xlu0 %v1524, 64
        %v1544 = vpop.permute.xlu0 %1543
        %1545 = vrot.lane.b32.xlu0 %v1525, 64
        %v1546 = vpop.permute.xlu0 %1545
        %1547 = vrot.lane.b32.xlu0 %v1526, 64
        %v1548 = vpop.permute.xlu0 %1547
        %1549 = vrot.lane.b32.xlu0 %v1527, 64
        %v1550 = vpop.permute.xlu0 %1549
        %1551 = vrot.lane.b32.xlu0 %v1528, 64
        %v1552 = vpop.permute.xlu0 %1551
        %1553 = vrot.lane.b32.xlu0 %v1529, 64
        %v1554 = vpop.permute.xlu0 %1553
        %1555 = vrot.lane.b32.xlu0 %v1530, 64
        %v1556 = vpop.permute.xlu0 %1555
        %1557 = vrot.lane.b32.xlu0 %v1531, 64
        %v1558 = vpop.permute.xlu0 %1557
        %1559 = vrot.lane.b32.xlu0 %v1532, 64
        %v1560 = vpop.permute.xlu0 %1559
        %1561 = vrot.lane.b32.xlu0 %v1533, 64
        %v1562 = vpop.permute.xlu0 %1561
        %1563 = vrot.lane.b32.xlu0 %v1534, 64
        %v1564 = vpop.permute.xlu0 %1563
        %1565 = vrot.lane.b32.xlu0 %v1535, 64
        %v1566 = vpop.permute.xlu0 %1565
        %1567 = vrot.lane.b32.xlu0 %v1536, 64
        %v1568 = vpop.permute.xlu0 %1567
        %v1601 = vunpack.c.l.b16 %v833
        %v1602 = vunpack.c.l.b16 %v834
        %v1603 = vunpack.c.l.b16 %v835
        %v1604 = vunpack.c.l.b16 %v836
        %v1605 = vunpack.c.l.b16 %v837
        %v1606 = vunpack.c.l.b16 %v838
        %v1607 = vunpack.c.l.b16 %v839
        %v1608 = vunpack.c.l.b16 %v840
        %v1609 = vunpack.c.l.b16 %v841
        %v1610 = vunpack.c.l.b16 %v842
        %v1611 = vunpack.c.l.b16 %v843
        %v1612 = vunpack.c.l.b16 %v844
        %v1613 = vunpack.c.l.b16 %v845
        %v1614 = vunpack.c.l.b16 %v846
        %v1615 = vunpack.c.l.b16 %v847
        %v1616 = vunpack.c.l.b16 %v848
        %v1617 = vunpack.c.l.b16 %v849
        %v1618 = vunpack.c.l.b16 %v850
        %v1619 = vunpack.c.l.b16 %v851
        %v1620 = vunpack.c.l.b16 %v852
        %v1621 = vunpack.c.l.b16 %v853
        %v1622 = vunpack.c.l.b16 %v854
        %v1623 = vunpack.c.l.b16 %v855
        %v1624 = vunpack.c.l.b16 %v856
        %v1625 = vunpack.c.l.b16 %v857
        %v1626 = vunpack.c.l.b16 %v858
        %v1627 = vunpack.c.l.b16 %v859
        %v1628 = vunpack.c.l.b16 %v860
        %v1629 = vunpack.c.l.b16 %v861
        %v1630 = vunpack.c.l.b16 %v862
        %v1631 = vunpack.c.l.b16 %v863
        %v1632 = vunpack.c.l.b16 %v864
        %v1633 = vpack.c.b16 %v1602, %v1601
        %v1634 = vpack.c.b16 %v1604, %v1603
        %v1635 = vpack.c.b16 %v1606, %v1605
        %v1636 = vpack.c.b16 %v1608, %v1607
        %v1637 = vpack.c.b16 %v1610, %v1609
        %v1638 = vpack.c.b16 %v1612, %v1611
        %v1639 = vpack.c.b16 %v1614, %v1613
        %v1640 = vpack.c.b16 %v1616, %v1615
        %v1641 = vpack.c.b16 %v1618, %v1617
        %v1642 = vpack.c.b16 %v1620, %v1619
        %v1643 = vpack.c.b16 %v1622, %v1621
        %v1644 = vpack.c.b16 %v1624, %v1623
        %v1645 = vpack.c.b16 %v1626, %v1625
        %v1646 = vpack.c.b16 %v1628, %v1627
        %v1647 = vpack.c.b16 %v1630, %v1629
        %v1648 = vpack.c.b16 %v1632, %v1631
        %v1681 = vunpack.c.l.b16 %v897
        %v1682 = vunpack.c.l.b16 %v898
        %v1683 = vunpack.c.l.b16 %v899
        %v1684 = vunpack.c.l.b16 %v900
        %v1685 = vunpack.c.l.b16 %v901
        %v1686 = vunpack.c.l.b16 %v902
        %v1687 = vunpack.c.l.b16 %v903
        %v1688 = vunpack.c.l.b16 %v904
        %v1689 = vunpack.c.l.b16 %v905
        %v1690 = vunpack.c.l.b16 %v906
        %v1691 = vunpack.c.l.b16 %v907
        %v1692 = vunpack.c.l.b16 %v908
        %v1693 = vunpack.c.l.b16 %v909
        %v1694 = vunpack.c.l.b16 %v910
        %v1695 = vunpack.c.l.b16 %v911
        %v1696 = vunpack.c.l.b16 %v912
        %v1697 = vunpack.c.l.b16 %v913
        %v1698 = vunpack.c.l.b16 %v914
        %v1699 = vunpack.c.l.b16 %v915
        %v1700 = vunpack.c.l.b16 %v916
        %v1701 = vunpack.c.l.b16 %v917
        %v1702 = vunpack.c.l.b16 %v918
        %v1703 = vunpack.c.l.b16 %v919
        %v1704 = vunpack.c.l.b16 %v920
        %v1705 = vunpack.c.l.b16 %v921
        %v1706 = vunpack.c.l.b16 %v922
        %v1707 = vunpack.c.l.b16 %v923
        %v1708 = vunpack.c.l.b16 %v924
        %v1709 = vunpack.c.l.b16 %v925
        %v1710 = vunpack.c.l.b16 %v926
        %v1711 = vunpack.c.l.b16 %v927
        %v1712 = vunpack.c.l.b16 %v928
        %v1713 = vpack.c.b16 %v1682, %v1681
        %v1714 = vpack.c.b16 %v1684, %v1683
        %v1715 = vpack.c.b16 %v1686, %v1685
        %v1716 = vpack.c.b16 %v1688, %v1687
        %v1717 = vpack.c.b16 %v1690, %v1689
        %v1718 = vpack.c.b16 %v1692, %v1691
        %v1719 = vpack.c.b16 %v1694, %v1693
        %v1720 = vpack.c.b16 %v1696, %v1695
        %v1721 = vpack.c.b16 %v1698, %v1697
        %v1722 = vpack.c.b16 %v1700, %v1699
        %v1723 = vpack.c.b16 %v1702, %v1701
        %v1724 = vpack.c.b16 %v1704, %v1703
        %v1725 = vpack.c.b16 %v1706, %v1705
        %v1726 = vpack.c.b16 %v1708, %v1707
        %v1727 = vpack.c.b16 %v1710, %v1709
        %v1728 = vpack.c.b16 %v1712, %v1711
        %1729 = vrot.lane.b32.xlu0 %v1713, 64
        %v1730 = vpop.permute.xlu0 %1729
        %1731 = vrot.lane.b32.xlu0 %v1714, 64
        %v1732 = vpop.permute.xlu0 %1731
        %1733 = vrot.lane.b32.xlu0 %v1715, 64
        %v1734 = vpop.permute.xlu0 %1733
        %1735 = vrot.lane.b32.xlu0 %v1716, 64
        %v1736 = vpop.permute.xlu0 %1735
        %1737 = vrot.lane.b32.xlu0 %v1717, 64
        %v1738 = vpop.permute.xlu0 %1737
        %1739 = vrot.lane.b32.xlu0 %v1718, 64
        %v1740 = vpop.permute.xlu0 %1739
        %1741 = vrot.lane.b32.xlu0 %v1719, 64
        %v1742 = vpop.permute.xlu0 %1741
        %1743 = vrot.lane.b32.xlu0 %v1720, 64
        %v1744 = vpop.permute.xlu0 %1743
        %1745 = vrot.lane.b32.xlu0 %v1721, 64
        %v1746 = vpop.permute.xlu0 %1745
        %1747 = vrot.lane.b32.xlu0 %v1722, 64
        %v1748 = vpop.permute.xlu0 %1747
        %1749 = vrot.lane.b32.xlu0 %v1723, 64
        %v1750 = vpop.permute.xlu0 %1749
        %1751 = vrot.lane.b32.xlu0 %v1724, 64
        %v1752 = vpop.permute.xlu0 %1751
        %1753 = vrot.lane.b32.xlu0 %v1725, 64
        %v1754 = vpop.permute.xlu0 %1753
        %1755 = vrot.lane.b32.xlu0 %v1726, 64
        %v1756 = vpop.permute.xlu0 %1755
        %1757 = vrot.lane.b32.xlu0 %v1727, 64
        %v1758 = vpop.permute.xlu0 %1757
        %1759 = vrot.lane.b32.xlu0 %v1728, 64
        %v1760 = vpop.permute.xlu0 %1759
        %v1793 = vunpack.c.l.b16 %v961
        %v1794 = vunpack.c.l.b16 %v962
        %v1795 = vunpack.c.l.b16 %v963
        %v1796 = vunpack.c.l.b16 %v964
        %v1797 = vunpack.c.l.b16 %v965
        %v1798 = vunpack.c.l.b16 %v966
        %v1799 = vunpack.c.l.b16 %v967
        %v1800 = vunpack.c.l.b16 %v968
        %v1801 = vunpack.c.l.b16 %v969
        %v1802 = vunpack.c.l.b16 %v970
        %v1803 = vunpack.c.l.b16 %v971
        %v1804 = vunpack.c.l.b16 %v972
        %v1805 = vunpack.c.l.b16 %v973
        %v1806 = vunpack.c.l.b16 %v974
        %v1807 = vunpack.c.l.b16 %v975
        %v1808 = vunpack.c.l.b16 %v976
        %v1809 = vunpack.c.l.b16 %v977
        %v1810 = vunpack.c.l.b16 %v978
        %v1811 = vunpack.c.l.b16 %v979
        %v1812 = vunpack.c.l.b16 %v980
        %v1813 = vunpack.c.l.b16 %v981
        %v1814 = vunpack.c.l.b16 %v982
        %v1815 = vunpack.c.l.b16 %v983
        %v1816 = vunpack.c.l.b16 %v984
        %v1817 = vunpack.c.l.b16 %v985
        %v1818 = vunpack.c.l.b16 %v986
        %v1819 = vunpack.c.l.b16 %v987
        %v1820 = vunpack.c.l.b16 %v988
        %v1821 = vunpack.c.l.b16 %v989
        %v1822 = vunpack.c.l.b16 %v990
        %v1823 = vunpack.c.l.b16 %v991
        %v1824 = vunpack.c.l.b16 %v992
        %v1825 = vpack.c.b16 %v1794, %v1793
        %v1826 = vpack.c.b16 %v1796, %v1795
        %v1827 = vpack.c.b16 %v1798, %v1797
        %v1828 = vpack.c.b16 %v1800, %v1799
        %v1829 = vpack.c.b16 %v1802, %v1801
        %v1830 = vpack.c.b16 %v1804, %v1803
        %v1831 = vpack.c.b16 %v1806, %v1805
        %v1832 = vpack.c.b16 %v1808, %v1807
        %v1833 = vpack.c.b16 %v1810, %v1809
        %v1834 = vpack.c.b16 %v1812, %v1811
        %v1835 = vpack.c.b16 %v1814, %v1813
        %v1836 = vpack.c.b16 %v1816, %v1815
        %v1837 = vpack.c.b16 %v1818, %v1817
        %v1838 = vpack.c.b16 %v1820, %v1819
        %v1839 = vpack.c.b16 %v1822, %v1821
        %v1840 = vpack.c.b16 %v1824, %v1823
        %v1843 = vsel %vm278, %v1057, %v1154
        %v1847 = vsel %vm278, %v1058, %v1156
        %v1851 = vsel %vm278, %v1059, %v1158
        %v1855 = vsel %vm278, %v1060, %v1160
        %v1859 = vsel %vm278, %v1061, %v1162
        %v1863 = vsel %vm278, %v1062, %v1164
        %v1867 = vsel %vm278, %v1063, %v1166
        %v1871 = vsel %vm278, %v1064, %v1168
        %v1875 = vsel %vm278, %v1065, %v1170
        %v1879 = vsel %vm278, %v1066, %v1172
        %v1883 = vsel %vm278, %v1067, %v1174
        %v1887 = vsel %vm278, %v1068, %v1176
        %v1891 = vsel %vm278, %v1069, %v1178
        %v1895 = vsel %vm278, %v1070, %v1180
        %v1899 = vsel %vm278, %v1071, %v1182
        %v1903 = vsel %vm278, %v1072, %v1184
        %v1907 = vsel %vm278, %v1249, %v1346
        %v1911 = vsel %vm278, %v1250, %v1348
        %v1915 = vsel %vm278, %v1251, %v1350
        %v1919 = vsel %vm278, %v1252, %v1352
        %v1923 = vsel %vm278, %v1253, %v1354
        %v1927 = vsel %vm278, %v1254, %v1356
        %v1931 = vsel %vm278, %v1255, %v1358
        %v1935 = vsel %vm278, %v1256, %v1360
        %v1939 = vsel %vm278, %v1257, %v1362
        %v1943 = vsel %vm278, %v1258, %v1364
        %v1947 = vsel %vm278, %v1259, %v1366
        %v1951 = vsel %vm278, %v1260, %v1368
        %v1955 = vsel %vm278, %v1261, %v1370
        %v1959 = vsel %vm278, %v1262, %v1372
        %v1963 = vsel %vm278, %v1263, %v1374
        %v1967 = vsel %vm278, %v1264, %v1376
        %v1971 = vsel %vm278, %v1441, %v1538
        %v1975 = vsel %vm278, %v1442, %v1540
        %v1979 = vsel %vm278, %v1443, %v1542
        %v1983 = vsel %vm278, %v1444, %v1544
        %v1987 = vsel %vm278, %v1445, %v1546
        %v1991 = vsel %vm278, %v1446, %v1548
        %v1995 = vsel %vm278, %v1447, %v1550
        %v1999 = vsel %vm278, %v1448, %v1552
        %v2003 = vsel %vm278, %v1449, %v1554
        %v2007 = vsel %vm278, %v1450, %v1556
        %v2011 = vsel %vm278, %v1451, %v1558
        %v2015 = vsel %vm278, %v1452, %v1560
        %v2019 = vsel %vm278, %v1453, %v1562
        %v2023 = vsel %vm278, %v1454, %v1564
        %v2027 = vsel %vm278, %v1455, %v1566
        %v2031 = vsel %vm278, %v1456, %v1568
        %v2035 = vsel %vm278, %v1633, %v1730
        %v2039 = vsel %vm278, %v1634, %v1732
        %v2043 = vsel %vm278, %v1635, %v1734
        %v2047 = vsel %vm278, %v1636, %v1736
        %v2051 = vsel %vm278, %v1637, %v1738
        %v2055 = vsel %vm278, %v1638, %v1740
        %v2059 = vsel %vm278, %v1639, %v1742
        %v2063 = vsel %vm278, %v1640, %v1744
        %v2067 = vsel %vm278, %v1641, %v1746
        %v2071 = vsel %vm278, %v1642, %v1748
        %v2075 = vsel %vm278, %v1643, %v1750
        %v2079 = vsel %vm278, %v1644, %v1752
        %v2083 = vsel %vm278, %v1645, %v1754
        %v2087 = vsel %vm278, %v1646, %v1756
        %v2091 = vsel %vm278, %v1647, %v1758
        %v2095 = vsel %vm278, %v1648, %v1760
        %v2097 = vld [vmem:[%s1] sm:$0xf]
        %v2098 = vld [vmem:[%s1 + $0x4] sm:$0xf]
        %v2099 = vld [vmem:[%s1 + $0x8] sm:$0xf]
        %v2100 = vld [vmem:[%s1 + $0xc] sm:$0xf]
        %v2101 = vld [vmem:[%s1 + $0x10] sm:$0xf]
        %v2102 = vld [vmem:[%s1 + $0x14] sm:$0xf]
        %v2103 = vld [vmem:[%s1 + $0x18] sm:$0xf]
        %v2104 = vld [vmem:[%s1 + $0x1c] sm:$0xf]
        %v2105 = vld [vmem:[%s1 + $0x20] sm:$0xf]
        %v2106 = vld [vmem:[%s1 + $0x24] sm:$0xf]
        %v2107 = vld [vmem:[%s1 + $0x28] sm:$0xf]
        %v2108 = vld [vmem:[%s1 + $0x2c] sm:$0xf]
        %v2109 = vld [vmem:[%s1 + $0x30] sm:$0xf]
        %v2110 = vld [vmem:[%s1 + $0x34] sm:$0xf]
        %v2111 = vld [vmem:[%s1 + $0x38] sm:$0xf]
        %v2112 = vld [vmem:[%s1 + $0x3c] sm:$0xf]
        %v2113 = vld [vmem:[%s1 + $0x40] sm:$0xf]
        %v2114 = vld [vmem:[%s1 + $0x44] sm:$0xf]
        %v2115 = vld [vmem:[%s1 + $0x48] sm:$0xf]
        %v2116 = vld [vmem:[%s1 + $0x4c] sm:$0xf]
        %v2117 = vld [vmem:[%s1 + $0x50] sm:$0xf]
        %v2118 = vld [vmem:[%s1 + $0x54] sm:$0xf]
        %v2119 = vld [vmem:[%s1 + $0x58] sm:$0xf]
        %v2120 = vld [vmem:[%s1 + $0x5c] sm:$0xf]
        %v2121 = vld [vmem:[%s1 + $0x60] sm:$0xf]
        %v2122 = vld [vmem:[%s1 + $0x64] sm:$0xf]
        %v2123 = vld [vmem:[%s1 + $0x68] sm:$0xf]
        %v2124 = vld [vmem:[%s1 + $0x6c] sm:$0xf]
        %v2125 = vld [vmem:[%s1 + $0x70] sm:$0xf]
        %v2126 = vld [vmem:[%s1 + $0x74] sm:$0xf]
        %v2127 = vld [vmem:[%s1 + $0x78] sm:$0xf]
        %v2128 = vld [vmem:[%s1 + $0x7c] sm:$0xf]
        %v2129 = vld [vmem:[%s1 + $0x80] sm:$0xf]
        %v2130 = vld [vmem:[%s1 + $0x84] sm:$0xf]
        %v2131 = vld [vmem:[%s1 + $0x88] sm:$0xf]
        %v2132 = vld [vmem:[%s1 + $0x8c] sm:$0xf]
        %v2133 = vld [vmem:[%s1 + $0x90] sm:$0xf]
        %v2134 = vld [vmem:[%s1 + $0x94] sm:$0xf]
        %v2135 = vld [vmem:[%s1 + $0x98] sm:$0xf]
        %v2136 = vld [vmem:[%s1 + $0x9c] sm:$0xf]
        %v2137 = vld [vmem:[%s1 + $0xa0] sm:$0xf]
        %v2138 = vld [vmem:[%s1 + $0xa4] sm:$0xf]
        %v2139 = vld [vmem:[%s1 + $0xa8] sm:$0xf]
        %v2140 = vld [vmem:[%s1 + $0xac] sm:$0xf]
        %v2141 = vld [vmem:[%s1 + $0xb0] sm:$0xf]
        %v2142 = vld [vmem:[%s1 + $0xb4] sm:$0xf]
        %v2143 = vld [vmem:[%s1 + $0xb8] sm:$0xf]
        %v2144 = vld [vmem:[%s1 + $0xbc] sm:$0xf]
        %v2145 = vld [vmem:[%s1 + $0xc0] sm:$0xf]
        %v2146 = vld [vmem:[%s1 + $0xc4] sm:$0xf]
        %v2147 = vld [vmem:[%s1 + $0xc8] sm:$0xf]
        %v2148 = vld [vmem:[%s1 + $0xcc] sm:$0xf]
        %v2149 = vld [vmem:[%s1 + $0xd0] sm:$0xf]
        %v2150 = vld [vmem:[%s1 + $0xd4] sm:$0xf]
        %v2151 = vld [vmem:[%s1 + $0xd8] sm:$0xf]
        %v2152 = vld [vmem:[%s1 + $0xdc] sm:$0xf]
        %v2153 = vld [vmem:[%s1 + $0xe0] sm:$0xf]
        %v2154 = vld [vmem:[%s1 + $0xe4] sm:$0xf]
        %v2155 = vld [vmem:[%s1 + $0xe8] sm:$0xf]
        %v2156 = vld [vmem:[%s1 + $0xec] sm:$0xf]
        %v2157 = vld [vmem:[%s1 + $0xf0] sm:$0xf]
        %v2158 = vld [vmem:[%s1 + $0xf4] sm:$0xf]
        %v2159 = vld [vmem:[%s1 + $0xf8] sm:$0xf]
        %v2160 = vld [vmem:[%s1 + $0xfc] sm:$0xf]
        %v2161 = vld [vmem:[%s1 + $0x100] sm:$0xf]
        %v2162 = vld [vmem:[%s1 + $0x104] sm:$0xf]
        %v2163 = vld [vmem:[%s1 + $0x108] sm:$0xf]
        %v2164 = vld [vmem:[%s1 + $0x10c] sm:$0xf]
        %v2165 = vld [vmem:[%s1 + $0x110] sm:$0xf]
        %v2166 = vld [vmem:[%s1 + $0x114] sm:$0xf]
        %v2167 = vld [vmem:[%s1 + $0x118] sm:$0xf]
        %v2168 = vld [vmem:[%s1 + $0x11c] sm:$0xf]
        %v2241 = vunpack.c.l.b16 %v2097
        %v2242 = vunpack.c.l.b16 %v2098
        %v2243 = vunpack.c.l.b16 %v2099
        %v2244 = vunpack.c.l.b16 %v2100
        %v2245 = vunpack.c.l.b16 %v2101
        %v2246 = vunpack.c.l.b16 %v2102
        %v2247 = vunpack.c.l.b16 %v2103
        %v2248 = vunpack.c.l.b16 %v2104
        %v2249 = vunpack.c.l.b16 %v2105
        %v2250 = vunpack.c.l.b16 %v2106
        %v2251 = vunpack.c.l.b16 %v2107
        %v2252 = vunpack.c.l.b16 %v2108
        %v2253 = vunpack.c.l.b16 %v2109
        %v2254 = vunpack.c.l.b16 %v2110
        %v2255 = vunpack.c.l.b16 %v2111
        %v2256 = vunpack.c.l.b16 %v2112
        %v2257 = vunpack.c.l.b16 %v2113
        %v2258 = vunpack.c.l.b16 %v2114
        %v2259 = vunpack.c.l.b16 %v2115
        %v2260 = vunpack.c.l.b16 %v2116
        %v2261 = vunpack.c.l.b16 %v2117
        %v2262 = vunpack.c.l.b16 %v2118
        %v2263 = vunpack.c.l.b16 %v2119
        %v2264 = vunpack.c.l.b16 %v2120
        %v2265 = vunpack.c.l.b16 %v2121
        %v2266 = vunpack.c.l.b16 %v2122
        %v2267 = vunpack.c.l.b16 %v2123
        %v2268 = vunpack.c.l.b16 %v2124
        %v2269 = vunpack.c.l.b16 %v2125
        %v2270 = vunpack.c.l.b16 %v2126
        %v2271 = vunpack.c.l.b16 %v2127
        %v2272 = vunpack.c.l.b16 %v2128
        %v2273 = vunpack.c.l.b16 %v2129
        %v2274 = vunpack.c.l.b16 %v2130
        %v2275 = vunpack.c.l.b16 %v2131
        %v2276 = vunpack.c.l.b16 %v2132
        %v2277 = vunpack.c.l.b16 %v2133
        %v2278 = vunpack.c.l.b16 %v2134
        %v2279 = vunpack.c.l.b16 %v2135
        %v2280 = vunpack.c.l.b16 %v2136
        %v2281 = vunpack.c.l.b16 %v2137
        %v2282 = vunpack.c.l.b16 %v2138
        %v2283 = vunpack.c.l.b16 %v2139
        %v2284 = vunpack.c.l.b16 %v2140
        %v2285 = vunpack.c.l.b16 %v2141
        %v2286 = vunpack.c.l.b16 %v2142
        %v2287 = vunpack.c.l.b16 %v2143
        %v2288 = vunpack.c.l.b16 %v2144
        %v2289 = vunpack.c.l.b16 %v2145
        %v2290 = vunpack.c.l.b16 %v2146
        %v2291 = vunpack.c.l.b16 %v2147
        %v2292 = vunpack.c.l.b16 %v2148
        %v2293 = vunpack.c.l.b16 %v2149
        %v2294 = vunpack.c.l.b16 %v2150
        %v2295 = vunpack.c.l.b16 %v2151
        %v2296 = vunpack.c.l.b16 %v2152
        %v2297 = vunpack.c.l.b16 %v2153
        %v2298 = vunpack.c.l.b16 %v2154
        %v2299 = vunpack.c.l.b16 %v2155
        %v2300 = vunpack.c.l.b16 %v2156
        %v2301 = vunpack.c.l.b16 %v2157
        %v2302 = vunpack.c.l.b16 %v2158
        %v2303 = vunpack.c.l.b16 %v2159
        %v2304 = vunpack.c.l.b16 %v2160
        %v2305 = vunpack.c.l.b16 %v2161
        %v2306 = vunpack.c.l.b16 %v2162
        %v2307 = vunpack.c.l.b16 %v2163
        %v2308 = vunpack.c.l.b16 %v2164
        %v2309 = vunpack.c.l.b16 %v2165
        %v2310 = vunpack.c.l.b16 %v2166
        %v2311 = vunpack.c.l.b16 %v2167
        %v2312 = vunpack.c.l.b16 %v2168
        %v2313 = vpack.c.b16 %v2242, %v2241
        %v2314 = vpack.c.b16 %v2244, %v2243
        %v2315 = vpack.c.b16 %v2246, %v2245
        %v2316 = vpack.c.b16 %v2248, %v2247
        %v2317 = vpack.c.b16 %v2250, %v2249
        %v2318 = vpack.c.b16 %v2252, %v2251
        %v2319 = vpack.c.b16 %v2254, %v2253
        %v2320 = vpack.c.b16 %v2256, %v2255
        %v2321 = vpack.c.b16 %v2258, %v2257
        %v2322 = vpack.c.b16 %v2260, %v2259
        %v2323 = vpack.c.b16 %v2262, %v2261
        %v2324 = vpack.c.b16 %v2264, %v2263
        %v2325 = vpack.c.b16 %v2266, %v2265
        %v2326 = vpack.c.b16 %v2268, %v2267
        %v2327 = vpack.c.b16 %v2270, %v2269
        %v2328 = vpack.c.b16 %v2272, %v2271
        %v2329 = vpack.c.b16 %v2274, %v2273
        %v2330 = vpack.c.b16 %v2276, %v2275
        %v2331 = vpack.c.b16 %v2278, %v2277
        %v2332 = vpack.c.b16 %v2280, %v2279
        %v2333 = vpack.c.b16 %v2282, %v2281
        %v2334 = vpack.c.b16 %v2284, %v2283
        %v2335 = vpack.c.b16 %v2286, %v2285
        %v2336 = vpack.c.b16 %v2288, %v2287
        %v2337 = vpack.c.b16 %v2290, %v2289
        %v2338 = vpack.c.b16 %v2292, %v2291
        %v2339 = vpack.c.b16 %v2294, %v2293
        %v2340 = vpack.c.b16 %v2296, %v2295
        %v2341 = vpack.c.b16 %v2298, %v2297
        %v2342 = vpack.c.b16 %v2300, %v2299
        %v2343 = vpack.c.b16 %v2302, %v2301
        %v2344 = vpack.c.b16 %v2304, %v2303
        %v2345 = vpack.c.b16 %v2306, %v2305
        %v2346 = vpack.c.b16 %v2308, %v2307
        %v2347 = vpack.c.b16 %v2310, %v2309
        %v2348 = vpack.c.b16 %v2312, %v2311
        %v2386 = vsel %vm278, %v1825, 0
        %v2389 = vsel %vm278, %v1826, 0
        %v2392 = vsel %vm278, %v1827, 0
        %v2395 = vsel %vm278, %v1828, 0
        %v2398 = vsel %vm278, %v1829, 0
        %v2401 = vsel %vm278, %v1830, 0
        %v2404 = vsel %vm278, %v1831, 0
        %v2407 = vsel %vm278, %v1832, 0
        %v2410 = vsel %vm278, %v1833, 0
        %v2413 = vsel %vm278, %v1834, 0
        %v2416 = vsel %vm278, %v1835, 0
        %v2419 = vsel %vm278, %v1836, 0
        %v2422 = vsel %vm278, %v1837, 0
        %v2425 = vsel %vm278, %v1838, 0
        %v2428 = vsel %vm278, %v1839, 0
        %v2431 = vsel %vm278, %v1840, 0
        %2433 = vmatpush.bf16.msra.mxu0 %v2320
        %2434 = vmatpush.bf16.msra.mxu0 %v2319
        %2435 = vmatpush.bf16.msra.mxu0 %v2318
        %2436 = vmatpush.bf16.msra.mxu0 %v2317
        %2437 = vmatpush.bf16.msra.mxu0 %v2316
        %2438 = vmatpush.bf16.msra.mxu0 %v2315
        %2439 = vmatpush.bf16.msra.mxu0 %v2314
        %2440 = vmatpush.bf16.msra.mxu0 %v2313
        %2441 = vmatmul.bf16.gmra.mxu0 %v1843
        %v2442 = vpop.f32.mrf.mxu0
        %v2443 = vadd.f32 0.0, %v2442
        %v2444 = vpop.f32.mrf.mxu0
        %v2445 = vadd.f32 0.0, %v2444
        %2446 = vmatmul.bf16.gmra.mxu0 %v1847
        %v2447 = vpop.f32.mrf.mxu0
        %v2448 = vadd.f32 0.0, %v2447
        %v2449 = vpop.f32.mrf.mxu0
        %v2450 = vadd.f32 0.0, %v2449
        %2451 = vmatmul.bf16.gmra.mxu0 %v1851
        %v2452 = vpop.f32.mrf.mxu0
        %v2453 = vadd.f32 0.0, %v2452
        %v2454 = vpop.f32.mrf.mxu0
        %v2455 = vadd.f32 0.0, %v2454
        %2456 = vmatmul.bf16.gmra.mxu0 %v1855
        %v2457 = vpop.f32.mrf.mxu0
        %v2458 = vadd.f32 0.0, %v2457
        %v2459 = vpop.f32.mrf.mxu0
        %v2460 = vadd.f32 0.0, %v2459
        %2461 = vmatmul.bf16.gmra.mxu0 %v1859
        %v2462 = vpop.f32.mrf.mxu0
        %v2463 = vadd.f32 0.0, %v2462
        %v2464 = vpop.f32.mrf.mxu0
        %v2465 = vadd.f32 0.0, %v2464
        %2466 = vmatmul.bf16.gmra.mxu0 %v1863
        %v2467 = vpop.f32.mrf.mxu0
        %v2468 = vadd.f32 0.0, %v2467
        %v2469 = vpop.f32.mrf.mxu0
        %v2470 = vadd.f32 0.0, %v2469
        %2471 = vmatmul.bf16.gmra.mxu0 %v1867
        %v2472 = vpop.f32.mrf.mxu0
        %v2473 = vadd.f32 0.0, %v2472
        %v2474 = vpop.f32.mrf.mxu0
        %v2475 = vadd.f32 0.0, %v2474
        %2476 = vmatmul.bf16.gmra.mxu0 %v1871
        %v2477 = vpop.f32.mrf.mxu0
        %v2478 = vadd.f32 0.0, %v2477
        %v2479 = vpop.f32.mrf.mxu0
        %v2480 = vadd.f32 0.0, %v2479
        %2481 = vmatmul.bf16.gmra.mxu0 %v1875
        %v2482 = vpop.f32.mrf.mxu0
        %v2483 = vadd.f32 0.0, %v2482
        %v2484 = vpop.f32.mrf.mxu0
        %v2485 = vadd.f32 0.0, %v2484
        %2486 = vmatmul.bf16.gmra.mxu0 %v1879
        %v2487 = vpop.f32.mrf.mxu0
        %v2488 = vadd.f32 0.0, %v2487
        %v2489 = vpop.f32.mrf.mxu0
        %v2490 = vadd.f32 0.0, %v2489
        %2491 = vmatmul.bf16.gmra.mxu0 %v1883
        %v2492 = vpop.f32.mrf.mxu0
        %v2493 = vadd.f32 0.0, %v2492
        %v2494 = vpop.f32.mrf.mxu0
        %v2495 = vadd.f32 0.0, %v2494
        %2496 = vmatmul.bf16.gmra.mxu0 %v1887
        %v2497 = vpop.f32.mrf.mxu0
        %v2498 = vadd.f32 0.0, %v2497
        %v2499 = vpop.f32.mrf.mxu0
        %v2500 = vadd.f32 0.0, %v2499
        %2501 = vmatmul.bf16.gmra.mxu0 %v1891
        %v2502 = vpop.f32.mrf.mxu0
        %v2503 = vadd.f32 0.0, %v2502
        %v2504 = vpop.f32.mrf.mxu0
        %v2505 = vadd.f32 0.0, %v2504
        %2506 = vmatmul.bf16.gmra.mxu0 %v1895
        %v2507 = vpop.f32.mrf.mxu0
        %v2508 = vadd.f32 0.0, %v2507
        %v2509 = vpop.f32.mrf.mxu0
        %v2510 = vadd.f32 0.0, %v2509
        %2511 = vmatmul.bf16.gmra.mxu0 %v1899
        %v2512 = vpop.f32.mrf.mxu0
        %v2513 = vadd.f32 0.0, %v2512
        %v2514 = vpop.f32.mrf.mxu0
        %v2515 = vadd.f32 0.0, %v2514
        %2516 = vmatmul.bf16.gmra.mxu0 %v1903
        %v2517 = vpop.f32.mrf.mxu0
        %v2518 = vadd.f32 0.0, %v2517
        %v2519 = vpop.f32.mrf.mxu0
        %v2520 = vadd.f32 0.0, %v2519
        %2521 = vdwg.mxu0
        %2522 = vmatpush.bf16.msra.mxu0 %v2328
        %2523 = vmatpush.bf16.msra.mxu0 %v2327
        %2524 = vmatpush.bf16.msra.mxu0 %v2326
        %2525 = vmatpush.bf16.msra.mxu0 %v2325
        %2526 = vmatpush.bf16.msra.mxu0 %v2324
        %2527 = vmatpush.bf16.msra.mxu0 %v2323
        %2528 = vmatpush.bf16.msra.mxu0 %v2322
        %2529 = vmatpush.bf16.msra.mxu0 %v2321
        %2530 = vmatmul.bf16.gmra.mxu0 %v1907
        %v2531 = vpop.f32.mrf.mxu0
        %v2532 = vadd.f32 %v2443, %v2531
        %v2533 = vpop.f32.mrf.mxu0
        %v2534 = vadd.f32 %v2445, %v2533
        %2535 = vmatmul.bf16.gmra.mxu0 %v1911
        %v2536 = vpop.f32.mrf.mxu0
        %v2537 = vadd.f32 %v2448, %v2536
        %v2538 = vpop.f32.mrf.mxu0
        %v2539 = vadd.f32 %v2450, %v2538
        %2540 = vmatmul.bf16.gmra.mxu0 %v1915
        %v2541 = vpop.f32.mrf.mxu0
        %v2542 = vadd.f32 %v2453, %v2541
        %v2543 = vpop.f32.mrf.mxu0
        %v2544 = vadd.f32 %v2455, %v2543
        %2545 = vmatmul.bf16.gmra.mxu0 %v1919
        %v2546 = vpop.f32.mrf.mxu0
        %v2547 = vadd.f32 %v2458, %v2546
        %v2548 = vpop.f32.mrf.mxu0
        %v2549 = vadd.f32 %v2460, %v2548
        %2550 = vmatmul.bf16.gmra.mxu0 %v1923
        %v2551 = vpop.f32.mrf.mxu0
        %v2552 = vadd.f32 %v2463, %v2551
        %v2553 = vpop.f32.mrf.mxu0
        %v2554 = vadd.f32 %v2465, %v2553
        %2555 = vmatmul.bf16.gmra.mxu0 %v1927
        %v2556 = vpop.f32.mrf.mxu0
        %v2557 = vadd.f32 %v2468, %v2556
        %v2558 = vpop.f32.mrf.mxu0
        %v2559 = vadd.f32 %v2470, %v2558
        %2560 = vmatmul.bf16.gmra.mxu0 %v1931
        %v2561 = vpop.f32.mrf.mxu0
        %v2562 = vadd.f32 %v2473, %v2561
        %v2563 = vpop.f32.mrf.mxu0
        %v2564 = vadd.f32 %v2475, %v2563
        %2565 = vmatmul.bf16.gmra.mxu0 %v1935
        %v2566 = vpop.f32.mrf.mxu0
        %v2567 = vadd.f32 %v2478, %v2566
        %v2568 = vpop.f32.mrf.mxu0
        %v2569 = vadd.f32 %v2480, %v2568
        %2570 = vmatmul.bf16.gmra.mxu0 %v1939
        %v2571 = vpop.f32.mrf.mxu0
        %v2572 = vadd.f32 %v2483, %v2571
        %v2573 = vpop.f32.mrf.mxu0
        %v2574 = vadd.f32 %v2485, %v2573
        %2575 = vmatmul.bf16.gmra.mxu0 %v1943
        %v2576 = vpop.f32.mrf.mxu0
        %v2577 = vadd.f32 %v2488, %v2576
        %v2578 = vpop.f32.mrf.mxu0
        %v2579 = vadd.f32 %v2490, %v2578
        %2580 = vmatmul.bf16.gmra.mxu0 %v1947
        %v2581 = vpop.f32.mrf.mxu0
        %v2582 = vadd.f32 %v2493, %v2581
        %v2583 = vpop.f32.mrf.mxu0
        %v2584 = vadd.f32 %v2495, %v2583
        %2585 = vmatmul.bf16.gmra.mxu0 %v1951
        %v2586 = vpop.f32.mrf.mxu0
        %v2587 = vadd.f32 %v2498, %v2586
        %v2588 = vpop.f32.mrf.mxu0
        %v2589 = vadd.f32 %v2500, %v2588
        %2590 = vmatmul.bf16.gmra.mxu0 %v1955
        %v2591 = vpop.f32.mrf.mxu0
        %v2592 = vadd.f32 %v2503, %v2591
        %v2593 = vpop.f32.mrf.mxu0
        %v2594 = vadd.f32 %v2505, %v2593
        %2595 = vmatmul.bf16.gmra.mxu0 %v1959
        %v2596 = vpop.f32.mrf.mxu0
        %v2597 = vadd.f32 %v2508, %v2596
        %v2598 = vpop.f32.mrf.mxu0
        %v2599 = vadd.f32 %v2510, %v2598
        %2600 = vmatmul.bf16.gmra.mxu0 %v1963
        %v2601 = vpop.f32.mrf.mxu0
        %v2602 = vadd.f32 %v2513, %v2601
        %v2603 = vpop.f32.mrf.mxu0
        %v2604 = vadd.f32 %v2515, %v2603
        %2605 = vmatmul.bf16.gmra.mxu0 %v1967
        %v2606 = vpop.f32.mrf.mxu0
        %v2607 = vadd.f32 %v2518, %v2606
        %v2608 = vpop.f32.mrf.mxu0
        %v2609 = vadd.f32 %v2520, %v2608
        %2610 = vdwg.mxu0
        %2611 = vmatpush.bf16.msra.mxu0 %v2336
        %2612 = vmatpush.bf16.msra.mxu0 %v2335
        %2613 = vmatpush.bf16.msra.mxu0 %v2334
        %2614 = vmatpush.bf16.msra.mxu0 %v2333
        %2615 = vmatpush.bf16.msra.mxu0 %v2332
        %2616 = vmatpush.bf16.msra.mxu0 %v2331
        %2617 = vmatpush.bf16.msra.mxu0 %v2330
        %2618 = vmatpush.bf16.msra.mxu0 %v2329
        %2619 = vmatmul.bf16.gmra.mxu0 %v1971
        %v2620 = vpop.f32.mrf.mxu0
        %v2621 = vadd.f32 %v2532, %v2620
        %v2622 = vpop.f32.mrf.mxu0
        %v2623 = vadd.f32 %v2534, %v2622
        %2624 = vmatmul.bf16.gmra.mxu0 %v1975
        %v2625 = vpop.f32.mrf.mxu0
        %v2626 = vadd.f32 %v2537, %v2625
        %v2627 = vpop.f32.mrf.mxu0
        %v2628 = vadd.f32 %v2539, %v2627
        %2629 = vmatmul.bf16.gmra.mxu0 %v1979
        %v2630 = vpop.f32.mrf.mxu0
        %v2631 = vadd.f32 %v2542, %v2630
        %v2632 = vpop.f32.mrf.mxu0
        %v2633 = vadd.f32 %v2544, %v2632
        %2634 = vmatmul.bf16.gmra.mxu0 %v1983
        %v2635 = vpop.f32.mrf.mxu0
        %v2636 = vadd.f32 %v2547, %v2635
        %v2637 = vpop.f32.mrf.mxu0
        %v2638 = vadd.f32 %v2549, %v2637
        %2639 = vmatmul.bf16.gmra.mxu0 %v1987
        %v2640 = vpop.f32.mrf.mxu0
        %v2641 = vadd.f32 %v2552, %v2640
        %v2642 = vpop.f32.mrf.mxu0
        %v2643 = vadd.f32 %v2554, %v2642
        %2644 = vmatmul.bf16.gmra.mxu0 %v1991
        %v2645 = vpop.f32.mrf.mxu0
        %v2646 = vadd.f32 %v2557, %v2645
        %v2647 = vpop.f32.mrf.mxu0
        %v2648 = vadd.f32 %v2559, %v2647
        %2649 = vmatmul.bf16.gmra.mxu0 %v1995
        %v2650 = vpop.f32.mrf.mxu0
        %v2651 = vadd.f32 %v2562, %v2650
        %v2652 = vpop.f32.mrf.mxu0
        %v2653 = vadd.f32 %v2564, %v2652
        %2654 = vmatmul.bf16.gmra.mxu0 %v1999
        %v2655 = vpop.f32.mrf.mxu0
        %v2656 = vadd.f32 %v2567, %v2655
        %v2657 = vpop.f32.mrf.mxu0
        %v2658 = vadd.f32 %v2569, %v2657
        %2659 = vmatmul.bf16.gmra.mxu0 %v2003
        %v2660 = vpop.f32.mrf.mxu0
        %v2661 = vadd.f32 %v2572, %v2660
        %v2662 = vpop.f32.mrf.mxu0
        %v2663 = vadd.f32 %v2574, %v2662
        %2664 = vmatmul.bf16.gmra.mxu0 %v2007
        %v2665 = vpop.f32.mrf.mxu0
        %v2666 = vadd.f32 %v2577, %v2665
        %v2667 = vpop.f32.mrf.mxu0
        %v2668 = vadd.f32 %v2579, %v2667
        %2669 = vmatmul.bf16.gmra.mxu0 %v2011
        %v2670 = vpop.f32.mrf.mxu0
        %v2671 = vadd.f32 %v2582, %v2670
        %v2672 = vpop.f32.mrf.mxu0
        %v2673 = vadd.f32 %v2584, %v2672
        %2674 = vmatmul.bf16.gmra.mxu0 %v2015
        %v2675 = vpop.f32.mrf.mxu0
        %v2676 = vadd.f32 %v2587, %v2675
        %v2677 = vpop.f32.mrf.mxu0
        %v2678 = vadd.f32 %v2589, %v2677
        %2679 = vmatmul.bf16.gmra.mxu0 %v2019
        %v2680 = vpop.f32.mrf.mxu0
        %v2681 = vadd.f32 %v2592, %v2680
        %v2682 = vpop.f32.mrf.mxu0
        %v2683 = vadd.f32 %v2594, %v2682
        %2684 = vmatmul.bf16.gmra.mxu0 %v2023
        %v2685 = vpop.f32.mrf.mxu0
        %v2686 = vadd.f32 %v2597, %v2685
        %v2687 = vpop.f32.mrf.mxu0
        %v2688 = vadd.f32 %v2599, %v2687
        %2689 = vmatmul.bf16.gmra.mxu0 %v2027
        %v2690 = vpop.f32.mrf.mxu0
        %v2691 = vadd.f32 %v2602, %v2690
        %v2692 = vpop.f32.mrf.mxu0
        %v2693 = vadd.f32 %v2604, %v2692
        %2694 = vmatmul.bf16.gmra.mxu0 %v2031
        %v2695 = vpop.f32.mrf.mxu0
        %v2696 = vadd.f32 %v2607, %v2695
        %v2697 = vpop.f32.mrf.mxu0
        %v2698 = vadd.f32 %v2609, %v2697
        %2699 = vdwg.mxu0
        %2700 = vmatpush.bf16.msra.mxu0 %v2344
        %2701 = vmatpush.bf16.msra.mxu0 %v2343
        %2702 = vmatpush.bf16.msra.mxu0 %v2342
        %2703 = vmatpush.bf16.msra.mxu0 %v2341
        %2704 = vmatpush.bf16.msra.mxu0 %v2340
        %2705 = vmatpush.bf16.msra.mxu0 %v2339
        %2706 = vmatpush.bf16.msra.mxu0 %v2338
        %2707 = vmatpush.bf16.msra.mxu0 %v2337
        %2708 = vmatmul.bf16.gmra.mxu0 %v2035
        %v2709 = vpop.f32.mrf.mxu0
        %v2710 = vadd.f32 %v2621, %v2709
        %v2711 = vpop.f32.mrf.mxu0
        %v2712 = vadd.f32 %v2623, %v2711
        %2713 = vmatmul.bf16.gmra.mxu0 %v2039
        %v2714 = vpop.f32.mrf.mxu0
        %v2715 = vadd.f32 %v2626, %v2714
        %v2716 = vpop.f32.mrf.mxu0
        %v2717 = vadd.f32 %v2628, %v2716
        %2718 = vmatmul.bf16.gmra.mxu0 %v2043
        %v2719 = vpop.f32.mrf.mxu0
        %v2720 = vadd.f32 %v2631, %v2719
        %v2721 = vpop.f32.mrf.mxu0
        %v2722 = vadd.f32 %v2633, %v2721
        %2723 = vmatmul.bf16.gmra.mxu0 %v2047
        %v2724 = vpop.f32.mrf.mxu0
        %v2725 = vadd.f32 %v2636, %v2724
        %v2726 = vpop.f32.mrf.mxu0
        %v2727 = vadd.f32 %v2638, %v2726
        %2728 = vmatmul.bf16.gmra.mxu0 %v2051
        %v2729 = vpop.f32.mrf.mxu0
        %v2730 = vadd.f32 %v2641, %v2729
        %v2731 = vpop.f32.mrf.mxu0
        %v2732 = vadd.f32 %v2643, %v2731
        %2733 = vmatmul.bf16.gmra.mxu0 %v2055
        %v2734 = vpop.f32.mrf.mxu0
        %v2735 = vadd.f32 %v2646, %v2734
        %v2736 = vpop.f32.mrf.mxu0
        %v2737 = vadd.f32 %v2648, %v2736
        %2738 = vmatmul.bf16.gmra.mxu0 %v2059
        %v2739 = vpop.f32.mrf.mxu0
        %v2740 = vadd.f32 %v2651, %v2739
        %v2741 = vpop.f32.mrf.mxu0
        %v2742 = vadd.f32 %v2653, %v2741
        %2743 = vmatmul.bf16.gmra.mxu0 %v2063
        %v2744 = vpop.f32.mrf.mxu0
        %v2745 = vadd.f32 %v2656, %v2744
        %v2746 = vpop.f32.mrf.mxu0
        %v2747 = vadd.f32 %v2658, %v2746
        %2748 = vmatmul.bf16.gmra.mxu0 %v2067
        %v2749 = vpop.f32.mrf.mxu0
        %v2750 = vadd.f32 %v2661, %v2749
        %v2751 = vpop.f32.mrf.mxu0
        %v2752 = vadd.f32 %v2663, %v2751
        %2753 = vmatmul.bf16.gmra.mxu0 %v2071
        %v2754 = vpop.f32.mrf.mxu0
        %v2755 = vadd.f32 %v2666, %v2754
        %v2756 = vpop.f32.mrf.mxu0
        %v2757 = vadd.f32 %v2668, %v2756
        %2758 = vmatmul.bf16.gmra.mxu0 %v2075
        %v2759 = vpop.f32.mrf.mxu0
        %v2760 = vadd.f32 %v2671, %v2759
        %v2761 = vpop.f32.mrf.mxu0
        %v2762 = vadd.f32 %v2673, %v2761
        %2763 = vmatmul.bf16.gmra.mxu0 %v2079
        %v2764 = vpop.f32.mrf.mxu0
        %v2765 = vadd.f32 %v2676, %v2764
        %v2766 = vpop.f32.mrf.mxu0
        %v2767 = vadd.f32 %v2678, %v2766
        %2768 = vmatmul.bf16.gmra.mxu0 %v2083
        %v2769 = vpop.f32.mrf.mxu0
        %v2770 = vadd.f32 %v2681, %v2769
        %v2771 = vpop.f32.mrf.mxu0
        %v2772 = vadd.f32 %v2683, %v2771
        %2773 = vmatmul.bf16.gmra.mxu0 %v2087
        %v2774 = vpop.f32.mrf.mxu0
        %v2775 = vadd.f32 %v2686, %v2774
        %v2776 = vpop.f32.mrf.mxu0
        %v2777 = vadd.f32 %v2688, %v2776
        %2778 = vmatmul.bf16.gmra.mxu0 %v2091
        %v2779 = vpop.f32.mrf.mxu0
        %v2780 = vadd.f32 %v2691, %v2779
        %v2781 = vpop.f32.mrf.mxu0
        %v2782 = vadd.f32 %v2693, %v2781
        %2783 = vmatmul.bf16.gmra.mxu0 %v2095
        %v2784 = vpop.f32.mrf.mxu0
        %v2785 = vadd.f32 %v2696, %v2784
        %v2786 = vpop.f32.mrf.mxu0
        %v2787 = vadd.f32 %v2698, %v2786
        %2788 = vdwg.mxu0
        %2789 = vmatpush.bf16.msra.mxu0 0
        %2790 = vmatpush.bf16.msra.mxu0 0
        %2791 = vmatpush.bf16.msra.mxu0 0
        %2792 = vmatpush.bf16.msra.mxu0 0
        %2793 = vmatpush.bf16.msra.mxu0 %v2348
        %2794 = vmatpush.bf16.msra.mxu0 %v2347
        %2795 = vmatpush.bf16.msra.mxu0 %v2346
        %2796 = vmatpush.bf16.msra.mxu0 %v2345
        %2797 = vmatmul.bf16.gmra.mxu0 %v2386
        %v2798 = vpop.f32.mrf.mxu0
        %v2799 = vadd.f32 %v2710, %v2798
        %v2800 = vpop.f32.mrf.mxu0
        %v2801 = vadd.f32 %v2712, %v2800
        %2802 = vmatmul.bf16.gmra.mxu0 %v2389
        %v2803 = vpop.f32.mrf.mxu0
        %v2804 = vadd.f32 %v2715, %v2803
        %v2805 = vpop.f32.mrf.mxu0
        %v2806 = vadd.f32 %v2717, %v2805
        %2807 = vmatmul.bf16.gmra.mxu0 %v2392
        %v2808 = vpop.f32.mrf.mxu0
        %v2809 = vadd.f32 %v2720, %v2808
        %v2810 = vpop.f32.mrf.mxu0
        %v2811 = vadd.f32 %v2722, %v2810
        %2812 = vmatmul.bf16.gmra.mxu0 %v2395
        %v2813 = vpop.f32.mrf.mxu0
        %v2814 = vadd.f32 %v2725, %v2813
        %v2815 = vpop.f32.mrf.mxu0
        %v2816 = vadd.f32 %v2727, %v2815
        %2817 = vmatmul.bf16.gmra.mxu0 %v2398
        %v2818 = vpop.f32.mrf.mxu0
        %v2819 = vadd.f32 %v2730, %v2818
        %v2820 = vpop.f32.mrf.mxu0
        %v2821 = vadd.f32 %v2732, %v2820
        %2822 = vmatmul.bf16.gmra.mxu0 %v2401
        %v2823 = vpop.f32.mrf.mxu0
        %v2824 = vadd.f32 %v2735, %v2823
        %v2825 = vpop.f32.mrf.mxu0
        %v2826 = vadd.f32 %v2737, %v2825
        %2827 = vmatmul.bf16.gmra.mxu0 %v2404
        %v2828 = vpop.f32.mrf.mxu0
        %v2829 = vadd.f32 %v2740, %v2828
        %v2830 = vpop.f32.mrf.mxu0
        %v2831 = vadd.f32 %v2742, %v2830
        %2832 = vmatmul.bf16.gmra.mxu0 %v2407
        %v2833 = vpop.f32.mrf.mxu0
        %v2834 = vadd.f32 %v2745, %v2833
        %v2835 = vpop.f32.mrf.mxu0
        %v2836 = vadd.f32 %v2747, %v2835
        %2837 = vmatmul.bf16.gmra.mxu0 %v2410
        %v2838 = vpop.f32.mrf.mxu0
        %v2839 = vadd.f32 %v2750, %v2838
        %v2840 = vpop.f32.mrf.mxu0
        %v2841 = vadd.f32 %v2752, %v2840
        %2842 = vmatmul.bf16.gmra.mxu0 %v2413
        %v2843 = vpop.f32.mrf.mxu0
        %v2844 = vadd.f32 %v2755, %v2843
        %v2845 = vpop.f32.mrf.mxu0
        %v2846 = vadd.f32 %v2757, %v2845
        %2847 = vmatmul.bf16.gmra.mxu0 %v2416
        %v2848 = vpop.f32.mrf.mxu0
        %v2849 = vadd.f32 %v2760, %v2848
        %v2850 = vpop.f32.mrf.mxu0
        %v2851 = vadd.f32 %v2762, %v2850
        %2852 = vmatmul.bf16.gmra.mxu0 %v2419
        %v2853 = vpop.f32.mrf.mxu0
        %v2854 = vadd.f32 %v2765, %v2853
        %v2855 = vpop.f32.mrf.mxu0
        %v2856 = vadd.f32 %v2767, %v2855
        %2857 = vmatmul.bf16.gmra.mxu0 %v2422
        %v2858 = vpop.f32.mrf.mxu0
        %v2859 = vadd.f32 %v2770, %v2858
        %v2860 = vpop.f32.mrf.mxu0
        %v2861 = vadd.f32 %v2772, %v2860
        %2862 = vmatmul.bf16.gmra.mxu0 %v2425
        %v2863 = vpop.f32.mrf.mxu0
        %v2864 = vadd.f32 %v2775, %v2863
        %v2865 = vpop.f32.mrf.mxu0
        %v2866 = vadd.f32 %v2777, %v2865
        %2867 = vmatmul.bf16.gmra.mxu0 %v2428
        %v2868 = vpop.f32.mrf.mxu0
        %v2869 = vadd.f32 %v2780, %v2868
        %v2870 = vpop.f32.mrf.mxu0
        %v2871 = vadd.f32 %v2782, %v2870
        %2872 = vmatmul.bf16.gmra.mxu0 %v2431
        %v2873 = vpop.f32.mrf.mxu0
        %v2874 = vadd.f32 %v2785, %v2873
        %v2875 = vpop.f32.mrf.mxu0
        %v2876 = vadd.f32 %v2787, %v2875
        %2877 = vdwg.mxu0
        %v2878 = vld [vmem:[%s2] sm:$0x1]
        %v2880 = vperm.slane %v2878, 0
        %v2882 = vmul.f32 %v2799, %v2880
        %v2883 = vmul.f32 %v2801, %v2880
        %v2884 = vmul.f32 %v2804, %v2880
        %v2885 = vmul.f32 %v2806, %v2880
        %v2886 = vmul.f32 %v2809, %v2880
        %v2887 = vmul.f32 %v2811, %v2880
        %v2888 = vmul.f32 %v2814, %v2880
        %v2889 = vmul.f32 %v2816, %v2880
        %v2890 = vmul.f32 %v2819, %v2880
        %v2891 = vmul.f32 %v2821, %v2880
        %v2892 = vmul.f32 %v2824, %v2880
        %v2893 = vmul.f32 %v2826, %v2880
        %v2894 = vmul.f32 %v2829, %v2880
        %v2895 = vmul.f32 %v2831, %v2880
        %v2896 = vmul.f32 %v2834, %v2880
        %v2897 = vmul.f32 %v2836, %v2880
        %v2898 = vmul.f32 %v2839, %v2880
        %v2899 = vmul.f32 %v2841, %v2880
        %v2900 = vmul.f32 %v2844, %v2880
        %v2901 = vmul.f32 %v2846, %v2880
        %v2902 = vmul.f32 %v2849, %v2880
        %v2903 = vmul.f32 %v2851, %v2880
        %v2904 = vmul.f32 %v2854, %v2880
        %v2905 = vmul.f32 %v2856, %v2880
        %v2906 = vmul.f32 %v2859, %v2880
        %v2907 = vmul.f32 %v2861, %v2880
        %v2908 = vmul.f32 %v2864, %v2880
        %v2909 = vmul.f32 %v2866, %v2880
        %v2910 = vmul.f32 %v2869, %v2880
        %v2911 = vmul.f32 %v2871, %v2880
        %v2912 = vmul.f32 %v2874, %v2880
        %v2913 = vmul.f32 %v2876, %v2880
        %v2914 = vld [vmem:[%s3] sm:$0x1]
        %v2916 = vperm.slane %v2914, 0
        %v2918 = vadd.f32 %v2882, %v2916
        %v2919 = vadd.f32 %v2883, %v2916
        %v2920 = vadd.f32 %v2884, %v2916
        %v2921 = vadd.f32 %v2885, %v2916
        %v2922 = vadd.f32 %v2886, %v2916
        %v2923 = vadd.f32 %v2887, %v2916
        %v2924 = vadd.f32 %v2888, %v2916
        %v2925 = vadd.f32 %v2889, %v2916
        %v2926 = vadd.f32 %v2890, %v2916
        %v2927 = vadd.f32 %v2891, %v2916
        %v2928 = vadd.f32 %v2892, %v2916
        %v2929 = vadd.f32 %v2893, %v2916
        %v2930 = vadd.f32 %v2894, %v2916
        %v2931 = vadd.f32 %v2895, %v2916
        %v2932 = vadd.f32 %v2896, %v2916
        %v2933 = vadd.f32 %v2897, %v2916
        %v2934 = vadd.f32 %v2898, %v2916
        %v2935 = vadd.f32 %v2899, %v2916
        %v2936 = vadd.f32 %v2900, %v2916
        %v2937 = vadd.f32 %v2901, %v2916
        %v2938 = vadd.f32 %v2902, %v2916
        %v2939 = vadd.f32 %v2903, %v2916
        %v2940 = vadd.f32 %v2904, %v2916
        %v2941 = vadd.f32 %v2905, %v2916
        %v2942 = vadd.f32 %v2906, %v2916
        %v2943 = vadd.f32 %v2907, %v2916
        %v2944 = vadd.f32 %v2908, %v2916
        %v2945 = vadd.f32 %v2909, %v2916
        %v2946 = vadd.f32 %v2910, %v2916
        %v2947 = vadd.f32 %v2911, %v2916
        %v2948 = vadd.f32 %v2912, %v2916
        %v2949 = vadd.f32 %v2913, %v2916
        %v2950 = vmax.f32 %v2918, 0.0
        %v2951 = vmax.f32 %v2919, 0.0
        %v2952 = vmax.f32 %v2920, 0.0
        %v2953 = vmax.f32 %v2921, 0.0
        %v2954 = vmax.f32 %v2922, 0.0
        %v2955 = vmax.f32 %v2923, 0.0
        %v2956 = vmax.f32 %v2924, 0.0
        %v2957 = vmax.f32 %v2925, 0.0
        %v2958 = vmax.f32 %v2926, 0.0
        %v2959 = vmax.f32 %v2927, 0.0
        %v2960 = vmax.f32 %v2928, 0.0
        %v2961 = vmax.f32 %v2929, 0.0
        %v2962 = vmax.f32 %v2930, 0.0
        %v2963 = vmax.f32 %v2931, 0.0
        %v2964 = vmax.f32 %v2932, 0.0
        %v2965 = vmax.f32 %v2933, 0.0
        %v2966 = vmax.f32 %v2934, 0.0
        %v2967 = vmax.f32 %v2935, 0.0
        %v2968 = vmax.f32 %v2936, 0.0
        %v2969 = vmax.f32 %v2937, 0.0
        %v2970 = vmax.f32 %v2938, 0.0
        %v2971 = vmax.f32 %v2939, 0.0
        %v2972 = vmax.f32 %v2940, 0.0
        %v2973 = vmax.f32 %v2941, 0.0
        %v2974 = vmax.f32 %v2942, 0.0
        %v2975 = vmax.f32 %v2943, 0.0
        %v2976 = vmax.f32 %v2944, 0.0
        %v2977 = vmax.f32 %v2945, 0.0
        %v2978 = vmax.f32 %v2946, 0.0
        %v2979 = vmax.f32 %v2947, 0.0
        %v2980 = vmax.f32 %v2948, 0.0
        %v2981 = vmax.f32 %v2949, 0.0
        %2982 = vst.msk [vmem:[%s383 + $0x8] sm:$0xff] %vm278, %v2950
        %2983 = vst.msk [vmem:[%s383 + $0x10] sm:$0xff] %vm278, %v2951
        %2984 = vst.msk [vmem:[%s383 + $0x28] sm:$0xff] %vm278, %v2952
        %2985 = vst.msk [vmem:[%s383 + $0x30] sm:$0xff] %vm278, %v2953
        %2986 = vst.msk [vmem:[%s383 + $0x48] sm:$0xff] %vm278, %v2954
        %2987 = vst.msk [vmem:[%s383 + $0x50] sm:$0xff] %vm278, %v2955
        %2988 = vst.msk [vmem:[%s383 + $0x68] sm:$0xff] %vm278, %v2956
        %2989 = vst.msk [vmem:[%s383 + $0x70] sm:$0xff] %vm278, %v2957
        %2990 = vst.msk [vmem:[%s383 + $0x88] sm:$0xff] %vm278, %v2958
        %2991 = vst.msk [vmem:[%s383 + $0x90] sm:$0xff] %vm278, %v2959
        %2992 = vst.msk [vmem:[%s383 + $0xa8] sm:$0xff] %vm278, %v2960
        %2993 = vst.msk [vmem:[%s383 + $0xb0] sm:$0xff] %vm278, %v2961
        %2994 = vst.msk [vmem:[%s383 + $0xc8] sm:$0xff] %vm278, %v2962
        %2995 = vst.msk [vmem:[%s383 + $0xd0] sm:$0xff] %vm278, %v2963
        %2996 = vst.msk [vmem:[%s383 + $0xe8] sm:$0xff] %vm278, %v2964
        %2997 = vst.msk [vmem:[%s383 + $0xf0] sm:$0xff] %vm278, %v2965
        %2998 = vst.msk [vmem:[%s383 + $0x108] sm:$0xff] %vm278, %v2966
        %2999 = vst.msk [vmem:[%s383 + $0x110] sm:$0xff] %vm278, %v2967
        %3000 = vst.msk [vmem:[%s383 + $0x128] sm:$0xff] %vm278, %v2968
        %3001 = vst.msk [vmem:[%s383 + $0x130] sm:$0xff] %vm278, %v2969
        %3002 = vst.msk [vmem:[%s383 + $0x148] sm:$0xff] %vm278, %v2970
        %3003 = vst.msk [vmem:[%s383 + $0x150] sm:$0xff] %vm278, %v2971
        %3004 = vst.msk [vmem:[%s383 + $0x168] sm:$0xff] %vm278, %v2972
        %3005 = vst.msk [vmem:[%s383 + $0x170] sm:$0xff] %vm278, %v2973
        %3006 = vst.msk [vmem:[%s383 + $0x188] sm:$0xff] %vm278, %v2974
        %3007 = vst.msk [vmem:[%s383 + $0x190] sm:$0xff] %vm278, %v2975
        %3008 = vst.msk [vmem:[%s383 + $0x1a8] sm:$0xff] %vm278, %v2976
        %3009 = vst.msk [vmem:[%s383 + $0x1b0] sm:$0xff] %vm278, %v2977
        %3010 = vst.msk [vmem:[%s383 + $0x1c8] sm:$0xff] %vm278, %v2978
        %3011 = vst.msk [vmem:[%s383 + $0x1d0] sm:$0xff] %vm278, %v2979
        %3012 = vst.msk [vmem:[%s383 + $0x1e8] sm:$0xff] %vm278, %v2980
        %3013 = vst.msk [vmem:[%s383 + $0x1f0] sm:$0xff] %vm278, %v2981
        %v3014 = vld [vmem:[#allocation2 + $0x7] sm:$0xff]
        %v3015 = vld [vmem:[#allocation2 + $0xf] sm:$0xff]
        %v3016 = vld [vmem:[#allocation2 + $0x27] sm:$0xff]
        %v3017 = vld [vmem:[#allocation2 + $0x2f] sm:$0xff]
        %v3018 = vld [vmem:[#allocation2 + $0x47] sm:$0xff]
        %v3019 = vld [vmem:[#allocation2 + $0x4f] sm:$0xff]
        %v3020 = vld [vmem:[#allocation2 + $0x67] sm:$0xff]
        %v3021 = vld [vmem:[#allocation2 + $0x6f] sm:$0xff]
        %v3022 = vld [vmem:[#allocation2 + $0x87] sm:$0xff]
        %v3023 = vld [vmem:[#allocation2 + $0x8f] sm:$0xff]
        %v3024 = vld [vmem:[#allocation2 + $0xa7] sm:$0xff]
        %v3025 = vld [vmem:[#allocation2 + $0xaf] sm:$0xff]
        %v3026 = vld [vmem:[#allocation2 + $0xc7] sm:$0xff]
        %v3027 = vld [vmem:[#allocation2 + $0xcf] sm:$0xff]
        %v3028 = vld [vmem:[#allocation2 + $0xe7] sm:$0xff]
        %v3029 = vld [vmem:[#allocation2 + $0xef] sm:$0xff]
        %v3030 = vld [vmem:[#allocation2 + $0x107] sm:$0xff]
        %v3031 = vld [vmem:[#allocation2 + $0x10f] sm:$0xff]
        %v3032 = vld [vmem:[#allocation2 + $0x127] sm:$0xff]
        %v3033 = vld [vmem:[#allocation2 + $0x12f] sm:$0xff]
        %v3034 = vld [vmem:[#allocation2 + $0x147] sm:$0xff]
        %v3035 = vld [vmem:[#allocation2 + $0x14f] sm:$0xff]
        %v3036 = vld [vmem:[#allocation2 + $0x167] sm:$0xff]
        %v3037 = vld [vmem:[#allocation2 + $0x16f] sm:$0xff]
        %v3038 = vld [vmem:[#allocation2 + $0x187] sm:$0xff]
        %v3039 = vld [vmem:[#allocation2 + $0x18f] sm:$0xff]
        %v3040 = vld [vmem:[#allocation2 + $0x1a7] sm:$0xff]
        %v3041 = vld [vmem:[#allocation2 + $0x1af] sm:$0xff]
        %v3042 = vld [vmem:[#allocation2 + $0x1c7] sm:$0xff]
        %v3043 = vld [vmem:[#allocation2 + $0x1cf] sm:$0xff]
        %v3044 = vld [vmem:[#allocation2 + $0x1e7] sm:$0xff]
        %v3045 = vld [vmem:[#allocation2 + $0x1ef] sm:$0xff]
        %v3046 = vpack.c.bf16 %v3014, %v3014
        %v3047 = vpack.c.bf16 %v3015, %v3015
        %v3048 = vpack.c.bf16 %v3016, %v3016
        %v3049 = vpack.c.bf16 %v3017, %v3017
        %v3050 = vpack.c.bf16 %v3018, %v3018
        %v3051 = vpack.c.bf16 %v3019, %v3019
        %v3052 = vpack.c.bf16 %v3020, %v3020
        %v3053 = vpack.c.bf16 %v3021, %v3021
        %v3054 = vpack.c.bf16 %v3022, %v3022
        %v3055 = vpack.c.bf16 %v3023, %v3023
        %v3056 = vpack.c.bf16 %v3024, %v3024
        %v3057 = vpack.c.bf16 %v3025, %v3025
        %v3058 = vpack.c.bf16 %v3026, %v3026
        %v3059 = vpack.c.bf16 %v3027, %v3027
        %v3060 = vpack.c.bf16 %v3028, %v3028
        %v3061 = vpack.c.bf16 %v3029, %v3029
        %v3062 = vpack.c.bf16 %v3030, %v3030
        %v3063 = vpack.c.bf16 %v3031, %v3031
        %v3064 = vpack.c.bf16 %v3032, %v3032
        %v3065 = vpack.c.bf16 %v3033, %v3033
        %v3066 = vpack.c.bf16 %v3034, %v3034
        %v3067 = vpack.c.bf16 %v3035, %v3035
        %v3068 = vpack.c.bf16 %v3036, %v3036
        %v3069 = vpack.c.bf16 %v3037, %v3037
        %v3070 = vpack.c.bf16 %v3038, %v3038
        %v3071 = vpack.c.bf16 %v3039, %v3039
        %v3072 = vpack.c.bf16 %v3040, %v3040
        %v3073 = vpack.c.bf16 %v3041, %v3041
        %v3074 = vpack.c.bf16 %v3042, %v3042
        %v3075 = vpack.c.bf16 %v3043, %v3043
        %v3076 = vpack.c.bf16 %v3044, %v3044
        %v3077 = vpack.c.bf16 %v3045, %v3045
        %v3078 = vld [vmem:[#allocation2 + $0x8] sm:$0xff]
        %v3079 = vld [vmem:[#allocation2 + $0x10] sm:$0xff]
        %v3080 = vld [vmem:[#allocation2 + $0x28] sm:$0xff]
        %v3081 = vld [vmem:[#allocation2 + $0x30] sm:$0xff]
        %v3082 = vld [vmem:[#allocation2 + $0x48] sm:$0xff]
        %v3083 = vld [vmem:[#allocation2 + $0x50] sm:$0xff]
        %v3084 = vld [vmem:[#allocation2 + $0x68] sm:$0xff]
        %v3085 = vld [vmem:[#allocation2 + $0x70] sm:$0xff]
        %v3086 = vld [vmem:[#allocation2 + $0x88] sm:$0xff]
        %v3087 = vld [vmem:[#allocation2 + $0x90] sm:$0xff]
        %v3088 = vld [vmem:[#allocation2 + $0xa8] sm:$0xff]
        %v3089 = vld [vmem:[#allocation2 + $0xb0] sm:$0xff]
        %v3090 = vld [vmem:[#allocation2 + $0xc8] sm:$0xff]
        %v3091 = vld [vmem:[#allocation2 + $0xd0] sm:$0xff]
        %v3092 = vld [vmem:[#allocation2 + $0xe8] sm:$0xff]
        %v3093 = vld [vmem:[#allocation2 + $0xf0] sm:$0xff]
        %v3094 = vld [vmem:[#allocation2 + $0x108] sm:$0xff]
        %v3095 = vld [vmem:[#allocation2 + $0x110] sm:$0xff]
        %v3096 = vld [vmem:[#allocation2 + $0x128] sm:$0xff]
        %v3097 = vld [vmem:[#allocation2 + $0x130] sm:$0xff]
        %v3098 = vld [vmem:[#allocation2 + $0x148] sm:$0xff]
        %v3099 = vld [vmem:[#allocation2 + $0x150] sm:$0xff]
        %v3100 = vld [vmem:[#allocation2 + $0x168] sm:$0xff]
        %v3101 = vld [vmem:[#allocation2 + $0x170] sm:$0xff]
        %v3102 = vld [vmem:[#allocation2 + $0x188] sm:$0xff]
        %v3103 = vld [vmem:[#allocation2 + $0x190] sm:$0xff]
        %v3104 = vld [vmem:[#allocation2 + $0x1a8] sm:$0xff]
        %v3105 = vld [vmem:[#allocation2 + $0x1b0] sm:$0xff]
        %v3106 = vld [vmem:[#allocation2 + $0x1c8] sm:$0xff]
        %v3107 = vld [vmem:[#allocation2 + $0x1d0] sm:$0xff]
        %v3108 = vld [vmem:[#allocation2 + $0x1e8] sm:$0xff]
        %v3109 = vld [vmem:[#allocation2 + $0x1f0] sm:$0xff]
        %v3110 = vpack.c.bf16 %v3078, %v3078
        %v3111 = vpack.c.bf16 %v3079, %v3079
        %v3112 = vpack.c.bf16 %v3080, %v3080
        %v3113 = vpack.c.bf16 %v3081, %v3081
        %v3114 = vpack.c.bf16 %v3082, %v3082
        %v3115 = vpack.c.bf16 %v3083, %v3083
        %v3116 = vpack.c.bf16 %v3084, %v3084
        %v3117 = vpack.c.bf16 %v3085, %v3085
        %v3118 = vpack.c.bf16 %v3086, %v3086
        %v3119 = vpack.c.bf16 %v3087, %v3087
        %v3120 = vpack.c.bf16 %v3088, %v3088
        %v3121 = vpack.c.bf16 %v3089, %v3089
        %v3122 = vpack.c.bf16 %v3090, %v3090
        %v3123 = vpack.c.bf16 %v3091, %v3091
        %v3124 = vpack.c.bf16 %v3092, %v3092
        %v3125 = vpack.c.bf16 %v3093, %v3093
        %v3126 = vpack.c.bf16 %v3094, %v3094
        %v3127 = vpack.c.bf16 %v3095, %v3095
        %v3128 = vpack.c.bf16 %v3096, %v3096
        %v3129 = vpack.c.bf16 %v3097, %v3097
        %v3130 = vpack.c.bf16 %v3098, %v3098
        %v3131 = vpack.c.bf16 %v3099, %v3099
        %v3132 = vpack.c.bf16 %v3100, %v3100
        %v3133 = vpack.c.bf16 %v3101, %v3101
        %v3134 = vpack.c.bf16 %v3102, %v3102
        %v3135 = vpack.c.bf16 %v3103, %v3103
        %v3136 = vpack.c.bf16 %v3104, %v3104
        %v3137 = vpack.c.bf16 %v3105, %v3105
        %v3138 = vpack.c.bf16 %v3106, %v3106
        %v3139 = vpack.c.bf16 %v3107, %v3107
        %v3140 = vpack.c.bf16 %v3108, %v3108
        %v3141 = vpack.c.bf16 %v3109, %v3109
        %v3142 = vld [vmem:[#allocation2 + $0x9] sm:$0xff]
        %v3143 = vld [vmem:[#allocation2 + $0x11] sm:$0xff]
        %v3144 = vld [vmem:[#allocation2 + $0x29] sm:$0xff]
        %v3145 = vld [vmem:[#allocation2 + $0x31] sm:$0xff]
        %v3146 = vld [vmem:[#allocation2 + $0x49] sm:$0xff]
        %v3147 = vld [vmem:[#allocation2 + $0x51] sm:$0xff]
        %v3148 = vld [vmem:[#allocation2 + $0x69] sm:$0xff]
        %v3149 = vld [vmem:[#allocation2 + $0x71] sm:$0xff]
        %v3150 = vld [vmem:[#allocation2 + $0x89] sm:$0xff]
        %v3151 = vld [vmem:[#allocation2 + $0x91] sm:$0xff]
        %v3152 = vld [vmem:[#allocation2 + $0xa9] sm:$0xff]
        %v3153 = vld [vmem:[#allocation2 + $0xb1] sm:$0xff]
        %v3154 = vld [vmem:[#allocation2 + $0xc9] sm:$0xff]
        %v3155 = vld [vmem:[#allocation2 + $0xd1] sm:$0xff]
        %v3156 = vld [vmem:[#allocation2 + $0xe9] sm:$0xff]
        %v3157 = vld [vmem:[#allocation2 + $0xf1] sm:$0xff]
        %v3158 = vld [vmem:[#allocation2 + $0x109] sm:$0xff]
        %v3159 = vld [vmem:[#allocation2 + $0x111] sm:$0xff]
        %v3160 = vld [vmem:[#allocation2 + $0x129] sm:$0xff]
        %v3161 = vld [vmem:[#allocation2 + $0x131] sm:$0xff]
        %v3162 = vld [vmem:[#allocation2 + $0x149] sm:$0xff]
        %v3163 = vld [vmem:[#allocation2 + $0x151] sm:$0xff]
        %v3164 = vld [vmem:[#allocation2 + $0x169] sm:$0xff]
        %v3165 = vld [vmem:[#allocation2 + $0x171] sm:$0xff]
        %v3166 = vld [vmem:[#allocation2 + $0x189] sm:$0xff]
        %v3167 = vld [vmem:[#allocation2 + $0x191] sm:$0xff]
        %v3168 = vld [vmem:[#allocation2 + $0x1a9] sm:$0xff]
        %v3169 = vld [vmem:[#allocation2 + $0x1b1] sm:$0xff]
        %v3170 = vld [vmem:[#allocation2 + $0x1c9] sm:$0xff]
        %v3171 = vld [vmem:[#allocation2 + $0x1d1] sm:$0xff]
        %v3172 = vld [vmem:[#allocation2 + $0x1e9] sm:$0xff]
        %v3173 = vld [vmem:[#allocation2 + $0x1f1] sm:$0xff]
        %v3174 = vpack.c.bf16 %v3142, %v3142
        %v3175 = vpack.c.bf16 %v3143, %v3143
        %v3176 = vpack.c.bf16 %v3144, %v3144
        %v3177 = vpack.c.bf16 %v3145, %v3145
        %v3178 = vpack.c.bf16 %v3146, %v3146
        %v3179 = vpack.c.bf16 %v3147, %v3147
        %v3180 = vpack.c.bf16 %v3148, %v3148
        %v3181 = vpack.c.bf16 %v3149, %v3149
        %v3182 = vpack.c.bf16 %v3150, %v3150
        %v3183 = vpack.c.bf16 %v3151, %v3151
        %v3184 = vpack.c.bf16 %v3152, %v3152
        %v3185 = vpack.c.bf16 %v3153, %v3153
        %v3186 = vpack.c.bf16 %v3154, %v3154
        %v3187 = vpack.c.bf16 %v3155, %v3155
        %v3188 = vpack.c.bf16 %v3156, %v3156
        %v3189 = vpack.c.bf16 %v3157, %v3157
        %v3190 = vpack.c.bf16 %v3158, %v3158
        %v3191 = vpack.c.bf16 %v3159, %v3159
        %v3192 = vpack.c.bf16 %v3160, %v3160
        %v3193 = vpack.c.bf16 %v3161, %v3161
        %v3194 = vpack.c.bf16 %v3162, %v3162
        %v3195 = vpack.c.bf16 %v3163, %v3163
        %v3196 = vpack.c.bf16 %v3164, %v3164
        %v3197 = vpack.c.bf16 %v3165, %v3165
        %v3198 = vpack.c.bf16 %v3166, %v3166
        %v3199 = vpack.c.bf16 %v3167, %v3167
        %v3200 = vpack.c.bf16 %v3168, %v3168
        %v3201 = vpack.c.bf16 %v3169, %v3169
        %v3202 = vpack.c.bf16 %v3170, %v3170
        %v3203 = vpack.c.bf16 %v3171, %v3171
        %v3204 = vpack.c.bf16 %v3172, %v3172
        %v3205 = vpack.c.bf16 %v3173, %v3173
        %v3206 = vld [vmem:[%s383 + $0x7] sm:$0xff]
        %v3207 = vld [vmem:[%s383 + $0xf] sm:$0xff]
        %v3208 = vld [vmem:[%s383 + $0x27] sm:$0xff]
        %v3209 = vld [vmem:[%s383 + $0x2f] sm:$0xff]
        %v3210 = vld [vmem:[%s383 + $0x47] sm:$0xff]
        %v3211 = vld [vmem:[%s383 + $0x4f] sm:$0xff]
        %v3212 = vld [vmem:[%s383 + $0x67] sm:$0xff]
        %v3213 = vld [vmem:[%s383 + $0x6f] sm:$0xff]
        %v3214 = vld [vmem:[%s383 + $0x87] sm:$0xff]
        %v3215 = vld [vmem:[%s383 + $0x8f] sm:$0xff]
        %v3216 = vld [vmem:[%s383 + $0xa7] sm:$0xff]
        %v3217 = vld [vmem:[%s383 + $0xaf] sm:$0xff]
        %v3218 = vld [vmem:[%s383 + $0xc7] sm:$0xff]
        %v3219 = vld [vmem:[%s383 + $0xcf] sm:$0xff]
        %v3220 = vld [vmem:[%s383 + $0xe7] sm:$0xff]
        %v3221 = vld [vmem:[%s383 + $0xef] sm:$0xff]
        %v3222 = vld [vmem:[%s383 + $0x107] sm:$0xff]
        %v3223 = vld [vmem:[%s383 + $0x10f] sm:$0xff]
        %v3224 = vld [vmem:[%s383 + $0x127] sm:$0xff]
        %v3225 = vld [vmem:[%s383 + $0x12f] sm:$0xff]
        %v3226 = vld [vmem:[%s383 + $0x147] sm:$0xff]
        %v3227 = vld [vmem:[%s383 + $0x14f] sm:$0xff]
        %v3228 = vld [vmem:[%s383 + $0x167] sm:$0xff]
        %v3229 = vld [vmem:[%s383 + $0x16f] sm:$0xff]
        %v3230 = vld [vmem:[%s383 + $0x187] sm:$0xff]
        %v3231 = vld [vmem:[%s383 + $0x18f] sm:$0xff]
        %v3232 = vld [vmem:[%s383 + $0x1a7] sm:$0xff]
        %v3233 = vld [vmem:[%s383 + $0x1af] sm:$0xff]
        %v3234 = vld [vmem:[%s383 + $0x1c7] sm:$0xff]
        %v3235 = vld [vmem:[%s383 + $0x1cf] sm:$0xff]
        %v3236 = vld [vmem:[%s383 + $0x1e7] sm:$0xff]
        %v3237 = vld [vmem:[%s383 + $0x1ef] sm:$0xff]
        %v3238 = vpack.c.bf16 %v3206, %v3206
        %v3239 = vpack.c.bf16 %v3207, %v3207
        %v3240 = vpack.c.bf16 %v3208, %v3208
        %v3241 = vpack.c.bf16 %v3209, %v3209
        %v3242 = vpack.c.bf16 %v3210, %v3210
        %v3243 = vpack.c.bf16 %v3211, %v3211
        %v3244 = vpack.c.bf16 %v3212, %v3212
        %v3245 = vpack.c.bf16 %v3213, %v3213
        %v3246 = vpack.c.bf16 %v3214, %v3214
        %v3247 = vpack.c.bf16 %v3215, %v3215
        %v3248 = vpack.c.bf16 %v3216, %v3216
        %v3249 = vpack.c.bf16 %v3217, %v3217
        %v3250 = vpack.c.bf16 %v3218, %v3218
        %v3251 = vpack.c.bf16 %v3219, %v3219
        %v3252 = vpack.c.bf16 %v3220, %v3220
        %v3253 = vpack.c.bf16 %v3221, %v3221
        %v3254 = vpack.c.bf16 %v3222, %v3222
        %v3255 = vpack.c.bf16 %v3223, %v3223
        %v3256 = vpack.c.bf16 %v3224, %v3224
        %v3257 = vpack.c.bf16 %v3225, %v3225
        %v3258 = vpack.c.bf16 %v3226, %v3226
        %v3259 = vpack.c.bf16 %v3227, %v3227
        %v3260 = vpack.c.bf16 %v3228, %v3228
        %v3261 = vpack.c.bf16 %v3229, %v3229
        %v3262 = vpack.c.bf16 %v3230, %v3230
        %v3263 = vpack.c.bf16 %v3231, %v3231
        %v3264 = vpack.c.bf16 %v3232, %v3232
        %v3265 = vpack.c.bf16 %v3233, %v3233
        %v3266 = vpack.c.bf16 %v3234, %v3234
        %v3267 = vpack.c.bf16 %v3235, %v3235
        %v3268 = vpack.c.bf16 %v3236, %v3236
        %v3269 = vpack.c.bf16 %v3237, %v3237
        %v3270 = vld [vmem:[%s383 + $0x8] sm:$0xff]
        %v3271 = vld [vmem:[%s383 + $0x10] sm:$0xff]
        %v3272 = vld [vmem:[%s383 + $0x28] sm:$0xff]
        %v3273 = vld [vmem:[%s383 + $0x30] sm:$0xff]
        %v3274 = vld [vmem:[%s383 + $0x48] sm:$0xff]
        %v3275 = vld [vmem:[%s383 + $0x50] sm:$0xff]
        %v3276 = vld [vmem:[%s383 + $0x68] sm:$0xff]
        %v3277 = vld [vmem:[%s383 + $0x70] sm:$0xff]
        %v3278 = vld [vmem:[%s383 + $0x88] sm:$0xff]
        %v3279 = vld [vmem:[%s383 + $0x90] sm:$0xff]
        %v3280 = vld [vmem:[%s383 + $0xa8] sm:$0xff]
        %v3281 = vld [vmem:[%s383 + $0xb0] sm:$0xff]
        %v3282 = vld [vmem:[%s383 + $0xc8] sm:$0xff]
        %v3283 = vld [vmem:[%s383 + $0xd0] sm:$0xff]
        %v3284 = vld [vmem:[%s383 + $0xe8] sm:$0xff]
        %v3285 = vld [vmem:[%s383 + $0xf0] sm:$0xff]
        %v3286 = vld [vmem:[%s383 + $0x108] sm:$0xff]
        %v3287 = vld [vmem:[%s383 + $0x110] sm:$0xff]
        %v3288 = vld [vmem:[%s383 + $0x128] sm:$0xff]
        %v3289 = vld [vmem:[%s383 + $0x130] sm:$0xff]
        %v3290 = vld [vmem:[%s383 + $0x148] sm:$0xff]
        %v3291 = vld [vmem:[%s383 + $0x150] sm:$0xff]
        %v3292 = vld [vmem:[%s383 + $0x168] sm:$0xff]
        %v3293 = vld [vmem:[%s383 + $0x170] sm:$0xff]
        %v3294 = vld [vmem:[%s383 + $0x188] sm:$0xff]
        %v3295 = vld [vmem:[%s383 + $0x190] sm:$0xff]
        %v3296 = vld [vmem:[%s383 + $0x1a8] sm:$0xff]
        %v3297 = vld [vmem:[%s383 + $0x1b0] sm:$0xff]
        %v3298 = vld [vmem:[%s383 + $0x1c8] sm:$0xff]
        %v3299 = vld [vmem:[%s383 + $0x1d0] sm:$0xff]
        %v3300 = vld [vmem:[%s383 + $0x1e8] sm:$0xff]
        %v3301 = vld [vmem:[%s383 + $0x1f0] sm:$0xff]
        %v3302 = vpack.c.bf16 %v3270, %v3270
        %v3303 = vpack.c.bf16 %v3271, %v3271
        %v3304 = vpack.c.bf16 %v3272, %v3272
        %v3305 = vpack.c.bf16 %v3273, %v3273
        %v3306 = vpack.c.bf16 %v3274, %v3274
        %v3307 = vpack.c.bf16 %v3275, %v3275
        %v3308 = vpack.c.bf16 %v3276, %v3276
        %v3309 = vpack.c.bf16 %v3277, %v3277
        %v3310 = vpack.c.bf16 %v3278, %v3278
        %v3311 = vpack.c.bf16 %v3279, %v3279
        %v3312 = vpack.c.bf16 %v3280, %v3280
        %v3313 = vpack.c.bf16 %v3281, %v3281
        %v3314 = vpack.c.bf16 %v3282, %v3282
        %v3315 = vpack.c.bf16 %v3283, %v3283
        %v3316 = vpack.c.bf16 %v3284, %v3284
        %v3317 = vpack.c.bf16 %v3285, %v3285
        %v3318 = vpack.c.bf16 %v3286, %v3286
        %v3319 = vpack.c.bf16 %v3287, %v3287
        %v3320 = vpack.c.bf16 %v3288, %v3288
        %v3321 = vpack.c.bf16 %v3289, %v3289
        %v3322 = vpack.c.bf16 %v3290, %v3290
        %v3323 = vpack.c.bf16 %v3291, %v3291
        %v3324 = vpack.c.bf16 %v3292, %v3292
        %v3325 = vpack.c.bf16 %v3293, %v3293
        %v3326 = vpack.c.bf16 %v3294, %v3294
        %v3327 = vpack.c.bf16 %v3295, %v3295
        %v3328 = vpack.c.bf16 %v3296, %v3296
        %v3329 = vpack.c.bf16 %v3297, %v3297
        %v3330 = vpack.c.bf16 %v3298, %v3298
        %v3331 = vpack.c.bf16 %v3299, %v3299
        %v3332 = vpack.c.bf16 %v3300, %v3300
        %v3333 = vpack.c.bf16 %v3301, %v3301
        %v3334 = vld [vmem:[%s383 + $0x9] sm:$0xff]
        %v3335 = vld [vmem:[%s383 + $0x11] sm:$0xff]
        %v3336 = vld [vmem:[%s383 + $0x29] sm:$0xff]
        %v3337 = vld [vmem:[%s383 + $0x31] sm:$0xff]
        %v3338 = vld [vmem:[%s383 + $0x49] sm:$0xff]
        %v3339 = vld [vmem:[%s383 + $0x51] sm:$0xff]
        %v3340 = vld [vmem:[%s383 + $0x69] sm:$0xff]
        %v3341 = vld [vmem:[%s383 + $0x71] sm:$0xff]
        %v3342 = vld [vmem:[%s383 + $0x89] sm:$0xff]
        %v3343 = vld [vmem:[%s383 + $0x91] sm:$0xff]
        %v3344 = vld [vmem:[%s383 + $0xa9] sm:$0xff]
        %v3345 = vld [vmem:[%s383 + $0xb1] sm:$0xff]
        %v3346 = vld [vmem:[%s383 + $0xc9] sm:$0xff]
        %v3347 = vld [vmem:[%s383 + $0xd1] sm:$0xff]
        %v3348 = vld [vmem:[%s383 + $0xe9] sm:$0xff]
        %v3349 = vld [vmem:[%s383 + $0xf1] sm:$0xff]
        %v3350 = vld [vmem:[%s383 + $0x109] sm:$0xff]
        %v3351 = vld [vmem:[%s383 + $0x111] sm:$0xff]
        %v3352 = vld [vmem:[%s383 + $0x129] sm:$0xff]
        %v3353 = vld [vmem:[%s383 + $0x131] sm:$0xff]
        %v3354 = vld [vmem:[%s383 + $0x149] sm:$0xff]
        %v3355 = vld [vmem:[%s383 + $0x151] sm:$0xff]
        %v3356 = vld [vmem:[%s383 + $0x169] sm:$0xff]
        %v3357 = vld [vmem:[%s383 + $0x171] sm:$0xff]
        %v3358 = vld [vmem:[%s383 + $0x189] sm:$0xff]
        %v3359 = vld [vmem:[%s383 + $0x191] sm:$0xff]
        %v3360 = vld [vmem:[%s383 + $0x1a9] sm:$0xff]
        %v3361 = vld [vmem:[%s383 + $0x1b1] sm:$0xff]
        %v3362 = vld [vmem:[%s383 + $0x1c9] sm:$0xff]
        %v3363 = vld [vmem:[%s383 + $0x1d1] sm:$0xff]
        %v3364 = vld [vmem:[%s383 + $0x1e9] sm:$0xff]
        %v3365 = vld [vmem:[%s383 + $0x1f1] sm:$0xff]
        %v3366 = vpack.c.bf16 %v3334, %v3334
        %v3367 = vpack.c.bf16 %v3335, %v3335
        %v3368 = vpack.c.bf16 %v3336, %v3336
        %v3369 = vpack.c.bf16 %v3337, %v3337
        %v3370 = vpack.c.bf16 %v3338, %v3338
        %v3371 = vpack.c.bf16 %v3339, %v3339
        %v3372 = vpack.c.bf16 %v3340, %v3340
        %v3373 = vpack.c.bf16 %v3341, %v3341
        %v3374 = vpack.c.bf16 %v3342, %v3342
        %v3375 = vpack.c.bf16 %v3343, %v3343
        %v3376 = vpack.c.bf16 %v3344, %v3344
        %v3377 = vpack.c.bf16 %v3345, %v3345
        %v3378 = vpack.c.bf16 %v3346, %v3346
        %v3379 = vpack.c.bf16 %v3347, %v3347
        %v3380 = vpack.c.bf16 %v3348, %v3348
        %v3381 = vpack.c.bf16 %v3349, %v3349
        %v3382 = vpack.c.bf16 %v3350, %v3350
        %v3383 = vpack.c.bf16 %v3351, %v3351
        %v3384 = vpack.c.bf16 %v3352, %v3352
        %v3385 = vpack.c.bf16 %v3353, %v3353
        %v3386 = vpack.c.bf16 %v3354, %v3354
        %v3387 = vpack.c.bf16 %v3355, %v3355
        %v3388 = vpack.c.bf16 %v3356, %v3356
        %v3389 = vpack.c.bf16 %v3357, %v3357
        %v3390 = vpack.c.bf16 %v3358, %v3358
        %v3391 = vpack.c.bf16 %v3359, %v3359
        %v3392 = vpack.c.bf16 %v3360, %v3360
        %v3393 = vpack.c.bf16 %v3361, %v3361
        %v3394 = vpack.c.bf16 %v3362, %v3362
        %v3395 = vpack.c.bf16 %v3363, %v3363
        %v3396 = vpack.c.bf16 %v3364, %v3364
        %v3397 = vpack.c.bf16 %v3365, %v3365
        %v3398 = vld [vmem:[%s800 + $0x7] sm:$0xff]
        %v3399 = vld [vmem:[%s800 + $0xf] sm:$0xff]
        %v3400 = vld [vmem:[%s800 + $0x27] sm:$0xff]
        %v3401 = vld [vmem:[%s800 + $0x2f] sm:$0xff]
        %v3402 = vld [vmem:[%s800 + $0x47] sm:$0xff]
        %v3403 = vld [vmem:[%s800 + $0x4f] sm:$0xff]
        %v3404 = vld [vmem:[%s800 + $0x67] sm:$0xff]
        %v3405 = vld [vmem:[%s800 + $0x6f] sm:$0xff]
        %v3406 = vld [vmem:[%s800 + $0x87] sm:$0xff]
        %v3407 = vld [vmem:[%s800 + $0x8f] sm:$0xff]
        %v3408 = vld [vmem:[%s800 + $0xa7] sm:$0xff]
        %v3409 = vld [vmem:[%s800 + $0xaf] sm:$0xff]
        %v3410 = vld [vmem:[%s800 + $0xc7] sm:$0xff]
        %v3411 = vld [vmem:[%s800 + $0xcf] sm:$0xff]
        %v3412 = vld [vmem:[%s800 + $0xe7] sm:$0xff]
        %v3413 = vld [vmem:[%s800 + $0xef] sm:$0xff]
        %v3414 = vld [vmem:[%s800 + $0x107] sm:$0xff]
        %v3415 = vld [vmem:[%s800 + $0x10f] sm:$0xff]
        %v3416 = vld [vmem:[%s800 + $0x127] sm:$0xff]
        %v3417 = vld [vmem:[%s800 + $0x12f] sm:$0xff]
        %v3418 = vld [vmem:[%s800 + $0x147] sm:$0xff]
        %v3419 = vld [vmem:[%s800 + $0x14f] sm:$0xff]
        %v3420 = vld [vmem:[%s800 + $0x167] sm:$0xff]
        %v3421 = vld [vmem:[%s800 + $0x16f] sm:$0xff]
        %v3422 = vld [vmem:[%s800 + $0x187] sm:$0xff]
        %v3423 = vld [vmem:[%s800 + $0x18f] sm:$0xff]
        %v3424 = vld [vmem:[%s800 + $0x1a7] sm:$0xff]
        %v3425 = vld [vmem:[%s800 + $0x1af] sm:$0xff]
        %v3426 = vld [vmem:[%s800 + $0x1c7] sm:$0xff]
        %v3427 = vld [vmem:[%s800 + $0x1cf] sm:$0xff]
        %v3428 = vld [vmem:[%s800 + $0x1e7] sm:$0xff]
        %v3429 = vld [vmem:[%s800 + $0x1ef] sm:$0xff]
        %v3430 = vpack.c.bf16 %v3398, %v3398
        %v3431 = vpack.c.bf16 %v3399, %v3399
        %v3432 = vpack.c.bf16 %v3400, %v3400
        %v3433 = vpack.c.bf16 %v3401, %v3401
        %v3434 = vpack.c.bf16 %v3402, %v3402
        %v3435 = vpack.c.bf16 %v3403, %v3403
        %v3436 = vpack.c.bf16 %v3404, %v3404
        %v3437 = vpack.c.bf16 %v3405, %v3405
        %v3438 = vpack.c.bf16 %v3406, %v3406
        %v3439 = vpack.c.bf16 %v3407, %v3407
        %v3440 = vpack.c.bf16 %v3408, %v3408
        %v3441 = vpack.c.bf16 %v3409, %v3409
        %v3442 = vpack.c.bf16 %v3410, %v3410
        %v3443 = vpack.c.bf16 %v3411, %v3411
        %v3444 = vpack.c.bf16 %v3412, %v3412
        %v3445 = vpack.c.bf16 %v3413, %v3413
        %v3446 = vpack.c.bf16 %v3414, %v3414
        %v3447 = vpack.c.bf16 %v3415, %v3415
        %v3448 = vpack.c.bf16 %v3416, %v3416
        %v3449 = vpack.c.bf16 %v3417, %v3417
        %v3450 = vpack.c.bf16 %v3418, %v3418
        %v3451 = vpack.c.bf16 %v3419, %v3419
        %v3452 = vpack.c.bf16 %v3420, %v3420
        %v3453 = vpack.c.bf16 %v3421, %v3421
        %v3454 = vpack.c.bf16 %v3422, %v3422
        %v3455 = vpack.c.bf16 %v3423, %v3423
        %v3456 = vpack.c.bf16 %v3424, %v3424
        %v3457 = vpack.c.bf16 %v3425, %v3425
        %v3458 = vpack.c.bf16 %v3426, %v3426
        %v3459 = vpack.c.bf16 %v3427, %v3427
        %v3460 = vpack.c.bf16 %v3428, %v3428
        %v3461 = vpack.c.bf16 %v3429, %v3429
        %v3462 = vld [vmem:[%s800 + $0x8] sm:$0xff]
        %v3463 = vld [vmem:[%s800 + $0x10] sm:$0xff]
        %v3464 = vld [vmem:[%s800 + $0x28] sm:$0xff]
        %v3465 = vld [vmem:[%s800 + $0x30] sm:$0xff]
        %v3466 = vld [vmem:[%s800 + $0x48] sm:$0xff]
        %v3467 = vld [vmem:[%s800 + $0x50] sm:$0xff]
        %v3468 = vld [vmem:[%s800 + $0x68] sm:$0xff]
        %v3469 = vld [vmem:[%s800 + $0x70] sm:$0xff]
        %v3470 = vld [vmem:[%s800 + $0x88] sm:$0xff]
        %v3471 = vld [vmem:[%s800 + $0x90] sm:$0xff]
        %v3472 = vld [vmem:[%s800 + $0xa8] sm:$0xff]
        %v3473 = vld [vmem:[%s800 + $0xb0] sm:$0xff]
        %v3474 = vld [vmem:[%s800 + $0xc8] sm:$0xff]
        %v3475 = vld [vmem:[%s800 + $0xd0] sm:$0xff]
        %v3476 = vld [vmem:[%s800 + $0xe8] sm:$0xff]
        %v3477 = vld [vmem:[%s800 + $0xf0] sm:$0xff]
        %v3478 = vld [vmem:[%s800 + $0x108] sm:$0xff]
        %v3479 = vld [vmem:[%s800 + $0x110] sm:$0xff]
        %v3480 = vld [vmem:[%s800 + $0x128] sm:$0xff]
        %v3481 = vld [vmem:[%s800 + $0x130] sm:$0xff]
        %v3482 = vld [vmem:[%s800 + $0x148] sm:$0xff]
        %v3483 = vld [vmem:[%s800 + $0x150] sm:$0xff]
        %v3484 = vld [vmem:[%s800 + $0x168] sm:$0xff]
        %v3485 = vld [vmem:[%s800 + $0x170] sm:$0xff]
        %v3486 = vld [vmem:[%s800 + $0x188] sm:$0xff]
        %v3487 = vld [vmem:[%s800 + $0x190] sm:$0xff]
        %v3488 = vld [vmem:[%s800 + $0x1a8] sm:$0xff]
        %v3489 = vld [vmem:[%s800 + $0x1b0] sm:$0xff]
        %v3490 = vld [vmem:[%s800 + $0x1c8] sm:$0xff]
        %v3491 = vld [vmem:[%s800 + $0x1d0] sm:$0xff]
        %v3492 = vld [vmem:[%s800 + $0x1e8] sm:$0xff]
        %v3493 = vld [vmem:[%s800 + $0x1f0] sm:$0xff]
        %v3494 = vpack.c.bf16 %v3462, %v3462
        %v3495 = vpack.c.bf16 %v3463, %v3463
        %v3496 = vpack.c.bf16 %v3464, %v3464
        %v3497 = vpack.c.bf16 %v3465, %v3465
        %v3498 = vpack.c.bf16 %v3466, %v3466
        %v3499 = vpack.c.bf16 %v3467, %v3467
        %v3500 = vpack.c.bf16 %v3468, %v3468
        %v3501 = vpack.c.bf16 %v3469, %v3469
        %v3502 = vpack.c.bf16 %v3470, %v3470
        %v3503 = vpack.c.bf16 %v3471, %v3471
        %v3504 = vpack.c.bf16 %v3472, %v3472
        %v3505 = vpack.c.bf16 %v3473, %v3473
        %v3506 = vpack.c.bf16 %v3474, %v3474
        %v3507 = vpack.c.bf16 %v3475, %v3475
        %v3508 = vpack.c.bf16 %v3476, %v3476
        %v3509 = vpack.c.bf16 %v3477, %v3477
        %v3510 = vpack.c.bf16 %v3478, %v3478
        %v3511 = vpack.c.bf16 %v3479, %v3479
        %v3512 = vpack.c.bf16 %v3480, %v3480
        %v3513 = vpack.c.bf16 %v3481, %v3481
        %v3514 = vpack.c.bf16 %v3482, %v3482
        %v3515 = vpack.c.bf16 %v3483, %v3483
        %v3516 = vpack.c.bf16 %v3484, %v3484
        %v3517 = vpack.c.bf16 %v3485, %v3485
        %v3518 = vpack.c.bf16 %v3486, %v3486
        %v3519 = vpack.c.bf16 %v3487, %v3487
        %v3520 = vpack.c.bf16 %v3488, %v3488
        %v3521 = vpack.c.bf16 %v3489, %v3489
        %v3522 = vpack.c.bf16 %v3490, %v3490
        %v3523 = vpack.c.bf16 %v3491, %v3491
        %v3524 = vpack.c.bf16 %v3492, %v3492
        %v3525 = vpack.c.bf16 %v3493, %v3493
        %v3526 = vld [vmem:[%s800 + $0x9] sm:$0xff]
        %v3527 = vld [vmem:[%s800 + $0x11] sm:$0xff]
        %v3528 = vld [vmem:[%s800 + $0x29] sm:$0xff]
        %v3529 = vld [vmem:[%s800 + $0x31] sm:$0xff]
        %v3530 = vld [vmem:[%s800 + $0x49] sm:$0xff]
        %v3531 = vld [vmem:[%s800 + $0x51] sm:$0xff]
        %v3532 = vld [vmem:[%s800 + $0x69] sm:$0xff]
        %v3533 = vld [vmem:[%s800 + $0x71] sm:$0xff]
        %v3534 = vld [vmem:[%s800 + $0x89] sm:$0xff]
        %v3535 = vld [vmem:[%s800 + $0x91] sm:$0xff]
        %v3536 = vld [vmem:[%s800 + $0xa9] sm:$0xff]
        %v3537 = vld [vmem:[%s800 + $0xb1] sm:$0xff]
        %v3538 = vld [vmem:[%s800 + $0xc9] sm:$0xff]
        %v3539 = vld [vmem:[%s800 + $0xd1] sm:$0xff]
        %v3540 = vld [vmem:[%s800 + $0xe9] sm:$0xff]
        %v3541 = vld [vmem:[%s800 + $0xf1] sm:$0xff]
        %v3542 = vld [vmem:[%s800 + $0x109] sm:$0xff]
        %v3543 = vld [vmem:[%s800 + $0x111] sm:$0xff]
        %v3544 = vld [vmem:[%s800 + $0x129] sm:$0xff]
        %v3545 = vld [vmem:[%s800 + $0x131] sm:$0xff]
        %v3546 = vld [vmem:[%s800 + $0x149] sm:$0xff]
        %v3547 = vld [vmem:[%s800 + $0x151] sm:$0xff]
        %v3548 = vld [vmem:[%s800 + $0x169] sm:$0xff]
        %v3549 = vld [vmem:[%s800 + $0x171] sm:$0xff]
        %v3550 = vld [vmem:[%s800 + $0x189] sm:$0xff]
        %v3551 = vld [vmem:[%s800 + $0x191] sm:$0xff]
        %v3552 = vld [vmem:[%s800 + $0x1a9] sm:$0xff]
        %v3553 = vld [vmem:[%s800 + $0x1b1] sm:$0xff]
        %v3554 = vld [vmem:[%s800 + $0x1c9] sm:$0xff]
        %v3555 = vld [vmem:[%s800 + $0x1d1] sm:$0xff]
        %v3556 = vld [vmem:[%s800 + $0x1e9] sm:$0xff]
        %v3557 = vld [vmem:[%s800 + $0x1f1] sm:$0xff]
        %v3558 = vpack.c.bf16 %v3526, %v3526
        %v3559 = vpack.c.bf16 %v3527, %v3527
        %v3560 = vpack.c.bf16 %v3528, %v3528
        %v3561 = vpack.c.bf16 %v3529, %v3529
        %v3562 = vpack.c.bf16 %v3530, %v3530
        %v3563 = vpack.c.bf16 %v3531, %v3531
        %v3564 = vpack.c.bf16 %v3532, %v3532
        %v3565 = vpack.c.bf16 %v3533, %v3533
        %v3566 = vpack.c.bf16 %v3534, %v3534
        %v3567 = vpack.c.bf16 %v3535, %v3535
        %v3568 = vpack.c.bf16 %v3536, %v3536
        %v3569 = vpack.c.bf16 %v3537, %v3537
        %v3570 = vpack.c.bf16 %v3538, %v3538
        %v3571 = vpack.c.bf16 %v3539, %v3539
        %v3572 = vpack.c.bf16 %v3540, %v3540
        %v3573 = vpack.c.bf16 %v3541, %v3541
        %v3574 = vpack.c.bf16 %v3542, %v3542
        %v3575 = vpack.c.bf16 %v3543, %v3543
        %v3576 = vpack.c.bf16 %v3544, %v3544
        %v3577 = vpack.c.bf16 %v3545, %v3545
        %v3578 = vpack.c.bf16 %v3546, %v3546
        %v3579 = vpack.c.bf16 %v3547, %v3547
        %v3580 = vpack.c.bf16 %v3548, %v3548
        %v3581 = vpack.c.bf16 %v3549, %v3549
        %v3582 = vpack.c.bf16 %v3550, %v3550
        %v3583 = vpack.c.bf16 %v3551, %v3551
        %v3584 = vpack.c.bf16 %v3552, %v3552
        %v3585 = vpack.c.bf16 %v3553, %v3553
        %v3586 = vpack.c.bf16 %v3554, %v3554
        %v3587 = vpack.c.bf16 %v3555, %v3555
        %v3588 = vpack.c.bf16 %v3556, %v3556
        %v3589 = vpack.c.bf16 %v3557, %v3557
        %v3622 = vunpack.c.l.b16 %v3046
        %v3623 = vunpack.c.l.b16 %v3047
        %v3624 = vunpack.c.l.b16 %v3048
        %v3625 = vunpack.c.l.b16 %v3049
        %v3626 = vunpack.c.l.b16 %v3050
        %v3627 = vunpack.c.l.b16 %v3051
        %v3628 = vunpack.c.l.b16 %v3052
        %v3629 = vunpack.c.l.b16 %v3053
        %v3630 = vunpack.c.l.b16 %v3054
        %v3631 = vunpack.c.l.b16 %v3055
        %v3632 = vunpack.c.l.b16 %v3056
        %v3633 = vunpack.c.l.b16 %v3057
        %v3634 = vunpack.c.l.b16 %v3058
        %v3635 = vunpack.c.l.b16 %v3059
        %v3636 = vunpack.c.l.b16 %v3060
        %v3637 = vunpack.c.l.b16 %v3061
        %v3638 = vunpack.c.l.b16 %v3062
        %v3639 = vunpack.c.l.b16 %v3063
        %v3640 = vunpack.c.l.b16 %v3064
        %v3641 = vunpack.c.l.b16 %v3065
        %v3642 = vunpack.c.l.b16 %v3066
        %v3643 = vunpack.c.l.b16 %v3067
        %v3644 = vunpack.c.l.b16 %v3068
        %v3645 = vunpack.c.l.b16 %v3069
        %v3646 = vunpack.c.l.b16 %v3070
        %v3647 = vunpack.c.l.b16 %v3071
        %v3648 = vunpack.c.l.b16 %v3072
        %v3649 = vunpack.c.l.b16 %v3073
        %v3650 = vunpack.c.l.b16 %v3074
        %v3651 = vunpack.c.l.b16 %v3075
        %v3652 = vunpack.c.l.b16 %v3076
        %v3653 = vunpack.c.l.b16 %v3077
        %v3654 = vpack.c.b16 %v3623, %v3622
        %v3655 = vpack.c.b16 %v3625, %v3624
        %v3656 = vpack.c.b16 %v3627, %v3626
        %v3657 = vpack.c.b16 %v3629, %v3628
        %v3658 = vpack.c.b16 %v3631, %v3630
        %v3659 = vpack.c.b16 %v3633, %v3632
        %v3660 = vpack.c.b16 %v3635, %v3634
        %v3661 = vpack.c.b16 %v3637, %v3636
        %v3662 = vpack.c.b16 %v3639, %v3638
        %v3663 = vpack.c.b16 %v3641, %v3640
        %v3664 = vpack.c.b16 %v3643, %v3642
        %v3665 = vpack.c.b16 %v3645, %v3644
        %v3666 = vpack.c.b16 %v3647, %v3646
        %v3667 = vpack.c.b16 %v3649, %v3648
        %v3668 = vpack.c.b16 %v3651, %v3650
        %v3669 = vpack.c.b16 %v3653, %v3652
        %v3702 = vunpack.c.l.b16 %v3110
        %v3703 = vunpack.c.l.b16 %v3111
        %v3704 = vunpack.c.l.b16 %v3112
        %v3705 = vunpack.c.l.b16 %v3113
        %v3706 = vunpack.c.l.b16 %v3114
        %v3707 = vunpack.c.l.b16 %v3115
        %v3708 = vunpack.c.l.b16 %v3116
        %v3709 = vunpack.c.l.b16 %v3117
        %v3710 = vunpack.c.l.b16 %v3118
        %v3711 = vunpack.c.l.b16 %v3119
        %v3712 = vunpack.c.l.b16 %v3120
        %v3713 = vunpack.c.l.b16 %v3121
        %v3714 = vunpack.c.l.b16 %v3122
        %v3715 = vunpack.c.l.b16 %v3123
        %v3716 = vunpack.c.l.b16 %v3124
        %v3717 = vunpack.c.l.b16 %v3125
        %v3718 = vunpack.c.l.b16 %v3126
        %v3719 = vunpack.c.l.b16 %v3127
        %v3720 = vunpack.c.l.b16 %v3128
        %v3721 = vunpack.c.l.b16 %v3129
        %v3722 = vunpack.c.l.b16 %v3130
        %v3723 = vunpack.c.l.b16 %v3131
        %v3724 = vunpack.c.l.b16 %v3132
        %v3725 = vunpack.c.l.b16 %v3133
        %v3726 = vunpack.c.l.b16 %v3134
        %v3727 = vunpack.c.l.b16 %v3135
        %v3728 = vunpack.c.l.b16 %v3136
        %v3729 = vunpack.c.l.b16 %v3137
        %v3730 = vunpack.c.l.b16 %v3138
        %v3731 = vunpack.c.l.b16 %v3139
        %v3732 = vunpack.c.l.b16 %v3140
        %v3733 = vunpack.c.l.b16 %v3141
        %v3734 = vpack.c.b16 %v3703, %v3702
        %v3735 = vpack.c.b16 %v3705, %v3704
        %v3736 = vpack.c.b16 %v3707, %v3706
        %v3737 = vpack.c.b16 %v3709, %v3708
        %v3738 = vpack.c.b16 %v3711, %v3710
        %v3739 = vpack.c.b16 %v3713, %v3712
        %v3740 = vpack.c.b16 %v3715, %v3714
        %v3741 = vpack.c.b16 %v3717, %v3716
        %v3742 = vpack.c.b16 %v3719, %v3718
        %v3743 = vpack.c.b16 %v3721, %v3720
        %v3744 = vpack.c.b16 %v3723, %v3722
        %v3745 = vpack.c.b16 %v3725, %v3724
        %v3746 = vpack.c.b16 %v3727, %v3726
        %v3747 = vpack.c.b16 %v3729, %v3728
        %v3748 = vpack.c.b16 %v3731, %v3730
        %v3749 = vpack.c.b16 %v3733, %v3732
        %3750 = vrot.lane.b32.xlu0 %v3734, 64
        %v3751 = vpop.permute.xlu0 %3750
        %3752 = vrot.lane.b32.xlu0 %v3735, 64
        %v3753 = vpop.permute.xlu0 %3752
        %3754 = vrot.lane.b32.xlu0 %v3736, 64
        %v3755 = vpop.permute.xlu0 %3754
        %3756 = vrot.lane.b32.xlu0 %v3737, 64
        %v3757 = vpop.permute.xlu0 %3756
        %3758 = vrot.lane.b32.xlu0 %v3738, 64
        %v3759 = vpop.permute.xlu0 %3758
        %3760 = vrot.lane.b32.xlu0 %v3739, 64
        %v3761 = vpop.permute.xlu0 %3760
        %3762 = vrot.lane.b32.xlu0 %v3740, 64
        %v3763 = vpop.permute.xlu0 %3762
        %3764 = vrot.lane.b32.xlu0 %v3741, 64
        %v3765 = vpop.permute.xlu0 %3764
        %3766 = vrot.lane.b32.xlu0 %v3742, 64
        %v3767 = vpop.permute.xlu0 %3766
        %3768 = vrot.lane.b32.xlu0 %v3743, 64
        %v3769 = vpop.permute.xlu0 %3768
        %3770 = vrot.lane.b32.xlu0 %v3744, 64
        %v3771 = vpop.permute.xlu0 %3770
        %3772 = vrot.lane.b32.xlu0 %v3745, 64
        %v3773 = vpop.permute.xlu0 %3772
        %3774 = vrot.lane.b32.xlu0 %v3746, 64
        %v3775 = vpop.permute.xlu0 %3774
        %3776 = vrot.lane.b32.xlu0 %v3747, 64
        %v3777 = vpop.permute.xlu0 %3776
        %3778 = vrot.lane.b32.xlu0 %v3748, 64
        %v3779 = vpop.permute.xlu0 %3778
        %3780 = vrot.lane.b32.xlu0 %v3749, 64
        %v3781 = vpop.permute.xlu0 %3780
        %v3814 = vunpack.c.l.b16 %v3174
        %v3815 = vunpack.c.l.b16 %v3175
        %v3816 = vunpack.c.l.b16 %v3176
        %v3817 = vunpack.c.l.b16 %v3177
        %v3818 = vunpack.c.l.b16 %v3178
        %v3819 = vunpack.c.l.b16 %v3179
        %v3820 = vunpack.c.l.b16 %v3180
        %v3821 = vunpack.c.l.b16 %v3181
        %v3822 = vunpack.c.l.b16 %v3182
        %v3823 = vunpack.c.l.b16 %v3183
        %v3824 = vunpack.c.l.b16 %v3184
        %v3825 = vunpack.c.l.b16 %v3185
        %v3826 = vunpack.c.l.b16 %v3186
        %v3827 = vunpack.c.l.b16 %v3187
        %v3828 = vunpack.c.l.b16 %v3188
        %v3829 = vunpack.c.l.b16 %v3189
        %v3830 = vunpack.c.l.b16 %v3190
        %v3831 = vunpack.c.l.b16 %v3191
        %v3832 = vunpack.c.l.b16 %v3192
        %v3833 = vunpack.c.l.b16 %v3193
        %v3834 = vunpack.c.l.b16 %v3194
        %v3835 = vunpack.c.l.b16 %v3195
        %v3836 = vunpack.c.l.b16 %v3196
        %v3837 = vunpack.c.l.b16 %v3197
        %v3838 = vunpack.c.l.b16 %v3198
        %v3839 = vunpack.c.l.b16 %v3199
        %v3840 = vunpack.c.l.b16 %v3200
        %v3841 = vunpack.c.l.b16 %v3201
        %v3842 = vunpack.c.l.b16 %v3202
        %v3843 = vunpack.c.l.b16 %v3203
        %v3844 = vunpack.c.l.b16 %v3204
        %v3845 = vunpack.c.l.b16 %v3205
        %v3846 = vpack.c.b16 %v3815, %v3814
        %v3847 = vpack.c.b16 %v3817, %v3816
        %v3848 = vpack.c.b16 %v3819, %v3818
        %v3849 = vpack.c.b16 %v3821, %v3820
        %v3850 = vpack.c.b16 %v3823, %v3822
        %v3851 = vpack.c.b16 %v3825, %v3824
        %v3852 = vpack.c.b16 %v3827, %v3826
        %v3853 = vpack.c.b16 %v3829, %v3828
        %v3854 = vpack.c.b16 %v3831, %v3830
        %v3855 = vpack.c.b16 %v3833, %v3832
        %v3856 = vpack.c.b16 %v3835, %v3834
        %v3857 = vpack.c.b16 %v3837, %v3836
        %v3858 = vpack.c.b16 %v3839, %v3838
        %v3859 = vpack.c.b16 %v3841, %v3840
        %v3860 = vpack.c.b16 %v3843, %v3842
        %v3861 = vpack.c.b16 %v3845, %v3844
        %v3894 = vunpack.c.l.b16 %v3238
        %v3895 = vunpack.c.l.b16 %v3239
        %v3896 = vunpack.c.l.b16 %v3240
        %v3897 = vunpack.c.l.b16 %v3241
        %v3898 = vunpack.c.l.b16 %v3242
        %v3899 = vunpack.c.l.b16 %v3243
        %v3900 = vunpack.c.l.b16 %v3244
        %v3901 = vunpack.c.l.b16 %v3245
        %v3902 = vunpack.c.l.b16 %v3246
        %v3903 = vunpack.c.l.b16 %v3247
        %v3904 = vunpack.c.l.b16 %v3248
        %v3905 = vunpack.c.l.b16 %v3249
        %v3906 = vunpack.c.l.b16 %v3250
        %v3907 = vunpack.c.l.b16 %v3251
        %v3908 = vunpack.c.l.b16 %v3252
        %v3909 = vunpack.c.l.b16 %v3253
        %v3910 = vunpack.c.l.b16 %v3254
        %v3911 = vunpack.c.l.b16 %v3255
        %v3912 = vunpack.c.l.b16 %v3256
        %v3913 = vunpack.c.l.b16 %v3257
        %v3914 = vunpack.c.l.b16 %v3258
        %v3915 = vunpack.c.l.b16 %v3259
        %v3916 = vunpack.c.l.b16 %v3260
        %v3917 = vunpack.c.l.b16 %v3261
        %v3918 = vunpack.c.l.b16 %v3262
        %v3919 = vunpack.c.l.b16 %v3263
        %v3920 = vunpack.c.l.b16 %v3264
        %v3921 = vunpack.c.l.b16 %v3265
        %v3922 = vunpack.c.l.b16 %v3266
        %v3923 = vunpack.c.l.b16 %v3267
        %v3924 = vunpack.c.l.b16 %v3268
        %v3925 = vunpack.c.l.b16 %v3269
        %v3926 = vpack.c.b16 %v3895, %v3894
        %v3927 = vpack.c.b16 %v3897, %v3896
        %v3928 = vpack.c.b16 %v3899, %v3898
        %v3929 = vpack.c.b16 %v3901, %v3900
        %v3930 = vpack.c.b16 %v3903, %v3902
        %v3931 = vpack.c.b16 %v3905, %v3904
        %v3932 = vpack.c.b16 %v3907, %v3906
        %v3933 = vpack.c.b16 %v3909, %v3908
        %v3934 = vpack.c.b16 %v3911, %v3910
        %v3935 = vpack.c.b16 %v3913, %v3912
        %v3936 = vpack.c.b16 %v3915, %v3914
        %v3937 = vpack.c.b16 %v3917, %v3916
        %v3938 = vpack.c.b16 %v3919, %v3918
        %v3939 = vpack.c.b16 %v3921, %v3920
        %v3940 = vpack.c.b16 %v3923, %v3922
        %v3941 = vpack.c.b16 %v3925, %v3924
        %3942 = vrot.lane.b32.xlu0 %v3926, 64
        %v3943 = vpop.permute.xlu0 %3942
        %3944 = vrot.lane.b32.xlu0 %v3927, 64
        %v3945 = vpop.permute.xlu0 %3944
        %3946 = vrot.lane.b32.xlu0 %v3928, 64
        %v3947 = vpop.permute.xlu0 %3946
        %3948 = vrot.lane.b32.xlu0 %v3929, 64
        %v3949 = vpop.permute.xlu0 %3948
        %3950 = vrot.lane.b32.xlu0 %v3930, 64
        %v3951 = vpop.permute.xlu0 %3950
        %3952 = vrot.lane.b32.xlu0 %v3931, 64
        %v3953 = vpop.permute.xlu0 %3952
        %3954 = vrot.lane.b32.xlu0 %v3932, 64
        %v3955 = vpop.permute.xlu0 %3954
        %3956 = vrot.lane.b32.xlu0 %v3933, 64
        %v3957 = vpop.permute.xlu0 %3956
        %3958 = vrot.lane.b32.xlu0 %v3934, 64
        %v3959 = vpop.permute.xlu0 %3958
        %3960 = vrot.lane.b32.xlu0 %v3935, 64
        %v3961 = vpop.permute.xlu0 %3960
        %3962 = vrot.lane.b32.xlu0 %v3936, 64
        %v3963 = vpop.permute.xlu0 %3962
        %3964 = vrot.lane.b32.xlu0 %v3937, 64
        %v3965 = vpop.permute.xlu0 %3964
        %3966 = vrot.lane.b32.xlu0 %v3938, 64
        %v3967 = vpop.permute.xlu0 %3966
        %3968 = vrot.lane.b32.xlu0 %v3939, 64
        %v3969 = vpop.permute.xlu0 %3968
        %3970 = vrot.lane.b32.xlu0 %v3940, 64
        %v3971 = vpop.permute.xlu0 %3970
        %3972 = vrot.lane.b32.xlu0 %v3941, 64
        %v3973 = vpop.permute.xlu0 %3972
        %v4006 = vunpack.c.l.b16 %v3302
        %v4007 = vunpack.c.l.b16 %v3303
        %v4008 = vunpack.c.l.b16 %v3304
        %v4009 = vunpack.c.l.b16 %v3305
        %v4010 = vunpack.c.l.b16 %v3306
        %v4011 = vunpack.c.l.b16 %v3307
        %v4012 = vunpack.c.l.b16 %v3308
        %v4013 = vunpack.c.l.b16 %v3309
        %v4014 = vunpack.c.l.b16 %v3310
        %v4015 = vunpack.c.l.b16 %v3311
        %v4016 = vunpack.c.l.b16 %v3312
        %v4017 = vunpack.c.l.b16 %v3313
        %v4018 = vunpack.c.l.b16 %v3314
        %v4019 = vunpack.c.l.b16 %v3315
        %v4020 = vunpack.c.l.b16 %v3316
        %v4021 = vunpack.c.l.b16 %v3317
        %v4022 = vunpack.c.l.b16 %v3318
        %v4023 = vunpack.c.l.b16 %v3319
        %v4024 = vunpack.c.l.b16 %v3320
        %v4025 = vunpack.c.l.b16 %v3321
        %v4026 = vunpack.c.l.b16 %v3322
        %v4027 = vunpack.c.l.b16 %v3323
        %v4028 = vunpack.c.l.b16 %v3324
        %v4029 = vunpack.c.l.b16 %v3325
        %v4030 = vunpack.c.l.b16 %v3326
        %v4031 = vunpack.c.l.b16 %v3327
        %v4032 = vunpack.c.l.b16 %v3328
        %v4033 = vunpack.c.l.b16 %v3329
        %v4034 = vunpack.c.l.b16 %v3330
        %v4035 = vunpack.c.l.b16 %v3331
        %v4036 = vunpack.c.l.b16 %v3332
        %v4037 = vunpack.c.l.b16 %v3333
        %v4038 = vpack.c.b16 %v4007, %v4006
        %v4039 = vpack.c.b16 %v4009, %v4008
        %v4040 = vpack.c.b16 %v4011, %v4010
        %v4041 = vpack.c.b16 %v4013, %v4012
        %v4042 = vpack.c.b16 %v4015, %v4014
        %v4043 = vpack.c.b16 %v4017, %v4016
        %v4044 = vpack.c.b16 %v4019, %v4018
        %v4045 = vpack.c.b16 %v4021, %v4020
        %v4046 = vpack.c.b16 %v4023, %v4022
        %v4047 = vpack.c.b16 %v4025, %v4024
        %v4048 = vpack.c.b16 %v4027, %v4026
        %v4049 = vpack.c.b16 %v4029, %v4028
        %v4050 = vpack.c.b16 %v4031, %v4030
        %v4051 = vpack.c.b16 %v4033, %v4032
        %v4052 = vpack.c.b16 %v4035, %v4034
        %v4053 = vpack.c.b16 %v4037, %v4036
        %v4086 = vunpack.c.l.b16 %v3366
        %v4087 = vunpack.c.l.b16 %v3367
        %v4088 = vunpack.c.l.b16 %v3368
        %v4089 = vunpack.c.l.b16 %v3369
        %v4090 = vunpack.c.l.b16 %v3370
        %v4091 = vunpack.c.l.b16 %v3371
        %v4092 = vunpack.c.l.b16 %v3372
        %v4093 = vunpack.c.l.b16 %v3373
        %v4094 = vunpack.c.l.b16 %v3374
        %v4095 = vunpack.c.l.b16 %v3375
        %v4096 = vunpack.c.l.b16 %v3376
        %v4097 = vunpack.c.l.b16 %v3377
        %v4098 = vunpack.c.l.b16 %v3378
        %v4099 = vunpack.c.l.b16 %v3379
        %v4100 = vunpack.c.l.b16 %v3380
        %v4101 = vunpack.c.l.b16 %v3381
        %v4102 = vunpack.c.l.b16 %v3382
        %v4103 = vunpack.c.l.b16 %v3383
        %v4104 = vunpack.c.l.b16 %v3384
        %v4105 = vunpack.c.l.b16 %v3385
        %v4106 = vunpack.c.l.b16 %v3386
        %v4107 = vunpack.c.l.b16 %v3387
        %v4108 = vunpack.c.l.b16 %v3388
        %v4109 = vunpack.c.l.b16 %v3389
        %v4110 = vunpack.c.l.b16 %v3390
        %v4111 = vunpack.c.l.b16 %v3391
        %v4112 = vunpack.c.l.b16 %v3392
        %v4113 = vunpack.c.l.b16 %v3393
        %v4114 = vunpack.c.l.b16 %v3394
        %v4115 = vunpack.c.l.b16 %v3395
        %v4116 = vunpack.c.l.b16 %v3396
        %v4117 = vunpack.c.l.b16 %v3397
        %v4118 = vpack.c.b16 %v4087, %v4086
        %v4119 = vpack.c.b16 %v4089, %v4088
        %v4120 = vpack.c.b16 %v4091, %v4090
        %v4121 = vpack.c.b16 %v4093, %v4092
        %v4122 = vpack.c.b16 %v4095, %v4094
        %v4123 = vpack.c.b16 %v4097, %v4096
        %v4124 = vpack.c.b16 %v4099, %v4098
        %v4125 = vpack.c.b16 %v4101, %v4100
        %v4126 = vpack.c.b16 %v4103, %v4102
        %v4127 = vpack.c.b16 %v4105, %v4104
        %v4128 = vpack.c.b16 %v4107, %v4106
        %v4129 = vpack.c.b16 %v4109, %v4108
        %v4130 = vpack.c.b16 %v4111, %v4110
        %v4131 = vpack.c.b16 %v4113, %v4112
        %v4132 = vpack.c.b16 %v4115, %v4114
        %v4133 = vpack.c.b16 %v4117, %v4116
        %4134 = vrot.lane.b32.xlu0 %v4118, 64
        %v4135 = vpop.permute.xlu0 %4134
        %4136 = vrot.lane.b32.xlu0 %v4119, 64
        %v4137 = vpop.permute.xlu0 %4136
        %4138 = vrot.lane.b32.xlu0 %v4120, 64
        %v4139 = vpop.permute.xlu0 %4138
        %4140 = vrot.lane.b32.xlu0 %v4121, 64
        %v4141 = vpop.permute.xlu0 %4140
        %4142 = vrot.lane.b32.xlu0 %v4122, 64
        %v4143 = vpop.permute.xlu0 %4142
        %4144 = vrot.lane.b32.xlu0 %v4123, 64
        %v4145 = vpop.permute.xlu0 %4144
        %4146 = vrot.lane.b32.xlu0 %v4124, 64
        %v4147 = vpop.permute.xlu0 %4146
        %4148 = vrot.lane.b32.xlu0 %v4125, 64
        %v4149 = vpop.permute.xlu0 %4148
        %4150 = vrot.lane.b32.xlu0 %v4126, 64
        %v4151 = vpop.permute.xlu0 %4150
        %4152 = vrot.lane.b32.xlu0 %v4127, 64
        %v4153 = vpop.permute.xlu0 %4152
        %4154 = vrot.lane.b32.xlu0 %v4128, 64
        %v4155 = vpop.permute.xlu0 %4154
        %4156 = vrot.lane.b32.xlu0 %v4129, 64
        %v4157 = vpop.permute.xlu0 %4156
        %4158 = vrot.lane.b32.xlu0 %v4130, 64
        %v4159 = vpop.permute.xlu0 %4158
        %4160 = vrot.lane.b32.xlu0 %v4131, 64
        %v4161 = vpop.permute.xlu0 %4160
        %4162 = vrot.lane.b32.xlu0 %v4132, 64
        %v4163 = vpop.permute.xlu0 %4162
        %4164 = vrot.lane.b32.xlu0 %v4133, 64
        %v4165 = vpop.permute.xlu0 %4164
        %v4198 = vunpack.c.l.b16 %v3430
        %v4199 = vunpack.c.l.b16 %v3431
        %v4200 = vunpack.c.l.b16 %v3432
        %v4201 = vunpack.c.l.b16 %v3433
        %v4202 = vunpack.c.l.b16 %v3434
        %v4203 = vunpack.c.l.b16 %v3435
        %v4204 = vunpack.c.l.b16 %v3436
        %v4205 = vunpack.c.l.b16 %v3437
        %v4206 = vunpack.c.l.b16 %v3438
        %v4207 = vunpack.c.l.b16 %v3439
        %v4208 = vunpack.c.l.b16 %v3440
        %v4209 = vunpack.c.l.b16 %v3441
        %v4210 = vunpack.c.l.b16 %v3442
        %v4211 = vunpack.c.l.b16 %v3443
        %v4212 = vunpack.c.l.b16 %v3444
        %v4213 = vunpack.c.l.b16 %v3445
        %v4214 = vunpack.c.l.b16 %v3446
        %v4215 = vunpack.c.l.b16 %v3447
        %v4216 = vunpack.c.l.b16 %v3448
        %v4217 = vunpack.c.l.b16 %v3449
        %v4218 = vunpack.c.l.b16 %v3450
        %v4219 = vunpack.c.l.b16 %v3451
        %v4220 = vunpack.c.l.b16 %v3452
        %v4221 = vunpack.c.l.b16 %v3453
        %v4222 = vunpack.c.l.b16 %v3454
        %v4223 = vunpack.c.l.b16 %v3455
        %v4224 = vunpack.c.l.b16 %v3456
        %v4225 = vunpack.c.l.b16 %v3457
        %v4226 = vunpack.c.l.b16 %v3458
        %v4227 = vunpack.c.l.b16 %v3459
        %v4228 = vunpack.c.l.b16 %v3460
        %v4229 = vunpack.c.l.b16 %v3461
        %v4230 = vpack.c.b16 %v4199, %v4198
        %v4231 = vpack.c.b16 %v4201, %v4200
        %v4232 = vpack.c.b16 %v4203, %v4202
        %v4233 = vpack.c.b16 %v4205, %v4204
        %v4234 = vpack.c.b16 %v4207, %v4206
        %v4235 = vpack.c.b16 %v4209, %v4208
        %v4236 = vpack.c.b16 %v4211, %v4210
        %v4237 = vpack.c.b16 %v4213, %v4212
        %v4238 = vpack.c.b16 %v4215, %v4214
        %v4239 = vpack.c.b16 %v4217, %v4216
        %v4240 = vpack.c.b16 %v4219, %v4218
        %v4241 = vpack.c.b16 %v4221, %v4220
        %v4242 = vpack.c.b16 %v4223, %v4222
        %v4243 = vpack.c.b16 %v4225, %v4224
        %v4244 = vpack.c.b16 %v4227, %v4226
        %v4245 = vpack.c.b16 %v4229, %v4228
        %v4278 = vunpack.c.l.b16 %v3494
        %v4279 = vunpack.c.l.b16 %v3495
        %v4280 = vunpack.c.l.b16 %v3496
        %v4281 = vunpack.c.l.b16 %v3497
        %v4282 = vunpack.c.l.b16 %v3498
        %v4283 = vunpack.c.l.b16 %v3499
        %v4284 = vunpack.c.l.b16 %v3500
        %v4285 = vunpack.c.l.b16 %v3501
        %v4286 = vunpack.c.l.b16 %v3502
        %v4287 = vunpack.c.l.b16 %v3503
        %v4288 = vunpack.c.l.b16 %v3504
        %v4289 = vunpack.c.l.b16 %v3505
        %v4290 = vunpack.c.l.b16 %v3506
        %v4291 = vunpack.c.l.b16 %v3507
        %v4292 = vunpack.c.l.b16 %v3508
        %v4293 = vunpack.c.l.b16 %v3509
        %v4294 = vunpack.c.l.b16 %v3510
        %v4295 = vunpack.c.l.b16 %v3511
        %v4296 = vunpack.c.l.b16 %v3512
        %v4297 = vunpack.c.l.b16 %v3513
        %v4298 = vunpack.c.l.b16 %v3514
        %v4299 = vunpack.c.l.b16 %v3515
        %v4300 = vunpack.c.l.b16 %v3516
        %v4301 = vunpack.c.l.b16 %v3517
        %v4302 = vunpack.c.l.b16 %v3518
        %v4303 = vunpack.c.l.b16 %v3519
        %v4304 = vunpack.c.l.b16 %v3520
        %v4305 = vunpack.c.l.b16 %v3521
        %v4306 = vunpack.c.l.b16 %v3522
        %v4307 = vunpack.c.l.b16 %v3523
        %v4308 = vunpack.c.l.b16 %v3524
        %v4309 = vunpack.c.l.b16 %v3525
        %v4310 = vpack.c.b16 %v4279, %v4278
        %v4311 = vpack.c.b16 %v4281, %v4280
        %v4312 = vpack.c.b16 %v4283, %v4282
        %v4313 = vpack.c.b16 %v4285, %v4284
        %v4314 = vpack.c.b16 %v4287, %v4286
        %v4315 = vpack.c.b16 %v4289, %v4288
        %v4316 = vpack.c.b16 %v4291, %v4290
        %v4317 = vpack.c.b16 %v4293, %v4292
        %v4318 = vpack.c.b16 %v4295, %v4294
        %v4319 = vpack.c.b16 %v4297, %v4296
        %v4320 = vpack.c.b16 %v4299, %v4298
        %v4321 = vpack.c.b16 %v4301, %v4300
        %v4322 = vpack.c.b16 %v4303, %v4302
        %v4323 = vpack.c.b16 %v4305, %v4304
        %v4324 = vpack.c.b16 %v4307, %v4306
        %v4325 = vpack.c.b16 %v4309, %v4308
        %4326 = vrot.lane.b32.xlu0 %v4310, 64
        %v4327 = vpop.permute.xlu0 %4326
        %4328 = vrot.lane.b32.xlu0 %v4311, 64
        %v4329 = vpop.permute.xlu0 %4328
        %4330 = vrot.lane.b32.xlu0 %v4312, 64
        %v4331 = vpop.permute.xlu0 %4330
        %4332 = vrot.lane.b32.xlu0 %v4313, 64
        %v4333 = vpop.permute.xlu0 %4332
        %4334 = vrot.lane.b32.xlu0 %v4314, 64
        %v4335 = vpop.permute.xlu0 %4334
        %4336 = vrot.lane.b32.xlu0 %v4315, 64
        %v4337 = vpop.permute.xlu0 %4336
        %4338 = vrot.lane.b32.xlu0 %v4316, 64
        %v4339 = vpop.permute.xlu0 %4338
        %4340 = vrot.lane.b32.xlu0 %v4317, 64
        %v4341 = vpop.permute.xlu0 %4340
        %4342 = vrot.lane.b32.xlu0 %v4318, 64
        %v4343 = vpop.permute.xlu0 %4342
        %4344 = vrot.lane.b32.xlu0 %v4319, 64
        %v4345 = vpop.permute.xlu0 %4344
        %4346 = vrot.lane.b32.xlu0 %v4320, 64
        %v4347 = vpop.permute.xlu0 %4346
        %4348 = vrot.lane.b32.xlu0 %v4321, 64
        %v4349 = vpop.permute.xlu0 %4348
        %4350 = vrot.lane.b32.xlu0 %v4322, 64
        %v4351 = vpop.permute.xlu0 %4350
        %4352 = vrot.lane.b32.xlu0 %v4323, 64
        %v4353 = vpop.permute.xlu0 %4352
        %4354 = vrot.lane.b32.xlu0 %v4324, 64
        %v4355 = vpop.permute.xlu0 %4354
        %4356 = vrot.lane.b32.xlu0 %v4325, 64
        %v4357 = vpop.permute.xlu0 %4356
        %v4390 = vunpack.c.l.b16 %v3558
        %v4391 = vunpack.c.l.b16 %v3559
        %v4392 = vunpack.c.l.b16 %v3560
        %v4393 = vunpack.c.l.b16 %v3561
        %v4394 = vunpack.c.l.b16 %v3562
        %v4395 = vunpack.c.l.b16 %v3563
        %v4396 = vunpack.c.l.b16 %v3564
        %v4397 = vunpack.c.l.b16 %v3565
        %v4398 = vunpack.c.l.b16 %v3566
        %v4399 = vunpack.c.l.b16 %v3567
        %v4400 = vunpack.c.l.b16 %v3568
        %v4401 = vunpack.c.l.b16 %v3569
        %v4402 = vunpack.c.l.b16 %v3570
        %v4403 = vunpack.c.l.b16 %v3571
        %v4404 = vunpack.c.l.b16 %v3572
        %v4405 = vunpack.c.l.b16 %v3573
        %v4406 = vunpack.c.l.b16 %v3574
        %v4407 = vunpack.c.l.b16 %v3575
        %v4408 = vunpack.c.l.b16 %v3576
        %v4409 = vunpack.c.l.b16 %v3577
        %v4410 = vunpack.c.l.b16 %v3578
        %v4411 = vunpack.c.l.b16 %v3579
        %v4412 = vunpack.c.l.b16 %v3580
        %v4413 = vunpack.c.l.b16 %v3581
        %v4414 = vunpack.c.l.b16 %v3582
        %v4415 = vunpack.c.l.b16 %v3583
        %v4416 = vunpack.c.l.b16 %v3584
        %v4417 = vunpack.c.l.b16 %v3585
        %v4418 = vunpack.c.l.b16 %v3586
        %v4419 = vunpack.c.l.b16 %v3587
        %v4420 = vunpack.c.l.b16 %v3588
        %v4421 = vunpack.c.l.b16 %v3589
        %v4422 = vpack.c.b16 %v4391, %v4390
        %v4423 = vpack.c.b16 %v4393, %v4392
        %v4424 = vpack.c.b16 %v4395, %v4394
        %v4425 = vpack.c.b16 %v4397, %v4396
        %v4426 = vpack.c.b16 %v4399, %v4398
        %v4427 = vpack.c.b16 %v4401, %v4400
        %v4428 = vpack.c.b16 %v4403, %v4402
        %v4429 = vpack.c.b16 %v4405, %v4404
        %v4430 = vpack.c.b16 %v4407, %v4406
        %v4431 = vpack.c.b16 %v4409, %v4408
        %v4432 = vpack.c.b16 %v4411, %v4410
        %v4433 = vpack.c.b16 %v4413, %v4412
        %v4434 = vpack.c.b16 %v4415, %v4414
        %v4435 = vpack.c.b16 %v4417, %v4416
        %v4436 = vpack.c.b16 %v4419, %v4418
        %v4437 = vpack.c.b16 %v4421, %v4420
        %v4440 = vsel %vm278, %v3654, %v3751
        %v4444 = vsel %vm278, %v3655, %v3753
        %v4448 = vsel %vm278, %v3656, %v3755
        %v4452 = vsel %vm278, %v3657, %v3757
        %v4456 = vsel %vm278, %v3658, %v3759
        %v4460 = vsel %vm278, %v3659, %v3761
        %v4464 = vsel %vm278, %v3660, %v3763
        %v4468 = vsel %vm278, %v3661, %v3765
        %v4472 = vsel %vm278, %v3662, %v3767
        %v4476 = vsel %vm278, %v3663, %v3769
        %v4480 = vsel %vm278, %v3664, %v3771
        %v4484 = vsel %vm278, %v3665, %v3773
        %v4488 = vsel %vm278, %v3666, %v3775
        %v4492 = vsel %vm278, %v3667, %v3777
        %v4496 = vsel %vm278, %v3668, %v3779
        %v4500 = vsel %vm278, %v3669, %v3781
        %v4504 = vsel %vm278, %v3846, %v3943
        %v4508 = vsel %vm278, %v3847, %v3945
        %v4512 = vsel %vm278, %v3848, %v3947
        %v4516 = vsel %vm278, %v3849, %v3949
        %v4520 = vsel %vm278, %v3850, %v3951
        %v4524 = vsel %vm278, %v3851, %v3953
        %v4528 = vsel %vm278, %v3852, %v3955
        %v4532 = vsel %vm278, %v3853, %v3957
        %v4536 = vsel %vm278, %v3854, %v3959
        %v4540 = vsel %vm278, %v3855, %v3961
        %v4544 = vsel %vm278, %v3856, %v3963
        %v4548 = vsel %vm278, %v3857, %v3965
        %v4552 = vsel %vm278, %v3858, %v3967
        %v4556 = vsel %vm278, %v3859, %v3969
        %v4560 = vsel %vm278, %v3860, %v3971
        %v4564 = vsel %vm278, %v3861, %v3973
        %v4568 = vsel %vm278, %v4038, %v4135
        %v4572 = vsel %vm278, %v4039, %v4137
        %v4576 = vsel %vm278, %v4040, %v4139
        %v4580 = vsel %vm278, %v4041, %v4141
        %v4584 = vsel %vm278, %v4042, %v4143
        %v4588 = vsel %vm278, %v4043, %v4145
        %v4592 = vsel %vm278, %v4044, %v4147
        %v4596 = vsel %vm278, %v4045, %v4149
        %v4600 = vsel %vm278, %v4046, %v4151
        %v4604 = vsel %vm278, %v4047, %v4153
        %v4608 = vsel %vm278, %v4048, %v4155
        %v4612 = vsel %vm278, %v4049, %v4157
        %v4616 = vsel %vm278, %v4050, %v4159
        %v4620 = vsel %vm278, %v4051, %v4161
        %v4624 = vsel %vm278, %v4052, %v4163
        %v4628 = vsel %vm278, %v4053, %v4165
        %v4632 = vsel %vm278, %v4230, %v4327
        %v4636 = vsel %vm278, %v4231, %v4329
        %v4640 = vsel %vm278, %v4232, %v4331
        %v4644 = vsel %vm278, %v4233, %v4333
        %v4648 = vsel %vm278, %v4234, %v4335
        %v4652 = vsel %vm278, %v4235, %v4337
        %v4656 = vsel %vm278, %v4236, %v4339
        %v4660 = vsel %vm278, %v4237, %v4341
        %v4664 = vsel %vm278, %v4238, %v4343
        %v4668 = vsel %vm278, %v4239, %v4345
        %v4672 = vsel %vm278, %v4240, %v4347
        %v4676 = vsel %vm278, %v4241, %v4349
        %v4680 = vsel %vm278, %v4242, %v4351
        %v4684 = vsel %vm278, %v4243, %v4353
        %v4688 = vsel %vm278, %v4244, %v4355
        %v4692 = vsel %vm278, %v4245, %v4357
        %v4694 = vld [vmem:[%s4] sm:$0xf]
        %v4695 = vld [vmem:[%s4 + $0x4] sm:$0xf]
        %v4696 = vld [vmem:[%s4 + $0x8] sm:$0xf]
        %v4697 = vld [vmem:[%s4 + $0xc] sm:$0xf]
        %v4698 = vld [vmem:[%s4 + $0x10] sm:$0xf]
        %v4699 = vld [vmem:[%s4 + $0x14] sm:$0xf]
        %v4700 = vld [vmem:[%s4 + $0x18] sm:$0xf]
        %v4701 = vld [vmem:[%s4 + $0x1c] sm:$0xf]
        %v4702 = vld [vmem:[%s4 + $0x20] sm:$0xf]
        %v4703 = vld [vmem:[%s4 + $0x24] sm:$0xf]
        %v4704 = vld [vmem:[%s4 + $0x28] sm:$0xf]
        %v4705 = vld [vmem:[%s4 + $0x2c] sm:$0xf]
        %v4706 = vld [vmem:[%s4 + $0x30] sm:$0xf]
        %v4707 = vld [vmem:[%s4 + $0x34] sm:$0xf]
        %v4708 = vld [vmem:[%s4 + $0x38] sm:$0xf]
        %v4709 = vld [vmem:[%s4 + $0x3c] sm:$0xf]
        %v4710 = vld [vmem:[%s4 + $0x40] sm:$0xf]
        %v4711 = vld [vmem:[%s4 + $0x44] sm:$0xf]
        %v4712 = vld [vmem:[%s4 + $0x48] sm:$0xf]
        %v4713 = vld [vmem:[%s4 + $0x4c] sm:$0xf]
        %v4714 = vld [vmem:[%s4 + $0x50] sm:$0xf]
        %v4715 = vld [vmem:[%s4 + $0x54] sm:$0xf]
        %v4716 = vld [vmem:[%s4 + $0x58] sm:$0xf]
        %v4717 = vld [vmem:[%s4 + $0x5c] sm:$0xf]
        %v4718 = vld [vmem:[%s4 + $0x60] sm:$0xf]
        %v4719 = vld [vmem:[%s4 + $0x64] sm:$0xf]
        %v4720 = vld [vmem:[%s4 + $0x68] sm:$0xf]
        %v4721 = vld [vmem:[%s4 + $0x6c] sm:$0xf]
        %v4722 = vld [vmem:[%s4 + $0x70] sm:$0xf]
        %v4723 = vld [vmem:[%s4 + $0x74] sm:$0xf]
        %v4724 = vld [vmem:[%s4 + $0x78] sm:$0xf]
        %v4725 = vld [vmem:[%s4 + $0x7c] sm:$0xf]
        %v4726 = vld [vmem:[%s4 + $0x80] sm:$0xf]
        %v4727 = vld [vmem:[%s4 + $0x84] sm:$0xf]
        %v4728 = vld [vmem:[%s4 + $0x88] sm:$0xf]
        %v4729 = vld [vmem:[%s4 + $0x8c] sm:$0xf]
        %v4730 = vld [vmem:[%s4 + $0x90] sm:$0xf]
        %v4731 = vld [vmem:[%s4 + $0x94] sm:$0xf]
        %v4732 = vld [vmem:[%s4 + $0x98] sm:$0xf]
        %v4733 = vld [vmem:[%s4 + $0x9c] sm:$0xf]
        %v4734 = vld [vmem:[%s4 + $0xa0] sm:$0xf]
        %v4735 = vld [vmem:[%s4 + $0xa4] sm:$0xf]
        %v4736 = vld [vmem:[%s4 + $0xa8] sm:$0xf]
        %v4737 = vld [vmem:[%s4 + $0xac] sm:$0xf]
        %v4738 = vld [vmem:[%s4 + $0xb0] sm:$0xf]
        %v4739 = vld [vmem:[%s4 + $0xb4] sm:$0xf]
        %v4740 = vld [vmem:[%s4 + $0xb8] sm:$0xf]
        %v4741 = vld [vmem:[%s4 + $0xbc] sm:$0xf]
        %v4742 = vld [vmem:[%s4 + $0xc0] sm:$0xf]
        %v4743 = vld [vmem:[%s4 + $0xc4] sm:$0xf]
        %v4744 = vld [vmem:[%s4 + $0xc8] sm:$0xf]
        %v4745 = vld [vmem:[%s4 + $0xcc] sm:$0xf]
        %v4746 = vld [vmem:[%s4 + $0xd0] sm:$0xf]
        %v4747 = vld [vmem:[%s4 + $0xd4] sm:$0xf]
        %v4748 = vld [vmem:[%s4 + $0xd8] sm:$0xf]
        %v4749 = vld [vmem:[%s4 + $0xdc] sm:$0xf]
        %v4750 = vld [vmem:[%s4 + $0xe0] sm:$0xf]
        %v4751 = vld [vmem:[%s4 + $0xe4] sm:$0xf]
        %v4752 = vld [vmem:[%s4 + $0xe8] sm:$0xf]
        %v4753 = vld [vmem:[%s4 + $0xec] sm:$0xf]
        %v4754 = vld [vmem:[%s4 + $0xf0] sm:$0xf]
        %v4755 = vld [vmem:[%s4 + $0xf4] sm:$0xf]
        %v4756 = vld [vmem:[%s4 + $0xf8] sm:$0xf]
        %v4757 = vld [vmem:[%s4 + $0xfc] sm:$0xf]
        %v4758 = vld [vmem:[%s4 + $0x100] sm:$0xf]
        %v4759 = vld [vmem:[%s4 + $0x104] sm:$0xf]
        %v4760 = vld [vmem:[%s4 + $0x108] sm:$0xf]
        %v4761 = vld [vmem:[%s4 + $0x10c] sm:$0xf]
        %v4762 = vld [vmem:[%s4 + $0x110] sm:$0xf]
        %v4763 = vld [vmem:[%s4 + $0x114] sm:$0xf]
        %v4764 = vld [vmem:[%s4 + $0x118] sm:$0xf]
        %v4765 = vld [vmem:[%s4 + $0x11c] sm:$0xf]
        %v4838 = vunpack.c.l.b16 %v4694
        %v4839 = vunpack.c.l.b16 %v4695
        %v4840 = vunpack.c.l.b16 %v4696
        %v4841 = vunpack.c.l.b16 %v4697
        %v4842 = vunpack.c.l.b16 %v4698
        %v4843 = vunpack.c.l.b16 %v4699
        %v4844 = vunpack.c.l.b16 %v4700
        %v4845 = vunpack.c.l.b16 %v4701
        %v4846 = vunpack.c.l.b16 %v4702
        %v4847 = vunpack.c.l.b16 %v4703
        %v4848 = vunpack.c.l.b16 %v4704
        %v4849 = vunpack.c.l.b16 %v4705
        %v4850 = vunpack.c.l.b16 %v4706
        %v4851 = vunpack.c.l.b16 %v4707
        %v4852 = vunpack.c.l.b16 %v4708
        %v4853 = vunpack.c.l.b16 %v4709
        %v4854 = vunpack.c.l.b16 %v4710
        %v4855 = vunpack.c.l.b16 %v4711
        %v4856 = vunpack.c.l.b16 %v4712
        %v4857 = vunpack.c.l.b16 %v4713
        %v4858 = vunpack.c.l.b16 %v4714
        %v4859 = vunpack.c.l.b16 %v4715
        %v4860 = vunpack.c.l.b16 %v4716
        %v4861 = vunpack.c.l.b16 %v4717
        %v4862 = vunpack.c.l.b16 %v4718
        %v4863 = vunpack.c.l.b16 %v4719
        %v4864 = vunpack.c.l.b16 %v4720
        %v4865 = vunpack.c.l.b16 %v4721
        %v4866 = vunpack.c.l.b16 %v4722
        %v4867 = vunpack.c.l.b16 %v4723
        %v4868 = vunpack.c.l.b16 %v4724
        %v4869 = vunpack.c.l.b16 %v4725
        %v4870 = vunpack.c.l.b16 %v4726
        %v4871 = vunpack.c.l.b16 %v4727
        %v4872 = vunpack.c.l.b16 %v4728
        %v4873 = vunpack.c.l.b16 %v4729
        %v4874 = vunpack.c.l.b16 %v4730
        %v4875 = vunpack.c.l.b16 %v4731
        %v4876 = vunpack.c.l.b16 %v4732
        %v4877 = vunpack.c.l.b16 %v4733
        %v4878 = vunpack.c.l.b16 %v4734
        %v4879 = vunpack.c.l.b16 %v4735
        %v4880 = vunpack.c.l.b16 %v4736
        %v4881 = vunpack.c.l.b16 %v4737
        %v4882 = vunpack.c.l.b16 %v4738
        %v4883 = vunpack.c.l.b16 %v4739
        %v4884 = vunpack.c.l.b16 %v4740
        %v4885 = vunpack.c.l.b16 %v4741
        %v4886 = vunpack.c.l.b16 %v4742
        %v4887 = vunpack.c.l.b16 %v4743
        %v4888 = vunpack.c.l.b16 %v4744
        %v4889 = vunpack.c.l.b16 %v4745
        %v4890 = vunpack.c.l.b16 %v4746
        %v4891 = vunpack.c.l.b16 %v4747
        %v4892 = vunpack.c.l.b16 %v4748
        %v4893 = vunpack.c.l.b16 %v4749
        %v4894 = vunpack.c.l.b16 %v4750
        %v4895 = vunpack.c.l.b16 %v4751
        %v4896 = vunpack.c.l.b16 %v4752
        %v4897 = vunpack.c.l.b16 %v4753
        %v4898 = vunpack.c.l.b16 %v4754
        %v4899 = vunpack.c.l.b16 %v4755
        %v4900 = vunpack.c.l.b16 %v4756
        %v4901 = vunpack.c.l.b16 %v4757
        %v4902 = vunpack.c.l.b16 %v4758
        %v4903 = vunpack.c.l.b16 %v4759
        %v4904 = vunpack.c.l.b16 %v4760
        %v4905 = vunpack.c.l.b16 %v4761
        %v4906 = vunpack.c.l.b16 %v4762
        %v4907 = vunpack.c.l.b16 %v4763
        %v4908 = vunpack.c.l.b16 %v4764
        %v4909 = vunpack.c.l.b16 %v4765
        %v4910 = vpack.c.b16 %v4839, %v4838
        %v4911 = vpack.c.b16 %v4841, %v4840
        %v4912 = vpack.c.b16 %v4843, %v4842
        %v4913 = vpack.c.b16 %v4845, %v4844
        %v4914 = vpack.c.b16 %v4847, %v4846
        %v4915 = vpack.c.b16 %v4849, %v4848
        %v4916 = vpack.c.b16 %v4851, %v4850
        %v4917 = vpack.c.b16 %v4853, %v4852
        %v4918 = vpack.c.b16 %v4855, %v4854
        %v4919 = vpack.c.b16 %v4857, %v4856
        %v4920 = vpack.c.b16 %v4859, %v4858
        %v4921 = vpack.c.b16 %v4861, %v4860
        %v4922 = vpack.c.b16 %v4863, %v4862
        %v4923 = vpack.c.b16 %v4865, %v4864
        %v4924 = vpack.c.b16 %v4867, %v4866
        %v4925 = vpack.c.b16 %v4869, %v4868
        %v4926 = vpack.c.b16 %v4871, %v4870
        %v4927 = vpack.c.b16 %v4873, %v4872
        %v4928 = vpack.c.b16 %v4875, %v4874
        %v4929 = vpack.c.b16 %v4877, %v4876
        %v4930 = vpack.c.b16 %v4879, %v4878
        %v4931 = vpack.c.b16 %v4881, %v4880
        %v4932 = vpack.c.b16 %v4883, %v4882
        %v4933 = vpack.c.b16 %v4885, %v4884
        %v4934 = vpack.c.b16 %v4887, %v4886
        %v4935 = vpack.c.b16 %v4889, %v4888
        %v4936 = vpack.c.b16 %v4891, %v4890
        %v4937 = vpack.c.b16 %v4893, %v4892
        %v4938 = vpack.c.b16 %v4895, %v4894
        %v4939 = vpack.c.b16 %v4897, %v4896
        %v4940 = vpack.c.b16 %v4899, %v4898
        %v4941 = vpack.c.b16 %v4901, %v4900
        %v4942 = vpack.c.b16 %v4903, %v4902
        %v4943 = vpack.c.b16 %v4905, %v4904
        %v4944 = vpack.c.b16 %v4907, %v4906
        %v4945 = vpack.c.b16 %v4909, %v4908
        %v4983 = vsel %vm278, %v4422, 0
        %v4986 = vsel %vm278, %v4423, 0
        %v4989 = vsel %vm278, %v4424, 0
        %v4992 = vsel %vm278, %v4425, 0
        %v4995 = vsel %vm278, %v4426, 0
        %v4998 = vsel %vm278, %v4427, 0
        %v5001 = vsel %vm278, %v4428, 0
        %v5004 = vsel %vm278, %v4429, 0
        %v5007 = vsel %vm278, %v4430, 0
        %v5010 = vsel %vm278, %v4431, 0
        %v5013 = vsel %vm278, %v4432, 0
        %v5016 = vsel %vm278, %v4433, 0
        %v5019 = vsel %vm278, %v4434, 0
        %v5022 = vsel %vm278, %v4435, 0
        %v5025 = vsel %vm278, %v4436, 0
        %v5028 = vsel %vm278, %v4437, 0
        %5030 = vmatpush.bf16.msra.mxu0 %v4917
        %5031 = vmatpush.bf16.msra.mxu0 %v4916
        %5032 = vmatpush.bf16.msra.mxu0 %v4915
        %5033 = vmatpush.bf16.msra.mxu0 %v4914
        %5034 = vmatpush.bf16.msra.mxu0 %v4913
        %5035 = vmatpush.bf16.msra.mxu0 %v4912
        %5036 = vmatpush.bf16.msra.mxu0 %v4911
        %5037 = vmatpush.bf16.msra.mxu0 %v4910
        %5038 = vmatmul.bf16.gmra.mxu0 %v4440
        %v5039 = vpop.f32.mrf.mxu0
        %v5040 = vadd.f32 0.0, %v5039
        %v5041 = vpop.f32.mrf.mxu0
        %v5042 = vadd.f32 0.0, %v5041
        %5043 = vmatmul.bf16.gmra.mxu0 %v4444
        %v5044 = vpop.f32.mrf.mxu0
        %v5045 = vadd.f32 0.0, %v5044
        %v5046 = vpop.f32.mrf.mxu0
        %v5047 = vadd.f32 0.0, %v5046
        %5048 = vmatmul.bf16.gmra.mxu0 %v4448
        %v5049 = vpop.f32.mrf.mxu0
        %v5050 = vadd.f32 0.0, %v5049
        %v5051 = vpop.f32.mrf.mxu0
        %v5052 = vadd.f32 0.0, %v5051
        %5053 = vmatmul.bf16.gmra.mxu0 %v4452
        %v5054 = vpop.f32.mrf.mxu0
        %v5055 = vadd.f32 0.0, %v5054
        %v5056 = vpop.f32.mrf.mxu0
        %v5057 = vadd.f32 0.0, %v5056
        %5058 = vmatmul.bf16.gmra.mxu0 %v4456
        %v5059 = vpop.f32.mrf.mxu0
        %v5060 = vadd.f32 0.0, %v5059
        %v5061 = vpop.f32.mrf.mxu0
        %v5062 = vadd.f32 0.0, %v5061
        %5063 = vmatmul.bf16.gmra.mxu0 %v4460
        %v5064 = vpop.f32.mrf.mxu0
        %v5065 = vadd.f32 0.0, %v5064
        %v5066 = vpop.f32.mrf.mxu0
        %v5067 = vadd.f32 0.0, %v5066
        %5068 = vmatmul.bf16.gmra.mxu0 %v4464
        %v5069 = vpop.f32.mrf.mxu0
        %v5070 = vadd.f32 0.0, %v5069
        %v5071 = vpop.f32.mrf.mxu0
        %v5072 = vadd.f32 0.0, %v5071
        %5073 = vmatmul.bf16.gmra.mxu0 %v4468
        %v5074 = vpop.f32.mrf.mxu0
        %v5075 = vadd.f32 0.0, %v5074
        %v5076 = vpop.f32.mrf.mxu0
        %v5077 = vadd.f32 0.0, %v5076
        %5078 = vmatmul.bf16.gmra.mxu0 %v4472
        %v5079 = vpop.f32.mrf.mxu0
        %v5080 = vadd.f32 0.0, %v5079
        %v5081 = vpop.f32.mrf.mxu0
        %v5082 = vadd.f32 0.0, %v5081
        %5083 = vmatmul.bf16.gmra.mxu0 %v4476
        %v5084 = vpop.f32.mrf.mxu0
        %v5085 = vadd.f32 0.0, %v5084
        %v5086 = vpop.f32.mrf.mxu0
        %v5087 = vadd.f32 0.0, %v5086
        %5088 = vmatmul.bf16.gmra.mxu0 %v4480
        %v5089 = vpop.f32.mrf.mxu0
        %v5090 = vadd.f32 0.0, %v5089
        %v5091 = vpop.f32.mrf.mxu0
        %v5092 = vadd.f32 0.0, %v5091
        %5093 = vmatmul.bf16.gmra.mxu0 %v4484
        %v5094 = vpop.f32.mrf.mxu0
        %v5095 = vadd.f32 0.0, %v5094
        %v5096 = vpop.f32.mrf.mxu0
        %v5097 = vadd.f32 0.0, %v5096
        %5098 = vmatmul.bf16.gmra.mxu0 %v4488
        %v5099 = vpop.f32.mrf.mxu0
        %v5100 = vadd.f32 0.0, %v5099
        %v5101 = vpop.f32.mrf.mxu0
        %v5102 = vadd.f32 0.0, %v5101
        %5103 = vmatmul.bf16.gmra.mxu0 %v4492
        %v5104 = vpop.f32.mrf.mxu0
        %v5105 = vadd.f32 0.0, %v5104
        %v5106 = vpop.f32.mrf.mxu0
        %v5107 = vadd.f32 0.0, %v5106
        %5108 = vmatmul.bf16.gmra.mxu0 %v4496
        %v5109 = vpop.f32.mrf.mxu0
        %v5110 = vadd.f32 0.0, %v5109
        %v5111 = vpop.f32.mrf.mxu0
        %v5112 = vadd.f32 0.0, %v5111
        %5113 = vmatmul.bf16.gmra.mxu0 %v4500
        %v5114 = vpop.f32.mrf.mxu0
        %v5115 = vadd.f32 0.0, %v5114
        %v5116 = vpop.f32.mrf.mxu0
        %v5117 = vadd.f32 0.0, %v5116
        %5118 = vdwg.mxu0
        %5119 = vmatpush.bf16.msra.mxu0 %v4925
        %5120 = vmatpush.bf16.msra.mxu0 %v4924
        %5121 = vmatpush.bf16.msra.mxu0 %v4923
        %5122 = vmatpush.bf16.msra.mxu0 %v4922
        %5123 = vmatpush.bf16.msra.mxu0 %v4921
        %5124 = vmatpush.bf16.msra.mxu0 %v4920
        %5125 = vmatpush.bf16.msra.mxu0 %v4919
        %5126 = vmatpush.bf16.msra.mxu0 %v4918
        %5127 = vmatmul.bf16.gmra.mxu0 %v4504
        %v5128 = vpop.f32.mrf.mxu0
        %v5129 = vadd.f32 %v5040, %v5128
        %v5130 = vpop.f32.mrf.mxu0
        %v5131 = vadd.f32 %v5042, %v5130
        %5132 = vmatmul.bf16.gmra.mxu0 %v4508
        %v5133 = vpop.f32.mrf.mxu0
        %v5134 = vadd.f32 %v5045, %v5133
        %v5135 = vpop.f32.mrf.mxu0
        %v5136 = vadd.f32 %v5047, %v5135
        %5137 = vmatmul.bf16.gmra.mxu0 %v4512
        %v5138 = vpop.f32.mrf.mxu0
        %v5139 = vadd.f32 %v5050, %v5138
        %v5140 = vpop.f32.mrf.mxu0
        %v5141 = vadd.f32 %v5052, %v5140
        %5142 = vmatmul.bf16.gmra.mxu0 %v4516
        %v5143 = vpop.f32.mrf.mxu0
        %v5144 = vadd.f32 %v5055, %v5143
        %v5145 = vpop.f32.mrf.mxu0
        %v5146 = vadd.f32 %v5057, %v5145
        %5147 = vmatmul.bf16.gmra.mxu0 %v4520
        %v5148 = vpop.f32.mrf.mxu0
        %v5149 = vadd.f32 %v5060, %v5148
        %v5150 = vpop.f32.mrf.mxu0
        %v5151 = vadd.f32 %v5062, %v5150
        %5152 = vmatmul.bf16.gmra.mxu0 %v4524
        %v5153 = vpop.f32.mrf.mxu0
        %v5154 = vadd.f32 %v5065, %v5153
        %v5155 = vpop.f32.mrf.mxu0
        %v5156 = vadd.f32 %v5067, %v5155
        %5157 = vmatmul.bf16.gmra.mxu0 %v4528
        %v5158 = vpop.f32.mrf.mxu0
        %v5159 = vadd.f32 %v5070, %v5158
        %v5160 = vpop.f32.mrf.mxu0
        %v5161 = vadd.f32 %v5072, %v5160
        %5162 = vmatmul.bf16.gmra.mxu0 %v4532
        %v5163 = vpop.f32.mrf.mxu0
        %v5164 = vadd.f32 %v5075, %v5163
        %v5165 = vpop.f32.mrf.mxu0
        %v5166 = vadd.f32 %v5077, %v5165
        %5167 = vmatmul.bf16.gmra.mxu0 %v4536
        %v5168 = vpop.f32.mrf.mxu0
        %v5169 = vadd.f32 %v5080, %v5168
        %v5170 = vpop.f32.mrf.mxu0
        %v5171 = vadd.f32 %v5082, %v5170
        %5172 = vmatmul.bf16.gmra.mxu0 %v4540
        %v5173 = vpop.f32.mrf.mxu0
        %v5174 = vadd.f32 %v5085, %v5173
        %v5175 = vpop.f32.mrf.mxu0
        %v5176 = vadd.f32 %v5087, %v5175
        %5177 = vmatmul.bf16.gmra.mxu0 %v4544
        %v5178 = vpop.f32.mrf.mxu0
        %v5179 = vadd.f32 %v5090, %v5178
        %v5180 = vpop.f32.mrf.mxu0
        %v5181 = vadd.f32 %v5092, %v5180
        %5182 = vmatmul.bf16.gmra.mxu0 %v4548
        %v5183 = vpop.f32.mrf.mxu0
        %v5184 = vadd.f32 %v5095, %v5183
        %v5185 = vpop.f32.mrf.mxu0
        %v5186 = vadd.f32 %v5097, %v5185
        %5187 = vmatmul.bf16.gmra.mxu0 %v4552
        %v5188 = vpop.f32.mrf.mxu0
        %v5189 = vadd.f32 %v5100, %v5188
        %v5190 = vpop.f32.mrf.mxu0
        %v5191 = vadd.f32 %v5102, %v5190
        %5192 = vmatmul.bf16.gmra.mxu0 %v4556
        %v5193 = vpop.f32.mrf.mxu0
        %v5194 = vadd.f32 %v5105, %v5193
        %v5195 = vpop.f32.mrf.mxu0
        %v5196 = vadd.f32 %v5107, %v5195
        %5197 = vmatmul.bf16.gmra.mxu0 %v4560
        %v5198 = vpop.f32.mrf.mxu0
        %v5199 = vadd.f32 %v5110, %v5198
        %v5200 = vpop.f32.mrf.mxu0
        %v5201 = vadd.f32 %v5112, %v5200
        %5202 = vmatmul.bf16.gmra.mxu0 %v4564
        %v5203 = vpop.f32.mrf.mxu0
        %v5204 = vadd.f32 %v5115, %v5203
        %v5205 = vpop.f32.mrf.mxu0
        %v5206 = vadd.f32 %v5117, %v5205
        %5207 = vdwg.mxu0
        %5208 = vmatpush.bf16.msra.mxu0 %v4933
        %5209 = vmatpush.bf16.msra.mxu0 %v4932
        %5210 = vmatpush.bf16.msra.mxu0 %v4931
        %5211 = vmatpush.bf16.msra.mxu0 %v4930
        %5212 = vmatpush.bf16.msra.mxu0 %v4929
        %5213 = vmatpush.bf16.msra.mxu0 %v4928
        %5214 = vmatpush.bf16.msra.mxu0 %v4927
        %5215 = vmatpush.bf16.msra.mxu0 %v4926
        %5216 = vmatmul.bf16.gmra.mxu0 %v4568
        %v5217 = vpop.f32.mrf.mxu0
        %v5218 = vadd.f32 %v5129, %v5217
        %v5219 = vpop.f32.mrf.mxu0
        %v5220 = vadd.f32 %v5131, %v5219
        %5221 = vmatmul.bf16.gmra.mxu0 %v4572
        %v5222 = vpop.f32.mrf.mxu0
        %v5223 = vadd.f32 %v5134, %v5222
        %v5224 = vpop.f32.mrf.mxu0
        %v5225 = vadd.f32 %v5136, %v5224
        %5226 = vmatmul.bf16.gmra.mxu0 %v4576
        %v5227 = vpop.f32.mrf.mxu0
        %v5228 = vadd.f32 %v5139, %v5227
        %v5229 = vpop.f32.mrf.mxu0
        %v5230 = vadd.f32 %v5141, %v5229
        %5231 = vmatmul.bf16.gmra.mxu0 %v4580
        %v5232 = vpop.f32.mrf.mxu0
        %v5233 = vadd.f32 %v5144, %v5232
        %v5234 = vpop.f32.mrf.mxu0
        %v5235 = vadd.f32 %v5146, %v5234
        %5236 = vmatmul.bf16.gmra.mxu0 %v4584
        %v5237 = vpop.f32.mrf.mxu0
        %v5238 = vadd.f32 %v5149, %v5237
        %v5239 = vpop.f32.mrf.mxu0
        %v5240 = vadd.f32 %v5151, %v5239
        %5241 = vmatmul.bf16.gmra.mxu0 %v4588
        %v5242 = vpop.f32.mrf.mxu0
        %v5243 = vadd.f32 %v5154, %v5242
        %v5244 = vpop.f32.mrf.mxu0
        %v5245 = vadd.f32 %v5156, %v5244
        %5246 = vmatmul.bf16.gmra.mxu0 %v4592
        %v5247 = vpop.f32.mrf.mxu0
        %v5248 = vadd.f32 %v5159, %v5247
        %v5249 = vpop.f32.mrf.mxu0
        %v5250 = vadd.f32 %v5161, %v5249
        %5251 = vmatmul.bf16.gmra.mxu0 %v4596
        %v5252 = vpop.f32.mrf.mxu0
        %v5253 = vadd.f32 %v5164, %v5252
        %v5254 = vpop.f32.mrf.mxu0
        %v5255 = vadd.f32 %v5166, %v5254
        %5256 = vmatmul.bf16.gmra.mxu0 %v4600
        %v5257 = vpop.f32.mrf.mxu0
        %v5258 = vadd.f32 %v5169, %v5257
        %v5259 = vpop.f32.mrf.mxu0
        %v5260 = vadd.f32 %v5171, %v5259
        %5261 = vmatmul.bf16.gmra.mxu0 %v4604
        %v5262 = vpop.f32.mrf.mxu0
        %v5263 = vadd.f32 %v5174, %v5262
        %v5264 = vpop.f32.mrf.mxu0
        %v5265 = vadd.f32 %v5176, %v5264
        %5266 = vmatmul.bf16.gmra.mxu0 %v4608
        %v5267 = vpop.f32.mrf.mxu0
        %v5268 = vadd.f32 %v5179, %v5267
        %v5269 = vpop.f32.mrf.mxu0
        %v5270 = vadd.f32 %v5181, %v5269
        %5271 = vmatmul.bf16.gmra.mxu0 %v4612
        %v5272 = vpop.f32.mrf.mxu0
        %v5273 = vadd.f32 %v5184, %v5272
        %v5274 = vpop.f32.mrf.mxu0
        %v5275 = vadd.f32 %v5186, %v5274
        %5276 = vmatmul.bf16.gmra.mxu0 %v4616
        %v5277 = vpop.f32.mrf.mxu0
        %v5278 = vadd.f32 %v5189, %v5277
        %v5279 = vpop.f32.mrf.mxu0
        %v5280 = vadd.f32 %v5191, %v5279
        %5281 = vmatmul.bf16.gmra.mxu0 %v4620
        %v5282 = vpop.f32.mrf.mxu0
        %v5283 = vadd.f32 %v5194, %v5282
        %v5284 = vpop.f32.mrf.mxu0
        %v5285 = vadd.f32 %v5196, %v5284
        %5286 = vmatmul.bf16.gmra.mxu0 %v4624
        %v5287 = vpop.f32.mrf.mxu0
        %v5288 = vadd.f32 %v5199, %v5287
        %v5289 = vpop.f32.mrf.mxu0
        %v5290 = vadd.f32 %v5201, %v5289
        %5291 = vmatmul.bf16.gmra.mxu0 %v4628
        %v5292 = vpop.f32.mrf.mxu0
        %v5293 = vadd.f32 %v5204, %v5292
        %v5294 = vpop.f32.mrf.mxu0
        %v5295 = vadd.f32 %v5206, %v5294
        %5296 = vdwg.mxu0
        %5297 = vmatpush.bf16.msra.mxu0 %v4941
        %5298 = vmatpush.bf16.msra.mxu0 %v4940
        %5299 = vmatpush.bf16.msra.mxu0 %v4939
        %5300 = vmatpush.bf16.msra.mxu0 %v4938
        %5301 = vmatpush.bf16.msra.mxu0 %v4937
        %5302 = vmatpush.bf16.msra.mxu0 %v4936
        %5303 = vmatpush.bf16.msra.mxu0 %v4935
        %5304 = vmatpush.bf16.msra.mxu0 %v4934
        %5305 = vmatmul.bf16.gmra.mxu0 %v4632
        %v5306 = vpop.f32.mrf.mxu0
        %v5307 = vadd.f32 %v5218, %v5306
        %v5308 = vpop.f32.mrf.mxu0
        %v5309 = vadd.f32 %v5220, %v5308
        %5310 = vmatmul.bf16.gmra.mxu0 %v4636
        %v5311 = vpop.f32.mrf.mxu0
        %v5312 = vadd.f32 %v5223, %v5311
        %v5313 = vpop.f32.mrf.mxu0
        %v5314 = vadd.f32 %v5225, %v5313
        %5315 = vmatmul.bf16.gmra.mxu0 %v4640
        %v5316 = vpop.f32.mrf.mxu0
        %v5317 = vadd.f32 %v5228, %v5316
        %v5318 = vpop.f32.mrf.mxu0
        %v5319 = vadd.f32 %v5230, %v5318
        %5320 = vmatmul.bf16.gmra.mxu0 %v4644
        %v5321 = vpop.f32.mrf.mxu0
        %v5322 = vadd.f32 %v5233, %v5321
        %v5323 = vpop.f32.mrf.mxu0
        %v5324 = vadd.f32 %v5235, %v5323
        %5325 = vmatmul.bf16.gmra.mxu0 %v4648
        %v5326 = vpop.f32.mrf.mxu0
        %v5327 = vadd.f32 %v5238, %v5326
        %v5328 = vpop.f32.mrf.mxu0
        %v5329 = vadd.f32 %v5240, %v5328
        %5330 = vmatmul.bf16.gmra.mxu0 %v4652
        %v5331 = vpop.f32.mrf.mxu0
        %v5332 = vadd.f32 %v5243, %v5331
        %v5333 = vpop.f32.mrf.mxu0
        %v5334 = vadd.f32 %v5245, %v5333
        %5335 = vmatmul.bf16.gmra.mxu0 %v4656
        %v5336 = vpop.f32.mrf.mxu0
        %v5337 = vadd.f32 %v5248, %v5336
        %v5338 = vpop.f32.mrf.mxu0
        %v5339 = vadd.f32 %v5250, %v5338
        %5340 = vmatmul.bf16.gmra.mxu0 %v4660
        %v5341 = vpop.f32.mrf.mxu0
        %v5342 = vadd.f32 %v5253, %v5341
        %v5343 = vpop.f32.mrf.mxu0
        %v5344 = vadd.f32 %v5255, %v5343
        %5345 = vmatmul.bf16.gmra.mxu0 %v4664
        %v5346 = vpop.f32.mrf.mxu0
        %v5347 = vadd.f32 %v5258, %v5346
        %v5348 = vpop.f32.mrf.mxu0
        %v5349 = vadd.f32 %v5260, %v5348
        %5350 = vmatmul.bf16.gmra.mxu0 %v4668
        %v5351 = vpop.f32.mrf.mxu0
        %v5352 = vadd.f32 %v5263, %v5351
        %v5353 = vpop.f32.mrf.mxu0
        %v5354 = vadd.f32 %v5265, %v5353
        %5355 = vmatmul.bf16.gmra.mxu0 %v4672
        %v5356 = vpop.f32.mrf.mxu0
        %v5357 = vadd.f32 %v5268, %v5356
        %v5358 = vpop.f32.mrf.mxu0
        %v5359 = vadd.f32 %v5270, %v5358
        %5360 = vmatmul.bf16.gmra.mxu0 %v4676
        %v5361 = vpop.f32.mrf.mxu0
        %v5362 = vadd.f32 %v5273, %v5361
        %v5363 = vpop.f32.mrf.mxu0
        %v5364 = vadd.f32 %v5275, %v5363
        %5365 = vmatmul.bf16.gmra.mxu0 %v4680
        %v5366 = vpop.f32.mrf.mxu0
        %v5367 = vadd.f32 %v5278, %v5366
        %v5368 = vpop.f32.mrf.mxu0
        %v5369 = vadd.f32 %v5280, %v5368
        %5370 = vmatmul.bf16.gmra.mxu0 %v4684
        %v5371 = vpop.f32.mrf.mxu0
        %v5372 = vadd.f32 %v5283, %v5371
        %v5373 = vpop.f32.mrf.mxu0
        %v5374 = vadd.f32 %v5285, %v5373
        %5375 = vmatmul.bf16.gmra.mxu0 %v4688
        %v5376 = vpop.f32.mrf.mxu0
        %v5377 = vadd.f32 %v5288, %v5376
        %v5378 = vpop.f32.mrf.mxu0
        %v5379 = vadd.f32 %v5290, %v5378
        %5380 = vmatmul.bf16.gmra.mxu0 %v4692
        %v5381 = vpop.f32.mrf.mxu0
        %v5382 = vadd.f32 %v5293, %v5381
        %v5383 = vpop.f32.mrf.mxu0
        %v5384 = vadd.f32 %v5295, %v5383
        %5385 = vdwg.mxu0
        %5386 = vmatpush.bf16.msra.mxu0 0
        %5387 = vmatpush.bf16.msra.mxu0 0
        %5388 = vmatpush.bf16.msra.mxu0 0
        %5389 = vmatpush.bf16.msra.mxu0 0
        %5390 = vmatpush.bf16.msra.mxu0 %v4945
        %5391 = vmatpush.bf16.msra.mxu0 %v4944
        %5392 = vmatpush.bf16.msra.mxu0 %v4943
        %5393 = vmatpush.bf16.msra.mxu0 %v4942
        %5394 = vmatmul.bf16.gmra.mxu0 %v4983
        %v5395 = vpop.f32.mrf.mxu0
        %v5396 = vadd.f32 %v5307, %v5395
        %v5397 = vpop.f32.mrf.mxu0
        %v5398 = vadd.f32 %v5309, %v5397
        %5399 = vmatmul.bf16.gmra.mxu0 %v4986
        %v5400 = vpop.f32.mrf.mxu0
        %v5401 = vadd.f32 %v5312, %v5400
        %v5402 = vpop.f32.mrf.mxu0
        %v5403 = vadd.f32 %v5314, %v5402
        %5404 = vmatmul.bf16.gmra.mxu0 %v4989
        %v5405 = vpop.f32.mrf.mxu0
        %v5406 = vadd.f32 %v5317, %v5405
        %v5407 = vpop.f32.mrf.mxu0
        %v5408 = vadd.f32 %v5319, %v5407
        %5409 = vmatmul.bf16.gmra.mxu0 %v4992
        %v5410 = vpop.f32.mrf.mxu0
        %v5411 = vadd.f32 %v5322, %v5410
        %v5412 = vpop.f32.mrf.mxu0
        %v5413 = vadd.f32 %v5324, %v5412
        %5414 = vmatmul.bf16.gmra.mxu0 %v4995
        %v5415 = vpop.f32.mrf.mxu0
        %v5416 = vadd.f32 %v5327, %v5415
        %v5417 = vpop.f32.mrf.mxu0
        %v5418 = vadd.f32 %v5329, %v5417
        %5419 = vmatmul.bf16.gmra.mxu0 %v4998
        %v5420 = vpop.f32.mrf.mxu0
        %v5421 = vadd.f32 %v5332, %v5420
        %v5422 = vpop.f32.mrf.mxu0
        %v5423 = vadd.f32 %v5334, %v5422
        %5424 = vmatmul.bf16.gmra.mxu0 %v5001
        %v5425 = vpop.f32.mrf.mxu0
        %v5426 = vadd.f32 %v5337, %v5425
        %v5427 = vpop.f32.mrf.mxu0
        %v5428 = vadd.f32 %v5339, %v5427
        %5429 = vmatmul.bf16.gmra.mxu0 %v5004
        %v5430 = vpop.f32.mrf.mxu0
        %v5431 = vadd.f32 %v5342, %v5430
        %v5432 = vpop.f32.mrf.mxu0
        %v5433 = vadd.f32 %v5344, %v5432
        %5434 = vmatmul.bf16.gmra.mxu0 %v5007
        %v5435 = vpop.f32.mrf.mxu0
        %v5436 = vadd.f32 %v5347, %v5435
        %v5437 = vpop.f32.mrf.mxu0
        %v5438 = vadd.f32 %v5349, %v5437
        %5439 = vmatmul.bf16.gmra.mxu0 %v5010
        %v5440 = vpop.f32.mrf.mxu0
        %v5441 = vadd.f32 %v5352, %v5440
        %v5442 = vpop.f32.mrf.mxu0
        %v5443 = vadd.f32 %v5354, %v5442
        %5444 = vmatmul.bf16.gmra.mxu0 %v5013
        %v5445 = vpop.f32.mrf.mxu0
        %v5446 = vadd.f32 %v5357, %v5445
        %v5447 = vpop.f32.mrf.mxu0
        %v5448 = vadd.f32 %v5359, %v5447
        %5449 = vmatmul.bf16.gmra.mxu0 %v5016
        %v5450 = vpop.f32.mrf.mxu0
        %v5451 = vadd.f32 %v5362, %v5450
        %v5452 = vpop.f32.mrf.mxu0
        %v5453 = vadd.f32 %v5364, %v5452
        %5454 = vmatmul.bf16.gmra.mxu0 %v5019
        %v5455 = vpop.f32.mrf.mxu0
        %v5456 = vadd.f32 %v5367, %v5455
        %v5457 = vpop.f32.mrf.mxu0
        %v5458 = vadd.f32 %v5369, %v5457
        %5459 = vmatmul.bf16.gmra.mxu0 %v5022
        %v5460 = vpop.f32.mrf.mxu0
        %v5461 = vadd.f32 %v5372, %v5460
        %v5462 = vpop.f32.mrf.mxu0
        %v5463 = vadd.f32 %v5374, %v5462
        %5464 = vmatmul.bf16.gmra.mxu0 %v5025
        %v5465 = vpop.f32.mrf.mxu0
        %v5466 = vadd.f32 %v5377, %v5465
        %v5467 = vpop.f32.mrf.mxu0
        %v5468 = vadd.f32 %v5379, %v5467
        %5469 = vmatmul.bf16.gmra.mxu0 %v5028
        %v5470 = vpop.f32.mrf.mxu0
        %v5471 = vadd.f32 %v5382, %v5470
        %v5472 = vpop.f32.mrf.mxu0
        %v5473 = vadd.f32 %v5384, %v5472
        %5474 = vdwg.mxu0
        %v5475 = vld [vmem:[%s5] sm:$0x1]
        %v5477 = vperm.slane %v5475, 0
        %v5479 = vmul.f32 %v5396, %v5477
        %v5480 = vmul.f32 %v5398, %v5477
        %v5481 = vmul.f32 %v5401, %v5477
        %v5482 = vmul.f32 %v5403, %v5477
        %v5483 = vmul.f32 %v5406, %v5477
        %v5484 = vmul.f32 %v5408, %v5477
        %v5485 = vmul.f32 %v5411, %v5477
        %v5486 = vmul.f32 %v5413, %v5477
        %v5487 = vmul.f32 %v5416, %v5477
        %v5488 = vmul.f32 %v5418, %v5477
        %v5489 = vmul.f32 %v5421, %v5477
        %v5490 = vmul.f32 %v5423, %v5477
        %v5491 = vmul.f32 %v5426, %v5477
        %v5492 = vmul.f32 %v5428, %v5477
        %v5493 = vmul.f32 %v5431, %v5477
        %v5494 = vmul.f32 %v5433, %v5477
        %v5495 = vmul.f32 %v5436, %v5477
        %v5496 = vmul.f32 %v5438, %v5477
        %v5497 = vmul.f32 %v5441, %v5477
        %v5498 = vmul.f32 %v5443, %v5477
        %v5499 = vmul.f32 %v5446, %v5477
        %v5500 = vmul.f32 %v5448, %v5477
        %v5501 = vmul.f32 %v5451, %v5477
        %v5502 = vmul.f32 %v5453, %v5477
        %v5503 = vmul.f32 %v5456, %v5477
        %v5504 = vmul.f32 %v5458, %v5477
        %v5505 = vmul.f32 %v5461, %v5477
        %v5506 = vmul.f32 %v5463, %v5477
        %v5507 = vmul.f32 %v5466, %v5477
        %v5508 = vmul.f32 %v5468, %v5477
        %v5509 = vmul.f32 %v5471, %v5477
        %v5510 = vmul.f32 %v5473, %v5477
        %v5511 = vld [vmem:[%s6] sm:$0x1]
        %v5513 = vperm.slane %v5511, 0
        %v5515 = vadd.f32 %v5479, %v5513
        %v5516 = vadd.f32 %v5480, %v5513
        %v5517 = vadd.f32 %v5481, %v5513
        %v5518 = vadd.f32 %v5482, %v5513
        %v5519 = vadd.f32 %v5483, %v5513
        %v5520 = vadd.f32 %v5484, %v5513
        %v5521 = vadd.f32 %v5485, %v5513
        %v5522 = vadd.f32 %v5486, %v5513
        %v5523 = vadd.f32 %v5487, %v5513
        %v5524 = vadd.f32 %v5488, %v5513
        %v5525 = vadd.f32 %v5489, %v5513
        %v5526 = vadd.f32 %v5490, %v5513
        %v5527 = vadd.f32 %v5491, %v5513
        %v5528 = vadd.f32 %v5492, %v5513
        %v5529 = vadd.f32 %v5493, %v5513
        %v5530 = vadd.f32 %v5494, %v5513
        %v5531 = vadd.f32 %v5495, %v5513
        %v5532 = vadd.f32 %v5496, %v5513
        %v5533 = vadd.f32 %v5497, %v5513
        %v5534 = vadd.f32 %v5498, %v5513
        %v5535 = vadd.f32 %v5499, %v5513
        %v5536 = vadd.f32 %v5500, %v5513
        %v5537 = vadd.f32 %v5501, %v5513
        %v5538 = vadd.f32 %v5502, %v5513
        %v5539 = vadd.f32 %v5503, %v5513
        %v5540 = vadd.f32 %v5504, %v5513
        %v5541 = vadd.f32 %v5505, %v5513
        %v5542 = vadd.f32 %v5506, %v5513
        %v5543 = vadd.f32 %v5507, %v5513
        %v5544 = vadd.f32 %v5508, %v5513
        %v5545 = vadd.f32 %v5509, %v5513
        %v5546 = vadd.f32 %v5510, %v5513
        %v5547 = vld [vmem:[%s276] sm:$0xff]
        %v5548 = vld [vmem:[%s276 + $0x8] sm:$0xff]
        %v5549 = vld [vmem:[%s276 + $0x10] sm:$0xff]
        %v5550 = vld [vmem:[%s276 + $0x18] sm:$0xff]
        %v5551 = vld [vmem:[%s276 + $0x20] sm:$0xff]
        %v5552 = vld [vmem:[%s276 + $0x28] sm:$0xff]
        %v5553 = vld [vmem:[%s276 + $0x30] sm:$0xff]
        %v5554 = vld [vmem:[%s276 + $0x38] sm:$0xff]
        %v5555 = vld [vmem:[%s276 + $0x40] sm:$0xff]
        %v5556 = vld [vmem:[%s276 + $0x48] sm:$0xff]
        %v5557 = vld [vmem:[%s276 + $0x50] sm:$0xff]
        %v5558 = vld [vmem:[%s276 + $0x58] sm:$0xff]
        %v5559 = vld [vmem:[%s276 + $0x60] sm:$0xff]
        %v5560 = vld [vmem:[%s276 + $0x68] sm:$0xff]
        %v5561 = vld [vmem:[%s276 + $0x70] sm:$0xff]
        %v5562 = vld [vmem:[%s276 + $0x78] sm:$0xff]
        %v5563 = vld [vmem:[%s276 + $0x80] sm:$0xff]
        %v5564 = vld [vmem:[%s276 + $0x88] sm:$0xff]
        %v5565 = vld [vmem:[%s276 + $0x90] sm:$0xff]
        %v5566 = vld [vmem:[%s276 + $0x98] sm:$0xff]
        %v5567 = vld [vmem:[%s276 + $0xa0] sm:$0xff]
        %v5568 = vld [vmem:[%s276 + $0xa8] sm:$0xff]
        %v5569 = vld [vmem:[%s276 + $0xb0] sm:$0xff]
        %v5570 = vld [vmem:[%s276 + $0xb8] sm:$0xff]
        %v5571 = vld [vmem:[%s276 + $0xc0] sm:$0xff]
        %v5572 = vld [vmem:[%s276 + $0xc8] sm:$0xff]
        %v5573 = vld [vmem:[%s276 + $0xd0] sm:$0xff]
        %v5574 = vld [vmem:[%s276 + $0xd8] sm:$0xff]
        %v5575 = vld [vmem:[%s276 + $0xe0] sm:$0xff]
        %v5576 = vld [vmem:[%s276 + $0xe8] sm:$0xff]
        %v5577 = vld [vmem:[%s276 + $0xf0] sm:$0xff]
        %v5578 = vld [vmem:[%s276 + $0xf8] sm:$0xff]
        %v5579 = vadd.f32 %v5515, %v5547
        %v5580 = vadd.f32 %v5516, %v5548
        %v5581 = vadd.f32 %v5517, %v5549
        %v5582 = vadd.f32 %v5518, %v5550
        %v5583 = vadd.f32 %v5519, %v5551
        %v5584 = vadd.f32 %v5520, %v5552
        %v5585 = vadd.f32 %v5521, %v5553
        %v5586 = vadd.f32 %v5522, %v5554
        %v5587 = vadd.f32 %v5523, %v5555
        %v5588 = vadd.f32 %v5524, %v5556
        %v5589 = vadd.f32 %v5525, %v5557
        %v5590 = vadd.f32 %v5526, %v5558
        %v5591 = vadd.f32 %v5527, %v5559
        %v5592 = vadd.f32 %v5528, %v5560
        %v5593 = vadd.f32 %v5529, %v5561
        %v5594 = vadd.f32 %v5530, %v5562
        %v5595 = vadd.f32 %v5531, %v5563
        %v5596 = vadd.f32 %v5532, %v5564
        %v5597 = vadd.f32 %v5533, %v5565
        %v5598 = vadd.f32 %v5534, %v5566
        %v5599 = vadd.f32 %v5535, %v5567
        %v5600 = vadd.f32 %v5536, %v5568
        %v5601 = vadd.f32 %v5537, %v5569
        %v5602 = vadd.f32 %v5538, %v5570
        %v5603 = vadd.f32 %v5539, %v5571
        %v5604 = vadd.f32 %v5540, %v5572
        %v5605 = vadd.f32 %v5541, %v5573
        %v5606 = vadd.f32 %v5542, %v5574
        %v5607 = vadd.f32 %v5543, %v5575
        %v5608 = vadd.f32 %v5544, %v5576
        %v5609 = vadd.f32 %v5545, %v5577
        %v5610 = vadd.f32 %v5546, %v5578
        %5611 = vst.msk [vmem:[%s271] sm:$0xff] %vm278, %v5579
        %5612 = vst.msk [vmem:[%s271 + $0x8] sm:$0xff] %vm278, %v5580
        %5613 = vst.msk [vmem:[%s271 + $0x10] sm:$0xff] %vm278, %v5581
        %5614 = vst.msk [vmem:[%s271 + $0x18] sm:$0xff] %vm278, %v5582
        %5615 = vst.msk [vmem:[%s271 + $0x20] sm:$0xff] %vm278, %v5583
        %5616 = vst.msk [vmem:[%s271 + $0x28] sm:$0xff] %vm278, %v5584
        %5617 = vst.msk [vmem:[%s271 + $0x30] sm:$0xff] %vm278, %v5585
        %5618 = vst.msk [vmem:[%s271 + $0x38] sm:$0xff] %vm278, %v5586
        %5619 = vst.msk [vmem:[%s271 + $0x40] sm:$0xff] %vm278, %v5587
        %5620 = vst.msk [vmem:[%s271 + $0x48] sm:$0xff] %vm278, %v5588
        %5621 = vst.msk [vmem:[%s271 + $0x50] sm:$0xff] %vm278, %v5589
        %5622 = vst.msk [vmem:[%s271 + $0x58] sm:$0xff] %vm278, %v5590
        %5623 = vst.msk [vmem:[%s271 + $0x60] sm:$0xff] %vm278, %v5591
        %5624 = vst.msk [vmem:[%s271 + $0x68] sm:$0xff] %vm278, %v5592
        %5625 = vst.msk [vmem:[%s271 + $0x70] sm:$0xff] %vm278, %v5593
        %5626 = vst.msk [vmem:[%s271 + $0x78] sm:$0xff] %vm278, %v5594
        %5627 = vst.msk [vmem:[%s271 + $0x80] sm:$0xff] %vm278, %v5595
        %5628 = vst.msk [vmem:[%s271 + $0x88] sm:$0xff] %vm278, %v5596
        %5629 = vst.msk [vmem:[%s271 + $0x90] sm:$0xff] %vm278, %v5597
        %5630 = vst.msk [vmem:[%s271 + $0x98] sm:$0xff] %vm278, %v5598
        %5631 = vst.msk [vmem:[%s271 + $0xa0] sm:$0xff] %vm278, %v5599
        %5632 = vst.msk [vmem:[%s271 + $0xa8] sm:$0xff] %vm278, %v5600
        %5633 = vst.msk [vmem:[%s271 + $0xb0] sm:$0xff] %vm278, %v5601
        %5634 = vst.msk [vmem:[%s271 + $0xb8] sm:$0xff] %vm278, %v5602
        %5635 = vst.msk [vmem:[%s271 + $0xc0] sm:$0xff] %vm278, %v5603
        %5636 = vst.msk [vmem:[%s271 + $0xc8] sm:$0xff] %vm278, %v5604
        %5637 = vst.msk [vmem:[%s271 + $0xd0] sm:$0xff] %vm278, %v5605
        %5638 = vst.msk [vmem:[%s271 + $0xd8] sm:$0xff] %vm278, %v5606
        %5639 = vst.msk [vmem:[%s271 + $0xe0] sm:$0xff] %vm278, %v5607
        %5640 = vst.msk [vmem:[%s271 + $0xe8] sm:$0xff] %vm278, %v5608
        %5641 = vst.msk [vmem:[%s271 + $0xf0] sm:$0xff] %vm278, %v5609
        %5642 = vst.msk [vmem:[%s271 + $0xf8] sm:$0xff] %vm278, %v5610
        %s5643 = sand.u32 %s181, 1
        %s5644 = scalar_lea.sflag [#allocation4], %s5643
        %s5645 = sand.u32 %s181, 1
        %s5646 = smul.addr %s5645, 256
        %s5647 = scalar_lea.vmem [#allocation3], %s5646
        // Predicated region
        $region49: #{residual_block.1} parent=47 // pred_check
          %p5648 = pneg %p191
        $region50: #{residual_block.1} parent=47 // pred_check_branch
          %5650 = sbr.rel (%p5648) target = $region52
        $region51: #{residual_block.1} parent=47 // pred_region
          %5652 = vsyncadd %s5644, 0
          %s5653 = smul.addr %s21, 32
          %s5654 = smul.addr %s5653, 8
          %s5655 = scalar_lea.hbm %s7, %s5654
          %s5656 = sshll.u32 %s5647, 4
          %s5657 = int_to_ptr.vmem [resolvable:$true] %s5656
          %s5658 = sshll.u32 %s5655, 4
          %s5659 = int_to_ptr.hbm [resolvable:$true] %s5658
          %5664 = dma.vmem_to_hbm [thread:$0]  %s5657, 4096, %s5659, %s5644, 128, 128, 8
        $region52: #{residual_block.1} parent=47 // pred_fallthru
          _
      $region48: #{residual_block.1} parent=5 // pred_fallthru
        _
      %p5665 = scmp.le.s32.totalorder 2, %s16
      // Predicated region
      $region53: #{residual_block.1} parent=5 // pred_check
        %p5666 = pneg %p5665
      $region54: #{residual_block.1} parent=5 // pred_check_branch
        %5668 = sbr.rel (%p5666) target = $region56
      $region55: #{residual_block.1} parent=5 // pred_region
        %s5669 = ssub.s32 %s16, 2
        // Predicated region
        $region57: #{residual_block.1} parent=55 // pred_check
          %p5670 = pneg %p197
        $region58: #{residual_block.1} parent=55 // pred_check_branch
          %5672 = sbr.rel (%p5670) target = $region60
        $region59: #{residual_block.1} parent=55 // pred_region
          %s5673 = sand.u32 %s182, 1
          %s5674 = scalar_lea.sflag [#allocation4], %s5673
          %s5675 = sand.u32 %s182, 1
          %s5676 = smul.addr %s5675, 256
          %s5677 = scalar_lea.vmem [#allocation3], %s5676
          %5679 = dma.done %s5674, 4096
        $region60: #{residual_block.1} parent=55 // pred_fallthru
          _
      $region56: #{residual_block.1} parent=5 // pred_fallthru
        _
    $region6: #{residual_block.1} parent=1 // loop_footer
      %s20 = sadd.s32 1, %s16
    $region7: #{residual_block.1} parent=1 // loop_footer_branch
      %15 = sbr.rel target = $region3
    $region8: #{residual_block.1} parent=1 // loop_exit
      _
    %5680 = vsyncpa [#allocation4], 1
    %s5681 = scalar_lea.sflag [#allocation4], 1
    %5682 = vsyncpa %s5681, 1

</llo_original>
